<compile_context>
chip_gen: v7x
topology: tpu7x:2x2x1
jax: 0.10.0
libtpu: 0.0.40
codegen_flags: <defaults>
</compile_context>

<pallas_src>
import functools

import jax
import jax.numpy as jnp
from jax.experimental import pallas as pl
from jax.experimental.pallas import tpu as pltpu


def _round_up(x, m):
    return ((x + m - 1) // m) * m


# ---------------------------------------------------------------------------
# Kernel: one batch tile runs the whole 3-layer MLP. bf16 MXU matmuls with
# f32 accumulation; bias-add / ReLU kept in f32 (safe on v5e, cheap everywhere).
# ---------------------------------------------------------------------------
def mlp_kernel(x_ref, w1_ref, b1_ref, w2_ref, b2_ref, w3_ref, b3_ref, o_ref):
    # Layer 1: Linear + bias + ReLU. Dropout(0.5) == identity at inference.
    h1 = jnp.dot(x_ref[...], w1_ref[...], preferred_element_type=jnp.float32)
    h1 = jnp.maximum(h1 + b1_ref[...], 0.0)

    # Layer 2: Linear + bias + ReLU. Dropout(0.3) == identity at inference.
    h2 = jnp.dot(h1.astype(w2_ref.dtype), w2_ref[...],
                 preferred_element_type=jnp.float32)
    h2 = jnp.maximum(h2 + b2_ref[...], 0.0)

    # Layer 3: Linear -> logits. Class dim is lane-padded to 128 so the store
    # is a full, unmasked vst.
    logits = jnp.dot(h2.astype(w3_ref.dtype), w3_ref[...],
                     preferred_element_type=jnp.float32)
    o_ref[...] = (logits + b3_ref[...]).astype(o_ref.dtype)


# ---------------------------------------------------------------------------
# One-time parameter preparation (hoisted out of the per-call forward).
# Weights stored (in, out) = transpose of PyTorch's (out, in) layout.
# ---------------------------------------------------------------------------
def prepare_params(params, compute_dtype=jnp.bfloat16):
    w1, b1 = params["w1"], params["b1"]
    w2, b2 = params["w2"], params["b2"]
    w3, b3 = params["w3"], params["b3"]
    in_dim, hidden = w1.shape
    hidden2 = w2.shape[1]
    num_classes = w3.shape[1]

    in_p = _round_up(in_dim, 128)
    h1_p = _round_up(hidden, 128)
    h2_p = _round_up(hidden2, 128)
    nc_p = _round_up(num_classes, 128)

    def pad2(a, rows, cols):
        return jnp.pad(a, ((0, rows - a.shape[0]), (0, cols - a.shape[1])))

    prepared = {
        "w1": pad2(w1, in_p, h1_p).astype(compute_dtype),
        "b1": pad2(b1, 1, h1_p).astype(jnp.float32),
        "w2": pad2(w2, h1_p, h2_p).astype(compute_dtype),
        "b2": pad2(b2, 1, h2_p).astype(jnp.float32),
        "w3": pad2(w3, h2_p, nc_p).astype(compute_dtype),
        "b3": pad2(b3, 1, nc_p).astype(jnp.float32),
    }
    prepared = jax.tree_util.tree_map(jax.block_until_ready, prepared)
    prepared["num_classes"] = num_classes  # python int (static)
    return prepared


def _select_tile_b(batch):
    # 128 fills the v5e MXU and keeps >= 2 grid steps for B in (128, 256]
    # (feeds both v7x TensorCores); 256 fills the 256x256 MXU on v6e/v7x;
    # 512 amortizes per-step overhead for large batches.
    if batch <= 256:
        return 128
    if batch <= 1024:
        return 256
    return 512


# ---------------------------------------------------------------------------
# Jitted forward: pad/cast of x fuses with the pallas_call in one XLA program.
# ---------------------------------------------------------------------------
@functools.partial(jax.jit, static_argnames=("tile_b", "num_classes"))
def _forward_impl(x, w1p, b1p, w2p, b2p, w3p, b3p, *, tile_b, num_classes):
    B, x_dim = x.shape
    in_p, h1_p = w1p.shape
    h2_p = w2p.shape[1]
    nc_p = w3p.shape[1]
    assert x_dim <= in_p, (x_dim, in_p)

    B_pad = _round_up(B, tile_b)
    grid = (B_pad // tile_b,)
    compute_dtype = w1p.dtype
    itemsize = jnp.dtype(compute_dtype).itemsize

    # Activation pad + cast (fused by XLA inside this jit).
    xp = jnp.pad(x, ((0, B_pad - B), (0, in_p - x_dim))).astype(compute_dtype)

    # Resident (constant-index) weight/bias blocks.
    full = lambda shape: pl.BlockSpec(shape, lambda i: (0, 0))

    # VMEM budget: double-buffered x/out tiles + (default double-buffered)
    # resident weights + f32 intermediates, with headroom. Keeps the kernel
    # inside v7x's smaller scoped-VMEM default while never exceeding its
    # 64 MiB physical VMEM.
    weight_bytes = ((w1p.size + w2p.size + w3p.size) * itemsize
                    + (b1p.size + b2p.size + b3p.size) * 4)
    x_tile_bytes = tile_b * in_p * itemsize
    out_tile_bytes = tile_b * nc_p * 4
    interm_bytes = tile_b * (h1_p + h2_p + nc_p) * 4
    vmem_need = 2 * x_tile_bytes + 2 * out_tile_bytes + 2 * weight_bytes + interm_bytes
    vmem_limit = min(max(int(vmem_need * 1.5) + (2 << 20), 32 << 20), 64 << 20)

    flops = 2 * B_pad * (in_p * h1_p + h1_p * h2_p + h2_p * nc_p)
    bytes_accessed = (xp.size * itemsize + weight_bytes + B_pad * nc_p * 4)

    out = pl.pallas_call(
        mlp_kernel,
        out_shape=jax.ShapeDtypeStruct((B_pad, nc_p), jnp.float32),
        grid_spec=pltpu.PrefetchScalarGridSpec(
            num_scalar_prefetch=0,
            grid=grid,
            in_specs=[
                pl.BlockSpec((tile_b, in_p), lambda i: (i, 0)),  # x tile streams
                full((in_p, h1_p)),
                full((1, h1_p)),
                full((h1_p, h2_p)),
                full((1, h2_p)),
                full((h2_p, nc_p)),
                full((1, nc_p)),
            ],
            out_specs=pl.BlockSpec((tile_b, nc_p), lambda i: (i, 0)),
        ),
        compiler_params=pltpu.CompilerParams(
            dimension_semantics=("parallel",),
            vmem_limit_bytes=vmem_limit,
        ),
        cost_estimate=pl.CostEstimate(
            flops=flops, transcendentals=0, bytes_accessed=bytes_accessed
        ),
    )(xp, w1p, b1p, w2p, b2p, w3p, b3p)

    # Strip batch padding and class-lane padding.
    return out[:B, :num_classes]


def weed_classifier_forward(x, prepared, *, tile_b=None):
    """x: (B, input_size) float32. prepared: output of prepare_params()."""
    if tile_b is None:
        tile_b = _select_tile_b(x.shape[0])
    return _forward_impl(
        x,
        prepared["w1"], prepared["b1"],
        prepared["w2"], prepared["b2"],
        prepared["w3"], prepared["b3"],
        tile_b=tile_b,
        num_classes=prepared["num_classes"],
    )


# ---------------------------------------------------------------------------
# Test harness.
# ---------------------------------------------------------------------------
def init_params(key, input_size, hidden_size, num_classes):
    """Deterministic synthetic parameters (shapes match WeedClassifier.__init__)."""
    h2 = hidden_size // 2
    ks = jax.random.split(key, 6)

    def linear(kw, kb, fan_in, fan_out):
        bound = 1.0 / jnp.sqrt(fan_in)
        w = jax.random.uniform(kw, (fan_in, fan_out), jnp.float32, -bound, bound)
        b = jax.random.uniform(kb, (1, fan_out), jnp.float32, -bound, bound)
        return w, b

    w1, b1 = linear(ks[0], ks[1], input_size, hidden_size)
    w2, b2 = linear(ks[2], ks[3], hidden_size, h2)
    w3, b3 = linear(ks[4], ks[5], h2, num_classes)
    return {"w1": w1, "b1": b1, "w2": w2, "b2": b2, "w3": w3, "b3": b3}


def reference_forward(x, p, compute_dtype=jnp.bfloat16):
    """Pure-JAX reference mirroring the kernel's precision (bf16 dot, f32 accum)."""
    def mm(a, w):
        return jnp.dot(a.astype(compute_dtype), w.astype(compute_dtype),
                       preferred_element_type=jnp.float32)

    h1 = jnp.maximum(mm(x, p["w1"]) + p["b1"], 0.0)
    h2 = jnp.maximum(mm(h1, p["w2"]) + p["b2"], 0.0)
    return mm(h2, p["w3"]) + p["b3"]


if __name__ == "__main__":
    # Shapes consistent with the module's default constructor arguments.
    INPUT_SIZE = 2048
    HIDDEN_SIZE = 512
    NUM_CLASSES = 3

    key = jax.random.PRNGKey(0)
    kx1, kx2, kp = jax.random.split(key, 3)
    params = init_params(kp, INPUT_SIZE, HIDDEN_SIZE, NUM_CLASSES)

    # One-time weight prep (pad + bf16 cast) hoisted out of the forward path.
    prepared = prepare_params(params)

    # Small batch (not a multiple of the tile): tile_b=128, grid=2.
    x1 = jax.random.normal(kx1, (200, INPUT_SIZE), jnp.float32)
    out1 = jax.block_until_ready(weed_classifier_forward(x1, prepared))
    ref1 = reference_forward(x1, params)
    assert out1.shape == (200, NUM_CLASSES), out1.shape
    assert jnp.allclose(out1, ref1, atol=1e-2, rtol=1e-2), (
        float(jnp.max(jnp.abs(out1 - ref1))))

    # Mid batch: exercises the MXU-filling tile_b=256 path, grid=3.
    x2 = jax.random.normal(kx2, (520, INPUT_SIZE), jnp.float32)
    out2 = jax.block_until_ready(weed_classifier_forward(x2, prepared))
    ref2 = reference_forward(x2, params)
    assert out2.shape == (520, NUM_CLASSES), out2.shape
    assert jnp.allclose(out2, ref2, atol=1e-2, rtol=1e-2), (
        float(jnp.max(jnp.abs(out2 - ref2))))

    print("KERNEL_OK")
</pallas_src>

<mosaic_0001>
module attributes {stable_mosaic.version = 11 : i64} {
  func.func @mlp_kernel(%arg0: i32, %arg1: memref<128x2048xbf16, #tpu.memory_space<vmem>>, %arg2: memref<2048x512xbf16, #tpu.memory_space<vmem>>, %arg3: memref<1x512xf32, #tpu.memory_space<vmem>>, %arg4: memref<512x256xbf16, #tpu.memory_space<vmem>>, %arg5: memref<1x256xf32, #tpu.memory_space<vmem>>, %arg6: memref<256x128xbf16, #tpu.memory_space<vmem>>, %arg7: memref<1x128xf32, #tpu.memory_space<vmem>>, %arg8: memref<128x128xf32, #tpu.memory_space<vmem>>) attributes {dimension_semantics = [#tpu.dimension_semantics<parallel>], iteration_bounds = array<i64: 2>, scalar_prefetch = 0 : i64, scratch_operands = 0 : i64, tpu.core_type = #tpu.core_type<tc>, window_params = [{transform_indices = @transform_0, window_bounds = array<i64: 128, 2048>}, {pipeline_mode = #tpu.pipeline_mode<synchronous>, transform_indices = @transform_1, window_bounds = array<i64: 2048, 512>}, {pipeline_mode = #tpu.pipeline_mode<synchronous>, transform_indices = @transform_2, window_bounds = array<i64: 1, 512>}, {pipeline_mode = #tpu.pipeline_mode<synchronous>, transform_indices = @transform_3, window_bounds = array<i64: 512, 256>}, {pipeline_mode = #tpu.pipeline_mode<synchronous>, transform_indices = @transform_4, window_bounds = array<i64: 1, 256>}, {pipeline_mode = #tpu.pipeline_mode<synchronous>, transform_indices = @transform_5, window_bounds = array<i64: 256, 128>}, {pipeline_mode = #tpu.pipeline_mode<synchronous>, transform_indices = @transform_6, window_bounds = array<i64: 1, 128>}, {transform_indices = @transform_7, window_bounds = array<i64: 128, 128>}]} {
    %c0 = arith.constant 0 : index
    %c0_0 = arith.constant 0 : index
    %0 = vector.load %arg1[%c0, %c0_0] : memref<128x2048xbf16, #tpu.memory_space<vmem>>, vector<128x2048xbf16>
    %c0_1 = arith.constant 0 : index
    %c0_2 = arith.constant 0 : index
    %1 = vector.load %arg2[%c0_1, %c0_2] : memref<2048x512xbf16, #tpu.memory_space<vmem>>, vector<2048x512xbf16>
    %cst = arith.constant dense<0.000000e+00> : vector<128x512xf32>
    %2 = tpu.matmul %0, %1, %cst {dimension_numbers = #tpu.dot_dimension_numbers<[1], [0], [0], [1], [0, 0, 1, 1], [], []>} : vector<128x2048xbf16>, vector<2048x512xbf16>, vector<128x512xf32> -> vector<128x512xf32>
    %c0_3 = arith.constant 0 : index
    %c0_4 = arith.constant 0 : index
    %3 = vector.load %arg3[%c0_3, %c0_4] : memref<1x512xf32, #tpu.memory_space<vmem>>, vector<1x512xf32>
    %4 = vector.broadcast %3 : vector<1x512xf32> to vector<128x512xf32>
    %5 = arith.addf %2, %4 : vector<128x512xf32>
    %cst_5 = arith.constant 0.000000e+00 : f32
    %6 = vector.broadcast %cst_5 : f32 to vector<128x512xf32>
    %7 = arith.maximumf %5, %6 : vector<128x512xf32>
    %8 = arith.truncf %7 : vector<128x512xf32> to vector<128x512xbf16>
    %c0_6 = arith.constant 0 : index
    %c0_7 = arith.constant 0 : index
    %9 = vector.load %arg4[%c0_6, %c0_7] : memref<512x256xbf16, #tpu.memory_space<vmem>>, vector<512x256xbf16>
    %cst_8 = arith.constant dense<0.000000e+00> : vector<128x256xf32>
    %10 = tpu.matmul %8, %9, %cst_8 {dimension_numbers = #tpu.dot_dimension_numbers<[1], [0], [0], [1], [0, 0, 1, 1], [], []>} : vector<128x512xbf16>, vector<512x256xbf16>, vector<128x256xf32> -> vector<128x256xf32>
    %c0_9 = arith.constant 0 : index
    %c0_10 = arith.constant 0 : index
    %11 = vector.load %arg5[%c0_9, %c0_10] : memref<1x256xf32, #tpu.memory_space<vmem>>, vector<1x256xf32>
    %12 = vector.broadcast %11 : vector<1x256xf32> to vector<128x256xf32>
    %13 = arith.addf %10, %12 : vector<128x256xf32>
    %cst_11 = arith.constant 0.000000e+00 : f32
    %14 = vector.broadcast %cst_11 : f32 to vector<128x256xf32>
    %15 = arith.maximumf %13, %14 : vector<128x256xf32>
    %16 = arith.truncf %15 : vector<128x256xf32> to vector<128x256xbf16>
    %c0_12 = arith.constant 0 : index
    %c0_13 = arith.constant 0 : index
    %17 = vector.load %arg6[%c0_12, %c0_13] : memref<256x128xbf16, #tpu.memory_space<vmem>>, vector<256x128xbf16>
    %cst_14 = arith.constant dense<0.000000e+00> : vector<128x128xf32>
    %18 = tpu.matmul %16, %17, %cst_14 {dimension_numbers = #tpu.dot_dimension_numbers<[1], [0], [0], [1], [0, 0, 1, 1], [], []>} : vector<128x256xbf16>, vector<256x128xbf16>, vector<128x128xf32> -> vector<128x128xf32>
    %c0_15 = arith.constant 0 : index
    %c0_16 = arith.constant 0 : index
    %19 = vector.load %arg7[%c0_15, %c0_16] : memref<1x128xf32, #tpu.memory_space<vmem>>, vector<1x128xf32>
    %20 = vector.broadcast %19 : vector<1x128xf32> to vector<128x128xf32>
    %21 = arith.addf %18, %20 : vector<128x128xf32>
    %c0_17 = arith.constant 0 : index
    %c0_18 = arith.constant 0 : index
    %22 = vector.load %arg8[%c0_17, %c0_18] : memref<128x128xf32, #tpu.memory_space<vmem>>, vector<128x128xf32>
    tpu.vector_store %arg8[%c0_17, %c0_18], %21 {strides = array<i32>} : memref<128x128xf32, #tpu.memory_space<vmem>>, vector<128x128xf32>,
    return
  }
  func.func @transform_0(%arg0: i32) -> (i32, i32) {
    %c0_i32 = arith.constant 0 : i32
    %c0_i32_0 = arith.constant 0 : i32
    return %arg0, %c0_i32 : i32, i32
  }
  func.func @transform_1(%arg0: i32) -> (i32, i32) {
    %c0_i32 = arith.constant 0 : i32
    %c0_i32_0 = arith.constant 0 : i32
    %c0_i32_1 = arith.constant 0 : i32
    return %c0_i32, %c0_i32_0 : i32, i32
  }
  func.func @transform_2(%arg0: i32) -> (i32, i32) {
    %c0_i32 = arith.constant 0 : i32
    %c0_i32_0 = arith.constant 0 : i32
    %c0_i32_1 = arith.constant 0 : i32
    return %c0_i32, %c0_i32_0 : i32, i32
  }
  func.func @transform_3(%arg0: i32) -> (i32, i32) {
    %c0_i32 = arith.constant 0 : i32
    %c0_i32_0 = arith.constant 0 : i32
    %c0_i32_1 = arith.constant 0 : i32
    return %c0_i32, %c0_i32_0 : i32, i32
  }
  func.func @transform_4(%arg0: i32) -> (i32, i32) {
    %c0_i32 = arith.constant 0 : i32
    %c0_i32_0 = arith.constant 0 : i32
    %c0_i32_1 = arith.constant 0 : i32
    return %c0_i32, %c0_i32_0 : i32, i32
  }
  func.func @transform_5(%arg0: i32) -> (i32, i32) {
    %c0_i32 = arith.constant 0 : i32
    %c0_i32_0 = arith.constant 0 : i32
    %c0_i32_1 = arith.constant 0 : i32
    return %c0_i32, %c0_i32_0 : i32, i32
  }
  func.func @transform_6(%arg0: i32) -> (i32, i32) {
    %c0_i32 = arith.constant 0 : i32
    %c0_i32_0 = arith.constant 0 : i32
    %c0_i32_1 = arith.constant 0 : i32
    return %c0_i32, %c0_i32_0 : i32, i32
  }
  func.func @transform_7(%arg0: i32) -> (i32, i32) {
    %c0_i32 = arith.constant 0 : i32
    %c0_i32_0 = arith.constant 0 : i32
    return %arg0, %c0_i32 : i32, i32
  }
}

</mosaic_0001>

<llo_original>
// kernel: _forward_impl.1
$region0: #{_forward_impl.1}
  #allocation0 [shape = 'u32[]', space=smem, size = 0x4, offset = 0x4, fixed_abs, tag = 'smem constant byte address 0x4 - core index']
  #allocation1 [shape = 'u32[144,128]{1,0:T(1,128)}', space=vmem, size = 0x12000, scoped, tag = 'internal scratch']
  %s0 = inlined_call_operand.vmem [shape: bf16[256,2048], index: 0, kind: input, shape index: {}]
  %s1 = inlined_call_operand.vmem [shape: bf16[2048,512], index: 1, kind: input, shape index: {}]
  %s2 = inlined_call_operand.vmem [shape: f32[1,512], index: 2, kind: input, shape index: {}]
  %s3 = inlined_call_operand.vmem [shape: bf16[512,256], index: 3, kind: input, shape index: {}]
  %s4 = inlined_call_operand.vmem [shape: f32[1,256], index: 4, kind: input, shape index: {}]
  %s5 = inlined_call_operand.vmem [shape: bf16[256,128], index: 5, kind: input, shape index: {}]
  %s6 = inlined_call_operand.vmem [shape: f32[1,128], index: 6, kind: input, shape index: {}]
  %s7 = inlined_call_operand.vmem [shape: f32[256,128], index: 7, kind: output, shape index: {}]
  %s8 = sld [smem:[#allocation0]]
  $region61: #{_forward_impl.1} parent=0
    _
  %s10 = ssub.s32 1, %s8
  %s11 = scalar_select 0, %s10, %s8
  loop: start=0, step=1, limit=4
  $region2: #{_forward_impl.1} parent=0 // loop_pre_header
    _
  $region3: #{_forward_impl.1} parent=0 // loop_header
    %s13 = sphi 0, %s17
    %p14 = scmp.ge.s32.totalorder %s13, 4
    %s23 = sphi 0, %s25
    %s26 = sphi 0, %s23
    %s27 = sphi 0, %s26
    %s43 = sphi 0, %s27
    %s47 = sphi 0, %s47
    %s49 = sphi 0, %s47
    %s50 = sphi 0, %s49
    %s64 = sphi 0, %s50
    %s68 = sphi 0, %s68
    %s70 = sphi 0, %s68
    %s71 = sphi 0, %s70
    %s85 = sphi 0, %s71
    %s89 = sphi 0, %s89
    %s91 = sphi 0, %s89
    %s92 = sphi 0, %s91
    %s106 = sphi 0, %s92
    %s110 = sphi 0, %s110
    %s112 = sphi 0, %s110
    %s113 = sphi 0, %s112
    %s127 = sphi 0, %s113
    %s131 = sphi 0, %s131
    %s133 = sphi 0, %s131
    %s134 = sphi 0, %s133
    %s148 = sphi 0, %s134
    %s152 = sphi 0, %s152
    %s154 = sphi 0, %s152
    %s155 = sphi 0, %s154
    %s169 = sphi 0, %s155
    %s175 = sphi 0, %s177
    %s178 = sphi 0, %s175
    %s179 = sphi 0, %s178
    %s195 = sphi 0, %s179
  $region4: #{_forward_impl.1} parent=0 // loop_header_branch
    %16 = sbr.rel (%p14) target = $region8
  $region5: #{_forward_impl.1} parent=0 // loop_body
    %s18 = ssub.s32 %s13, 1
    %s19 = ssub.s32 %s13, 2
    %s20 = sadd.s32 %s13, 1
    %s21 = ssub.s32 %s13, %s20
    %p22 = scmp.eq.s32.totalorder %s21, 0
    %s24 = sadd.s32 %s23, 1
    %s25 = scalar_select %p22, %s23, %s24
    %p28 = pneg %p22
    %p29 = scmp.eq.s32.totalorder %s13, 1
    %p30 = por %p28, %p29
    %p31 = scmp.ne.s32.totalorder %s23, %s26
    %p32 = scmp.eq.s32.totalorder %s13, 0
    %p33 = por %p31, %p32
    %p34 = scmp.ne.s32.totalorder %s23, %s26
    %p35 = scmp.eq.s32.totalorder %s18, 1
    %p36 = por %p34, %p35
    %p37 = scmp.ne.s32.totalorder %s26, %s27
    %p38 = scmp.eq.s32.totalorder %s18, 0
    %p39 = por %p37, %p38
    %p40 = scmp.ne.s32.totalorder %s26, %s27
    %p41 = scmp.eq.s32.totalorder %s19, 1
    %p42 = por %p40, %p41
    %p44 = scmp.ne.s32.totalorder %s27, %s43
    %p45 = scmp.eq.s32.totalorder %s19, 0
    %p46 = por %p44, %p45
    %s48 = sadd.s32 %s47, 1
    %p51 = scmp.eq.s32.totalorder %s13, 1
    %p52 = scmp.ne.s32.totalorder %s47, %s49
    %p53 = scmp.eq.s32.totalorder %s13, 0
    %p54 = por %p52, %p53
    %p55 = scmp.ne.s32.totalorder %s47, %s49
    %p56 = scmp.eq.s32.totalorder %s18, 1
    %p57 = por %p55, %p56
    %p58 = scmp.ne.s32.totalorder %s49, %s50
    %p59 = scmp.eq.s32.totalorder %s18, 0
    %p60 = por %p58, %p59
    %p61 = scmp.ne.s32.totalorder %s49, %s50
    %p62 = scmp.eq.s32.totalorder %s19, 1
    %p63 = por %p61, %p62
    %p65 = scmp.ne.s32.totalorder %s50, %s64
    %p66 = scmp.eq.s32.totalorder %s19, 0
    %p67 = por %p65, %p66
    %s69 = sadd.s32 %s68, 1
    %p72 = scmp.eq.s32.totalorder %s13, 1
    %p73 = scmp.ne.s32.totalorder %s68, %s70
    %p74 = scmp.eq.s32.totalorder %s13, 0
    %p75 = por %p73, %p74
    %p76 = scmp.ne.s32.totalorder %s68, %s70
    %p77 = scmp.eq.s32.totalorder %s18, 1
    %p78 = por %p76, %p77
    %p79 = scmp.ne.s32.totalorder %s70, %s71
    %p80 = scmp.eq.s32.totalorder %s18, 0
    %p81 = por %p79, %p80
    %p82 = scmp.ne.s32.totalorder %s70, %s71
    %p83 = scmp.eq.s32.totalorder %s19, 1
    %p84 = por %p82, %p83
    %p86 = scmp.ne.s32.totalorder %s71, %s85
    %p87 = scmp.eq.s32.totalorder %s19, 0
    %p88 = por %p86, %p87
    %s90 = sadd.s32 %s89, 1
    %p93 = scmp.eq.s32.totalorder %s13, 1
    %p94 = scmp.ne.s32.totalorder %s89, %s91
    %p95 = scmp.eq.s32.totalorder %s13, 0
    %p96 = por %p94, %p95
    %p97 = scmp.ne.s32.totalorder %s89, %s91
    %p98 = scmp.eq.s32.totalorder %s18, 1
    %p99 = por %p97, %p98
    %p100 = scmp.ne.s32.totalorder %s91, %s92
    %p101 = scmp.eq.s32.totalorder %s18, 0
    %p102 = por %p100, %p101
    %p103 = scmp.ne.s32.totalorder %s91, %s92
    %p104 = scmp.eq.s32.totalorder %s19, 1
    %p105 = por %p103, %p104
    %p107 = scmp.ne.s32.totalorder %s92, %s106
    %p108 = scmp.eq.s32.totalorder %s19, 0
    %p109 = por %p107, %p108
    %s111 = sadd.s32 %s110, 1
    %p114 = scmp.eq.s32.totalorder %s13, 1
    %p115 = scmp.ne.s32.totalorder %s110, %s112
    %p116 = scmp.eq.s32.totalorder %s13, 0
    %p117 = por %p115, %p116
    %p118 = scmp.ne.s32.totalorder %s110, %s112
    %p119 = scmp.eq.s32.totalorder %s18, 1
    %p120 = por %p118, %p119
    %p121 = scmp.ne.s32.totalorder %s112, %s113
    %p122 = scmp.eq.s32.totalorder %s18, 0
    %p123 = por %p121, %p122
    %p124 = scmp.ne.s32.totalorder %s112, %s113
    %p125 = scmp.eq.s32.totalorder %s19, 1
    %p126 = por %p124, %p125
    %p128 = scmp.ne.s32.totalorder %s113, %s127
    %p129 = scmp.eq.s32.totalorder %s19, 0
    %p130 = por %p128, %p129
    %s132 = sadd.s32 %s131, 1
    %p135 = scmp.eq.s32.totalorder %s13, 1
    %p136 = scmp.ne.s32.totalorder %s131, %s133
    %p137 = scmp.eq.s32.totalorder %s13, 0
    %p138 = por %p136, %p137
    %p139 = scmp.ne.s32.totalorder %s131, %s133
    %p140 = scmp.eq.s32.totalorder %s18, 1
    %p141 = por %p139, %p140
    %p142 = scmp.ne.s32.totalorder %s133, %s134
    %p143 = scmp.eq.s32.totalorder %s18, 0
    %p144 = por %p142, %p143
    %p145 = scmp.ne.s32.totalorder %s133, %s134
    %p146 = scmp.eq.s32.totalorder %s19, 1
    %p147 = por %p145, %p146
    %p149 = scmp.ne.s32.totalorder %s134, %s148
    %p150 = scmp.eq.s32.totalorder %s19, 0
    %p151 = por %p149, %p150
    %s153 = sadd.s32 %s152, 1
    %p156 = scmp.eq.s32.totalorder %s13, 1
    %p157 = scmp.ne.s32.totalorder %s152, %s154
    %p158 = scmp.eq.s32.totalorder %s13, 0
    %p159 = por %p157, %p158
    %p160 = scmp.ne.s32.totalorder %s152, %s154
    %p161 = scmp.eq.s32.totalorder %s18, 1
    %p162 = por %p160, %p161
    %p163 = scmp.ne.s32.totalorder %s154, %s155
    %p164 = scmp.eq.s32.totalorder %s18, 0
    %p165 = por %p163, %p164
    %p166 = scmp.ne.s32.totalorder %s154, %s155
    %p167 = scmp.eq.s32.totalorder %s19, 1
    %p168 = por %p166, %p167
    %p170 = scmp.ne.s32.totalorder %s155, %s169
    %p171 = scmp.eq.s32.totalorder %s19, 0
    %p172 = por %p170, %p171
    %s173 = ssub.s32 %s13, %s20
    %p174 = scmp.eq.s32.totalorder %s173, 0
    %s176 = sadd.s32 %s175, 1
    %s177 = scalar_select %p174, %s175, %s176
    %p180 = pneg %p174
    %p181 = scmp.eq.s32.totalorder %s13, 1
    %p182 = por %p180, %p181
    %p183 = scmp.ne.s32.totalorder %s175, %s178
    %p184 = scmp.eq.s32.totalorder %s13, 0
    %p185 = por %p183, %p184
    %p186 = scmp.ne.s32.totalorder %s175, %s178
    %p187 = scmp.eq.s32.totalorder %s18, 1
    %p188 = por %p186, %p187
    %p189 = scmp.ne.s32.totalorder %s178, %s179
    %p190 = scmp.eq.s32.totalorder %s18, 0
    %p191 = por %p189, %p190
    %p192 = scmp.ne.s32.totalorder %s178, %s179
    %p193 = scmp.eq.s32.totalorder %s19, 1
    %p194 = por %p192, %p193
    %p196 = scmp.ne.s32.totalorder %s179, %s195
    %p197 = scmp.eq.s32.totalorder %s19, 0
    %p198 = por %p196, %p197
    %p199 = scmp.le.s32.totalorder 1, %s13
    %p200 = scmp.lt.s32.totalorder %s13, 3
    %p201 = pnand %p199, %p200
    %p202 = pneg %p201
    // Predicated region
    $region9: #{_forward_impl.1} parent=5 // pred_check
      _
    $region10: #{_forward_impl.1} parent=5 // pred_check_branch
      %204 = sbr.rel (%p201) target = $region12
    $region11: #{_forward_impl.1} parent=5 // pred_region
      %s205 = ssub.s32 %s13, 1
      // Predicated region
      $region13: #{_forward_impl.1} parent=11 // pred_check
        %p206 = pneg %p60
      $region14: #{_forward_impl.1} parent=11 // pred_check_branch
        %208 = sbr.rel (%p206) target = $region16
      $region15: #{_forward_impl.1} parent=11 // pred_region
        _
      $region16: #{_forward_impl.1} parent=11 // pred_fallthru
        _
      // Predicated region
      $region17: #{_forward_impl.1} parent=11 // pred_check
        %p209 = pneg %p81
      $region18: #{_forward_impl.1} parent=11 // pred_check_branch
        %211 = sbr.rel (%p209) target = $region20
      $region19: #{_forward_impl.1} parent=11 // pred_region
        _
      $region20: #{_forward_impl.1} parent=11 // pred_fallthru
        _
      // Predicated region
      $region21: #{_forward_impl.1} parent=11 // pred_check
        %p212 = pneg %p102
      $region22: #{_forward_impl.1} parent=11 // pred_check_branch
        %214 = sbr.rel (%p212) target = $region24
      $region23: #{_forward_impl.1} parent=11 // pred_region
        _
      $region24: #{_forward_impl.1} parent=11 // pred_fallthru
        _
      // Predicated region
      $region25: #{_forward_impl.1} parent=11 // pred_check
        %p215 = pneg %p123
      $region26: #{_forward_impl.1} parent=11 // pred_check_branch
        %217 = sbr.rel (%p215) target = $region28
      $region27: #{_forward_impl.1} parent=11 // pred_region
        _
      $region28: #{_forward_impl.1} parent=11 // pred_fallthru
        _
      // Predicated region
      $region29: #{_forward_impl.1} parent=11 // pred_check
        %p218 = pneg %p144
      $region30: #{_forward_impl.1} parent=11 // pred_check_branch
        %220 = sbr.rel (%p218) target = $region32
      $region31: #{_forward_impl.1} parent=11 // pred_region
        _
      $region32: #{_forward_impl.1} parent=11 // pred_fallthru
        _
      // Predicated region
      $region33: #{_forward_impl.1} parent=11 // pred_check
        %p221 = pneg %p165
      $region34: #{_forward_impl.1} parent=11 // pred_check_branch
        %223 = sbr.rel (%p221) target = $region36
      $region35: #{_forward_impl.1} parent=11 // pred_region
        _
      $region36: #{_forward_impl.1} parent=11 // pred_fallthru
        _
    $region12: #{_forward_impl.1} parent=5 // pred_fallthru
      _
    %p224 = scmp.lt.s32.totalorder %s13, 2
    // Predicated region
    $region37: #{_forward_impl.1} parent=5 // pred_check
      %p225 = pneg %p224
    $region38: #{_forward_impl.1} parent=5 // pred_check_branch
      %227 = sbr.rel (%p225) target = $region40
    $region39: #{_forward_impl.1} parent=5 // pred_region
      // Predicated region
      $region41: #{_forward_impl.1} parent=39 // pred_check
        %p228 = pneg %p33
      $region42: #{_forward_impl.1} parent=39 // pred_check_branch
        %230 = sbr.rel (%p228) target = $region44
      $region43: #{_forward_impl.1} parent=39 // pred_region
        %s231 = smul.u32 16, %s13
        %p232 = scmp.lt.s32.totalorder %s231, 31
        %s233 = scalar_select %p232, %s231, 31
        %s234 = smul.addr %s233, 16
        %s235 = smul.addr %s234, 4
        %s236 = scalar_lea.vmem %s0, %s235
        %s237 = smul.u32 16, %s13
      $region44: #{_forward_impl.1} parent=39 // pred_fallthru
        _
    $region40: #{_forward_impl.1} parent=5 // pred_fallthru
      _
    %p238 = scmp.le.s32.totalorder 1, %s13
    %p239 = scmp.lt.s32.totalorder %s13, 3
    %p240 = pnand %p238, %p239
    %p241 = pneg %p240
    // Predicated region
    $region45: #{_forward_impl.1} parent=5 // pred_check
      _
    $region46: #{_forward_impl.1} parent=5 // pred_check_branch
      %243 = sbr.rel (%p240) target = $region48
    $region47: #{_forward_impl.1} parent=5 // pred_region
      %s244 = ssub.s32 %s13, 1
      %s245 = smul.u32 16, %s18
      %p246 = scmp.lt.s32.totalorder %s245, 31
      %s247 = scalar_select %p246, %s245, 31
      %s248 = smul.addr %s247, 16
      %s249 = smul.addr %s248, 4
      %s250 = scalar_lea.vmem %s0, %s249
      %p251 = pneg %p39
      %p252 = pneg %p36
      %p253 = pneg %p60
      %p254 = pneg %p57
      %p255 = pneg %p81
      %p256 = pneg %p78
      %p257 = pneg %p102
      %p258 = pneg %p99
      %p259 = pneg %p123
      %p260 = pneg %p120
      %p261 = pneg %p144
      %p262 = pneg %p141
      %p263 = pneg %p165
      %p264 = pneg %p162
      %p265 = pneg %p191
      %p266 = pneg %p188
      %s267 = smul.u32 16, %s18
      %p268 = scmp.lt.s32.totalorder %s267, 31
      %s269 = scalar_select %p268, %s267, 31
      %s270 = smul.addr %s269, 8
      %s271 = scalar_lea.vmem %s7, %s270
      %s272 = smul.u32 16, %s18
      %p273 = scmp.lt.s32.totalorder %s272, 31
      %s274 = scalar_select %p273, %s272, 31
      %s275 = smul.addr %s274, 16
      %s276 = smul.addr %s275, 4
      %s277 = scalar_lea.vmem %s0, %s276
      %s278 = smul.u32 16, %s18
      %s279 = smul.u32 16, %s18
      %p280 = scmp.lt.s32.totalorder %s279, 31
      %s281 = scalar_select %p280, %s279, 31
      %s282 = smul.addr %s281, 8
      %s283 = scalar_lea.vmem %s7, %s282
      %s284 = smul.u32 16, %s18
      %v286 = vld [vmem:[%s277] sm:$0xff]
      %v287 = vld [vmem:[%s277 + $0x8] sm:$0xff]
      %v288 = vld [vmem:[%s277 + $0x10] sm:$0xff]
      %v289 = vld [vmem:[%s277 + $0x18] sm:$0xff]
      %v290 = vld [vmem:[%s277 + $0x20] sm:$0xff]
      %v291 = vld [vmem:[%s277 + $0x28] sm:$0xff]
      %v292 = vld [vmem:[%s277 + $0x30] sm:$0xff]
      %v293 = vld [vmem:[%s277 + $0x38] sm:$0xff]
      %v294 = vld [vmem:[%s277 + $0x40] sm:$0xff]
      %v295 = vld [vmem:[%s277 + $0x48] sm:$0xff]
      %v296 = vld [vmem:[%s277 + $0x50] sm:$0xff]
      %v297 = vld [vmem:[%s277 + $0x58] sm:$0xff]
      %v298 = vld [vmem:[%s277 + $0x60] sm:$0xff]
      %v299 = vld [vmem:[%s277 + $0x68] sm:$0xff]
      %v300 = vld [vmem:[%s277 + $0x70] sm:$0xff]
      %v301 = vld [vmem:[%s277 + $0x78] sm:$0xff]
      %v302 = vld [vmem:[%s277 + $0x80] sm:$0xff]
      %v303 = vld [vmem:[%s277 + $0x88] sm:$0xff]
      %v304 = vld [vmem:[%s277 + $0x90] sm:$0xff]
      %v305 = vld [vmem:[%s277 + $0x98] sm:$0xff]
      %v306 = vld [vmem:[%s277 + $0xa0] sm:$0xff]
      %v307 = vld [vmem:[%s277 + $0xa8] sm:$0xff]
      %v308 = vld [vmem:[%s277 + $0xb0] sm:$0xff]
      %v309 = vld [vmem:[%s277 + $0xb8] sm:$0xff]
      %v310 = vld [vmem:[%s277 + $0xc0] sm:$0xff]
      %v311 = vld [vmem:[%s277 + $0xc8] sm:$0xff]
      %v312 = vld [vmem:[%s277 + $0xd0] sm:$0xff]
      %v313 = vld [vmem:[%s277 + $0xd8] sm:$0xff]
      %v314 = vld [vmem:[%s277 + $0xe0] sm:$0xff]
      %v315 = vld [vmem:[%s277 + $0xe8] sm:$0xff]
      %v316 = vld [vmem:[%s277 + $0xf0] sm:$0xff]
      %v317 = vld [vmem:[%s277 + $0xf8] sm:$0xff]
      %v318 = vld [vmem:[%s277 + $0x100] sm:$0xff]
      %v319 = vld [vmem:[%s277 + $0x108] sm:$0xff]
      %v320 = vld [vmem:[%s277 + $0x110] sm:$0xff]
      %v321 = vld [vmem:[%s277 + $0x118] sm:$0xff]
      %v322 = vld [vmem:[%s277 + $0x120] sm:$0xff]
      %v323 = vld [vmem:[%s277 + $0x128] sm:$0xff]
      %v324 = vld [vmem:[%s277 + $0x130] sm:$0xff]
      %v325 = vld [vmem:[%s277 + $0x138] sm:$0xff]
      %v326 = vld [vmem:[%s277 + $0x140] sm:$0xff]
      %v327 = vld [vmem:[%s277 + $0x148] sm:$0xff]
      %v328 = vld [vmem:[%s277 + $0x150] sm:$0xff]
      %v329 = vld [vmem:[%s277 + $0x158] sm:$0xff]
      %v330 = vld [vmem:[%s277 + $0x160] sm:$0xff]
      %v331 = vld [vmem:[%s277 + $0x168] sm:$0xff]
      %v332 = vld [vmem:[%s277 + $0x170] sm:$0xff]
      %v333 = vld [vmem:[%s277 + $0x178] sm:$0xff]
      %v334 = vld [vmem:[%s277 + $0x180] sm:$0xff]
      %v335 = vld [vmem:[%s277 + $0x188] sm:$0xff]
      %v336 = vld [vmem:[%s277 + $0x190] sm:$0xff]
      %v337 = vld [vmem:[%s277 + $0x198] sm:$0xff]
      %v338 = vld [vmem:[%s277 + $0x1a0] sm:$0xff]
      %v339 = vld [vmem:[%s277 + $0x1a8] sm:$0xff]
      %v340 = vld [vmem:[%s277 + $0x1b0] sm:$0xff]
      %v341 = vld [vmem:[%s277 + $0x1b8] sm:$0xff]
      %v342 = vld [vmem:[%s277 + $0x1c0] sm:$0xff]
      %v343 = vld [vmem:[%s277 + $0x1c8] sm:$0xff]
      %v344 = vld [vmem:[%s277 + $0x1d0] sm:$0xff]
      %v345 = vld [vmem:[%s277 + $0x1d8] sm:$0xff]
      %v346 = vld [vmem:[%s277 + $0x1e0] sm:$0xff]
      %v347 = vld [vmem:[%s277 + $0x1e8] sm:$0xff]
      %v348 = vld [vmem:[%s277 + $0x1f0] sm:$0xff]
      %v349 = vld [vmem:[%s277 + $0x1f8] sm:$0xff]
      %v350 = vld [vmem:[%s277 + $0x200] sm:$0xff]
      %v351 = vld [vmem:[%s277 + $0x208] sm:$0xff]
      %v352 = vld [vmem:[%s277 + $0x210] sm:$0xff]
      %v353 = vld [vmem:[%s277 + $0x218] sm:$0xff]
      %v354 = vld [vmem:[%s277 + $0x220] sm:$0xff]
      %v355 = vld [vmem:[%s277 + $0x228] sm:$0xff]
      %v356 = vld [vmem:[%s277 + $0x230] sm:$0xff]
      %v357 = vld [vmem:[%s277 + $0x238] sm:$0xff]
      %v358 = vld [vmem:[%s277 + $0x240] sm:$0xff]
      %v359 = vld [vmem:[%s277 + $0x248] sm:$0xff]
      %v360 = vld [vmem:[%s277 + $0x250] sm:$0xff]
      %v361 = vld [vmem:[%s277 + $0x258] sm:$0xff]
      %v362 = vld [vmem:[%s277 + $0x260] sm:$0xff]
      %v363 = vld [vmem:[%s277 + $0x268] sm:$0xff]
      %v364 = vld [vmem:[%s277 + $0x270] sm:$0xff]
      %v365 = vld [vmem:[%s277 + $0x278] sm:$0xff]
      %v366 = vld [vmem:[%s277 + $0x280] sm:$0xff]
      %v367 = vld [vmem:[%s277 + $0x288] sm:$0xff]
      %v368 = vld [vmem:[%s277 + $0x290] sm:$0xff]
      %v369 = vld [vmem:[%s277 + $0x298] sm:$0xff]
      %v370 = vld [vmem:[%s277 + $0x2a0] sm:$0xff]
      %v371 = vld [vmem:[%s277 + $0x2a8] sm:$0xff]
      %v372 = vld [vmem:[%s277 + $0x2b0] sm:$0xff]
      %v373 = vld [vmem:[%s277 + $0x2b8] sm:$0xff]
      %v374 = vld [vmem:[%s277 + $0x2c0] sm:$0xff]
      %v375 = vld [vmem:[%s277 + $0x2c8] sm:$0xff]
      %v376 = vld [vmem:[%s277 + $0x2d0] sm:$0xff]
      %v377 = vld [vmem:[%s277 + $0x2d8] sm:$0xff]
      %v378 = vld [vmem:[%s277 + $0x2e0] sm:$0xff]
      %v379 = vld [vmem:[%s277 + $0x2e8] sm:$0xff]
      %v380 = vld [vmem:[%s277 + $0x2f0] sm:$0xff]
      %v381 = vld [vmem:[%s277 + $0x2f8] sm:$0xff]
      %v382 = vld [vmem:[%s277 + $0x300] sm:$0xff]
      %v383 = vld [vmem:[%s277 + $0x308] sm:$0xff]
      %v384 = vld [vmem:[%s277 + $0x310] sm:$0xff]
      %v385 = vld [vmem:[%s277 + $0x318] sm:$0xff]
      %v386 = vld [vmem:[%s277 + $0x320] sm:$0xff]
      %v387 = vld [vmem:[%s277 + $0x328] sm:$0xff]
      %v388 = vld [vmem:[%s277 + $0x330] sm:$0xff]
      %v389 = vld [vmem:[%s277 + $0x338] sm:$0xff]
      %v390 = vld [vmem:[%s277 + $0x340] sm:$0xff]
      %v391 = vld [vmem:[%s277 + $0x348] sm:$0xff]
      %v392 = vld [vmem:[%s277 + $0x350] sm:$0xff]
      %v393 = vld [vmem:[%s277 + $0x358] sm:$0xff]
      %v394 = vld [vmem:[%s277 + $0x360] sm:$0xff]
      %v395 = vld [vmem:[%s277 + $0x368] sm:$0xff]
      %v396 = vld [vmem:[%s277 + $0x370] sm:$0xff]
      %v397 = vld [vmem:[%s277 + $0x378] sm:$0xff]
      %v398 = vld [vmem:[%s277 + $0x380] sm:$0xff]
      %v399 = vld [vmem:[%s277 + $0x388] sm:$0xff]
      %v400 = vld [vmem:[%s277 + $0x390] sm:$0xff]
      %v401 = vld [vmem:[%s277 + $0x398] sm:$0xff]
      %v402 = vld [vmem:[%s277 + $0x3a0] sm:$0xff]
      %v403 = vld [vmem:[%s277 + $0x3a8] sm:$0xff]
      %v404 = vld [vmem:[%s277 + $0x3b0] sm:$0xff]
      %v405 = vld [vmem:[%s277 + $0x3b8] sm:$0xff]
      %v406 = vld [vmem:[%s277 + $0x3c0] sm:$0xff]
      %v407 = vld [vmem:[%s277 + $0x3c8] sm:$0xff]
      %v408 = vld [vmem:[%s277 + $0x3d0] sm:$0xff]
      %v409 = vld [vmem:[%s277 + $0x3d8] sm:$0xff]
      %v410 = vld [vmem:[%s277 + $0x3e0] sm:$0xff]
      %v411 = vld [vmem:[%s277 + $0x3e8] sm:$0xff]
      %v412 = vld [vmem:[%s277 + $0x3f0] sm:$0xff]
      %v413 = vld [vmem:[%s277 + $0x3f8] sm:$0xff]
      %v414 = vld [vmem:[%s1] sm:$0xff]
      %v415 = vld [vmem:[%s1 + $0x8] sm:$0xff]
      %v416 = vld [vmem:[%s1 + $0x10] sm:$0xff]
      %v417 = vld [vmem:[%s1 + $0x18] sm:$0xff]
      %v418 = vld [vmem:[%s1 + $0x20] sm:$0xff]
      %v419 = vld [vmem:[%s1 + $0x28] sm:$0xff]
      %v420 = vld [vmem:[%s1 + $0x30] sm:$0xff]
      %v421 = vld [vmem:[%s1 + $0x38] sm:$0xff]
      %v422 = vld [vmem:[%s1 + $0x40] sm:$0xff]
      %v423 = vld [vmem:[%s1 + $0x48] sm:$0xff]
      %v424 = vld [vmem:[%s1 + $0x50] sm:$0xff]
      %v425 = vld [vmem:[%s1 + $0x58] sm:$0xff]
      %v426 = vld [vmem:[%s1 + $0x60] sm:$0xff]
      %v427 = vld [vmem:[%s1 + $0x68] sm:$0xff]
      %v428 = vld [vmem:[%s1 + $0x70] sm:$0xff]
      %v429 = vld [vmem:[%s1 + $0x78] sm:$0xff]
      %v430 = vld [vmem:[%s1 + $0x80] sm:$0xff]
      %v431 = vld [vmem:[%s1 + $0x88] sm:$0xff]
      %v432 = vld [vmem:[%s1 + $0x90] sm:$0xff]
      %v433 = vld [vmem:[%s1 + $0x98] sm:$0xff]
      %v434 = vld [vmem:[%s1 + $0xa0] sm:$0xff]
      %v435 = vld [vmem:[%s1 + $0xa8] sm:$0xff]
      %v436 = vld [vmem:[%s1 + $0xb0] sm:$0xff]
      %v437 = vld [vmem:[%s1 + $0xb8] sm:$0xff]
      %v438 = vld [vmem:[%s1 + $0xc0] sm:$0xff]
      %v439 = vld [vmem:[%s1 + $0xc8] sm:$0xff]
      %v440 = vld [vmem:[%s1 + $0xd0] sm:$0xff]
      %v441 = vld [vmem:[%s1 + $0xd8] sm:$0xff]
      %v442 = vld [vmem:[%s1 + $0xe0] sm:$0xff]
      %v443 = vld [vmem:[%s1 + $0xe8] sm:$0xff]
      %v444 = vld [vmem:[%s1 + $0xf0] sm:$0xff]
      %v445 = vld [vmem:[%s1 + $0xf8] sm:$0xff]
      %v446 = vld [vmem:[%s1 + $0x100] sm:$0xff]
      %v447 = vld [vmem:[%s1 + $0x108] sm:$0xff]
      %v448 = vld [vmem:[%s1 + $0x110] sm:$0xff]
      %v449 = vld [vmem:[%s1 + $0x118] sm:$0xff]
      %v450 = vld [vmem:[%s1 + $0x120] sm:$0xff]
      %v451 = vld [vmem:[%s1 + $0x128] sm:$0xff]
      %v452 = vld [vmem:[%s1 + $0x130] sm:$0xff]
      %v453 = vld [vmem:[%s1 + $0x138] sm:$0xff]
      %v454 = vld [vmem:[%s1 + $0x140] sm:$0xff]
      %v455 = vld [vmem:[%s1 + $0x148] sm:$0xff]
      %v456 = vld [vmem:[%s1 + $0x150] sm:$0xff]
      %v457 = vld [vmem:[%s1 + $0x158] sm:$0xff]
      %v458 = vld [vmem:[%s1 + $0x160] sm:$0xff]
      %v459 = vld [vmem:[%s1 + $0x168] sm:$0xff]
      %v460 = vld [vmem:[%s1 + $0x170] sm:$0xff]
      %v461 = vld [vmem:[%s1 + $0x178] sm:$0xff]
      %v462 = vld [vmem:[%s1 + $0x180] sm:$0xff]
      %v463 = vld [vmem:[%s1 + $0x188] sm:$0xff]
      %v464 = vld [vmem:[%s1 + $0x190] sm:$0xff]
      %v465 = vld [vmem:[%s1 + $0x198] sm:$0xff]
      %v466 = vld [vmem:[%s1 + $0x1a0] sm:$0xff]
      %v467 = vld [vmem:[%s1 + $0x1a8] sm:$0xff]
      %v468 = vld [vmem:[%s1 + $0x1b0] sm:$0xff]
      %v469 = vld [vmem:[%s1 + $0x1b8] sm:$0xff]
      %v470 = vld [vmem:[%s1 + $0x1c0] sm:$0xff]
      %v471 = vld [vmem:[%s1 + $0x1c8] sm:$0xff]
      %v472 = vld [vmem:[%s1 + $0x1d0] sm:$0xff]
      %v473 = vld [vmem:[%s1 + $0x1d8] sm:$0xff]
      %v474 = vld [vmem:[%s1 + $0x1e0] sm:$0xff]
      %v475 = vld [vmem:[%s1 + $0x1e8] sm:$0xff]
      %v476 = vld [vmem:[%s1 + $0x1f0] sm:$0xff]
      %v477 = vld [vmem:[%s1 + $0x1f8] sm:$0xff]
      %v478 = vld [vmem:[%s1 + $0x200] sm:$0xff]
      %v479 = vld [vmem:[%s1 + $0x208] sm:$0xff]
      %v480 = vld [vmem:[%s1 + $0x210] sm:$0xff]
      %v481 = vld [vmem:[%s1 + $0x218] sm:$0xff]
      %v482 = vld [vmem:[%s1 + $0x220] sm:$0xff]
      %v483 = vld [vmem:[%s1 + $0x228] sm:$0xff]
      %v484 = vld [vmem:[%s1 + $0x230] sm:$0xff]
      %v485 = vld [vmem:[%s1 + $0x238] sm:$0xff]
      %v486 = vld [vmem:[%s1 + $0x240] sm:$0xff]
      %v487 = vld [vmem:[%s1 + $0x248] sm:$0xff]
      %v488 = vld [vmem:[%s1 + $0x250] sm:$0xff]
      %v489 = vld [vmem:[%s1 + $0x258] sm:$0xff]
      %v490 = vld [vmem:[%s1 + $0x260] sm:$0xff]
      %v491 = vld [vmem:[%s1 + $0x268] sm:$0xff]
      %v492 = vld [vmem:[%s1 + $0x270] sm:$0xff]
      %v493 = vld [vmem:[%s1 + $0x278] sm:$0xff]
      %v494 = vld [vmem:[%s1 + $0x280] sm:$0xff]
      %v495 = vld [vmem:[%s1 + $0x288] sm:$0xff]
      %v496 = vld [vmem:[%s1 + $0x290] sm:$0xff]
      %v497 = vld [vmem:[%s1 + $0x298] sm:$0xff]
      %v498 = vld [vmem:[%s1 + $0x2a0] sm:$0xff]
      %v499 = vld [vmem:[%s1 + $0x2a8] sm:$0xff]
      %v500 = vld [vmem:[%s1 + $0x2b0] sm:$0xff]
      %v501 = vld [vmem:[%s1 + $0x2b8] sm:$0xff]
      %v502 = vld [vmem:[%s1 + $0x2c0] sm:$0xff]
      %v503 = vld [vmem:[%s1 + $0x2c8] sm:$0xff]
      %v504 = vld [vmem:[%s1 + $0x2d0] sm:$0xff]
      %v505 = vld [vmem:[%s1 + $0x2d8] sm:$0xff]
      %v506 = vld [vmem:[%s1 + $0x2e0] sm:$0xff]
      %v507 = vld [vmem:[%s1 + $0x2e8] sm:$0xff]
      %v508 = vld [vmem:[%s1 + $0x2f0] sm:$0xff]
      %v509 = vld [vmem:[%s1 + $0x2f8] sm:$0xff]
      %v510 = vld [vmem:[%s1 + $0x300] sm:$0xff]
      %v511 = vld [vmem:[%s1 + $0x308] sm:$0xff]
      %v512 = vld [vmem:[%s1 + $0x310] sm:$0xff]
      %v513 = vld [vmem:[%s1 + $0x318] sm:$0xff]
      %v514 = vld [vmem:[%s1 + $0x320] sm:$0xff]
      %v515 = vld [vmem:[%s1 + $0x328] sm:$0xff]
      %v516 = vld [vmem:[%s1 + $0x330] sm:$0xff]
      %v517 = vld [vmem:[%s1 + $0x338] sm:$0xff]
      %v518 = vld [vmem:[%s1 + $0x340] sm:$0xff]
      %v519 = vld [vmem:[%s1 + $0x348] sm:$0xff]
      %v520 = vld [vmem:[%s1 + $0x350] sm:$0xff]
      %v521 = vld [vmem:[%s1 + $0x358] sm:$0xff]
      %v522 = vld [vmem:[%s1 + $0x360] sm:$0xff]
      %v523 = vld [vmem:[%s1 + $0x368] sm:$0xff]
      %v524 = vld [vmem:[%s1 + $0x370] sm:$0xff]
      %v525 = vld [vmem:[%s1 + $0x378] sm:$0xff]
      %v526 = vld [vmem:[%s1 + $0x380] sm:$0xff]
      %v527 = vld [vmem:[%s1 + $0x388] sm:$0xff]
      %v528 = vld [vmem:[%s1 + $0x390] sm:$0xff]
      %v529 = vld [vmem:[%s1 + $0x398] sm:$0xff]
      %v530 = vld [vmem:[%s1 + $0x3a0] sm:$0xff]
      %v531 = vld [vmem:[%s1 + $0x3a8] sm:$0xff]
      %v532 = vld [vmem:[%s1 + $0x3b0] sm:$0xff]
      %v533 = vld [vmem:[%s1 + $0x3b8] sm:$0xff]
      %v534 = vld [vmem:[%s1 + $0x3c0] sm:$0xff]
      %v535 = vld [vmem:[%s1 + $0x3c8] sm:$0xff]
      %v536 = vld [vmem:[%s1 + $0x3d0] sm:$0xff]
      %v537 = vld [vmem:[%s1 + $0x3d8] sm:$0xff]
      %v538 = vld [vmem:[%s1 + $0x3e0] sm:$0xff]
      %v539 = vld [vmem:[%s1 + $0x3e8] sm:$0xff]
      %v540 = vld [vmem:[%s1 + $0x3f0] sm:$0xff]
      %v541 = vld [vmem:[%s1 + $0x3f8] sm:$0xff]
      %v542 = vld [vmem:[%s1 + $0x400] sm:$0xff]
      %v543 = vld [vmem:[%s1 + $0x408] sm:$0xff]
      %v544 = vld [vmem:[%s1 + $0x410] sm:$0xff]
      %v545 = vld [vmem:[%s1 + $0x418] sm:$0xff]
      %v546 = vld [vmem:[%s1 + $0x420] sm:$0xff]
      %v547 = vld [vmem:[%s1 + $0x428] sm:$0xff]
      %v548 = vld [vmem:[%s1 + $0x430] sm:$0xff]
      %v549 = vld [vmem:[%s1 + $0x438] sm:$0xff]
      %v550 = vld [vmem:[%s1 + $0x440] sm:$0xff]
      %v551 = vld [vmem:[%s1 + $0x448] sm:$0xff]
      %v552 = vld [vmem:[%s1 + $0x450] sm:$0xff]
      %v553 = vld [vmem:[%s1 + $0x458] sm:$0xff]
      %v554 = vld [vmem:[%s1 + $0x460] sm:$0xff]
      %v555 = vld [vmem:[%s1 + $0x468] sm:$0xff]
      %v556 = vld [vmem:[%s1 + $0x470] sm:$0xff]
      %v557 = vld [vmem:[%s1 + $0x478] sm:$0xff]
      %v558 = vld [vmem:[%s1 + $0x480] sm:$0xff]
      %v559 = vld [vmem:[%s1 + $0x488] sm:$0xff]
      %v560 = vld [vmem:[%s1 + $0x490] sm:$0xff]
      %v561 = vld [vmem:[%s1 + $0x498] sm:$0xff]
      %v562 = vld [vmem:[%s1 + $0x4a0] sm:$0xff]
      %v563 = vld [vmem:[%s1 + $0x4a8] sm:$0xff]
      %v564 = vld [vmem:[%s1 + $0x4b0] sm:$0xff]
      %v565 = vld [vmem:[%s1 + $0x4b8] sm:$0xff]
      %v566 = vld [vmem:[%s1 + $0x4c0] sm:$0xff]
      %v567 = vld [vmem:[%s1 + $0x4c8] sm:$0xff]
      %v568 = vld [vmem:[%s1 + $0x4d0] sm:$0xff]
      %v569 = vld [vmem:[%s1 + $0x4d8] sm:$0xff]
      %v570 = vld [vmem:[%s1 + $0x4e0] sm:$0xff]
      %v571 = vld [vmem:[%s1 + $0x4e8] sm:$0xff]
      %v572 = vld [vmem:[%s1 + $0x4f0] sm:$0xff]
      %v573 = vld [vmem:[%s1 + $0x4f8] sm:$0xff]
      %v574 = vld [vmem:[%s1 + $0x500] sm:$0xff]
      %v575 = vld [vmem:[%s1 + $0x508] sm:$0xff]
      %v576 = vld [vmem:[%s1 + $0x510] sm:$0xff]
      %v577 = vld [vmem:[%s1 + $0x518] sm:$0xff]
      %v578 = vld [vmem:[%s1 + $0x520] sm:$0xff]
      %v579 = vld [vmem:[%s1 + $0x528] sm:$0xff]
      %v580 = vld [vmem:[%s1 + $0x530] sm:$0xff]
      %v581 = vld [vmem:[%s1 + $0x538] sm:$0xff]
      %v582 = vld [vmem:[%s1 + $0x540] sm:$0xff]
      %v583 = vld [vmem:[%s1 + $0x548] sm:$0xff]
      %v584 = vld [vmem:[%s1 + $0x550] sm:$0xff]
      %v585 = vld [vmem:[%s1 + $0x558] sm:$0xff]
      %v586 = vld [vmem:[%s1 + $0x560] sm:$0xff]
      %v587 = vld [vmem:[%s1 + $0x568] sm:$0xff]
      %v588 = vld [vmem:[%s1 + $0x570] sm:$0xff]
      %v589 = vld [vmem:[%s1 + $0x578] sm:$0xff]
      %v590 = vld [vmem:[%s1 + $0x580] sm:$0xff]
      %v591 = vld [vmem:[%s1 + $0x588] sm:$0xff]
      %v592 = vld [vmem:[%s1 + $0x590] sm:$0xff]
      %v593 = vld [vmem:[%s1 + $0x598] sm:$0xff]
      %v594 = vld [vmem:[%s1 + $0x5a0] sm:$0xff]
      %v595 = vld [vmem:[%s1 + $0x5a8] sm:$0xff]
      %v596 = vld [vmem:[%s1 + $0x5b0] sm:$0xff]
      %v597 = vld [vmem:[%s1 + $0x5b8] sm:$0xff]
      %v598 = vld [vmem:[%s1 + $0x5c0] sm:$0xff]
      %v599 = vld [vmem:[%s1 + $0x5c8] sm:$0xff]
      %v600 = vld [vmem:[%s1 + $0x5d0] sm:$0xff]
      %v601 = vld [vmem:[%s1 + $0x5d8] sm:$0xff]
      %v602 = vld [vmem:[%s1 + $0x5e0] sm:$0xff]
      %v603 = vld [vmem:[%s1 + $0x5e8] sm:$0xff]
      %v604 = vld [vmem:[%s1 + $0x5f0] sm:$0xff]
      %v605 = vld [vmem:[%s1 + $0x5f8] sm:$0xff]
      %v606 = vld [vmem:[%s1 + $0x600] sm:$0xff]
      %v607 = vld [vmem:[%s1 + $0x608] sm:$0xff]
      %v608 = vld [vmem:[%s1 + $0x610] sm:$0xff]
      %v609 = vld [vmem:[%s1 + $0x618] sm:$0xff]
      %v610 = vld [vmem:[%s1 + $0x620] sm:$0xff]
      %v611 = vld [vmem:[%s1 + $0x628] sm:$0xff]
      %v612 = vld [vmem:[%s1 + $0x630] sm:$0xff]
      %v613 = vld [vmem:[%s1 + $0x638] sm:$0xff]
      %v614 = vld [vmem:[%s1 + $0x640] sm:$0xff]
      %v615 = vld [vmem:[%s1 + $0x648] sm:$0xff]
      %v616 = vld [vmem:[%s1 + $0x650] sm:$0xff]
      %v617 = vld [vmem:[%s1 + $0x658] sm:$0xff]
      %v618 = vld [vmem:[%s1 + $0x660] sm:$0xff]
      %v619 = vld [vmem:[%s1 + $0x668] sm:$0xff]
      %v620 = vld [vmem:[%s1 + $0x670] sm:$0xff]
      %v621 = vld [vmem:[%s1 + $0x678] sm:$0xff]
      %v622 = vld [vmem:[%s1 + $0x680] sm:$0xff]
      %v623 = vld [vmem:[%s1 + $0x688] sm:$0xff]
      %v624 = vld [vmem:[%s1 + $0x690] sm:$0xff]
      %v625 = vld [vmem:[%s1 + $0x698] sm:$0xff]
      %v626 = vld [vmem:[%s1 + $0x6a0] sm:$0xff]
      %v627 = vld [vmem:[%s1 + $0x6a8] sm:$0xff]
      %v628 = vld [vmem:[%s1 + $0x6b0] sm:$0xff]
      %v629 = vld [vmem:[%s1 + $0x6b8] sm:$0xff]
      %v630 = vld [vmem:[%s1 + $0x6c0] sm:$0xff]
      %v631 = vld [vmem:[%s1 + $0x6c8] sm:$0xff]
      %v632 = vld [vmem:[%s1 + $0x6d0] sm:$0xff]
      %v633 = vld [vmem:[%s1 + $0x6d8] sm:$0xff]
      %v634 = vld [vmem:[%s1 + $0x6e0] sm:$0xff]
      %v635 = vld [vmem:[%s1 + $0x6e8] sm:$0xff]
      %v636 = vld [vmem:[%s1 + $0x6f0] sm:$0xff]
      %v637 = vld [vmem:[%s1 + $0x6f8] sm:$0xff]
      %v638 = vld [vmem:[%s1 + $0x700] sm:$0xff]
      %v639 = vld [vmem:[%s1 + $0x708] sm:$0xff]
      %v640 = vld [vmem:[%s1 + $0x710] sm:$0xff]
      %v641 = vld [vmem:[%s1 + $0x718] sm:$0xff]
      %v642 = vld [vmem:[%s1 + $0x720] sm:$0xff]
      %v643 = vld [vmem:[%s1 + $0x728] sm:$0xff]
      %v644 = vld [vmem:[%s1 + $0x730] sm:$0xff]
      %v645 = vld [vmem:[%s1 + $0x738] sm:$0xff]
      %v646 = vld [vmem:[%s1 + $0x740] sm:$0xff]
      %v647 = vld [vmem:[%s1 + $0x748] sm:$0xff]
      %v648 = vld [vmem:[%s1 + $0x750] sm:$0xff]
      %v649 = vld [vmem:[%s1 + $0x758] sm:$0xff]
      %v650 = vld [vmem:[%s1 + $0x760] sm:$0xff]
      %v651 = vld [vmem:[%s1 + $0x768] sm:$0xff]
      %v652 = vld [vmem:[%s1 + $0x770] sm:$0xff]
      %v653 = vld [vmem:[%s1 + $0x778] sm:$0xff]
      %v654 = vld [vmem:[%s1 + $0x780] sm:$0xff]
      %v655 = vld [vmem:[%s1 + $0x788] sm:$0xff]
      %v656 = vld [vmem:[%s1 + $0x790] sm:$0xff]
      %v657 = vld [vmem:[%s1 + $0x798] sm:$0xff]
      %v658 = vld [vmem:[%s1 + $0x7a0] sm:$0xff]
      %v659 = vld [vmem:[%s1 + $0x7a8] sm:$0xff]
      %v660 = vld [vmem:[%s1 + $0x7b0] sm:$0xff]
      %v661 = vld [vmem:[%s1 + $0x7b8] sm:$0xff]
      %v662 = vld [vmem:[%s1 + $0x7c0] sm:$0xff]
      %v663 = vld [vmem:[%s1 + $0x7c8] sm:$0xff]
      %v664 = vld [vmem:[%s1 + $0x7d0] sm:$0xff]
      %v665 = vld [vmem:[%s1 + $0x7d8] sm:$0xff]
      %v666 = vld [vmem:[%s1 + $0x7e0] sm:$0xff]
      %v667 = vld [vmem:[%s1 + $0x7e8] sm:$0xff]
      %v668 = vld [vmem:[%s1 + $0x7f0] sm:$0xff]
      %v669 = vld [vmem:[%s1 + $0x7f8] sm:$0xff]
      %v670 = vld [vmem:[%s1 + $0x800] sm:$0xff]
      %v671 = vld [vmem:[%s1 + $0x808] sm:$0xff]
      %v672 = vld [vmem:[%s1 + $0x810] sm:$0xff]
      %v673 = vld [vmem:[%s1 + $0x818] sm:$0xff]
      %v674 = vld [vmem:[%s1 + $0x820] sm:$0xff]
      %v675 = vld [vmem:[%s1 + $0x828] sm:$0xff]
      %v676 = vld [vmem:[%s1 + $0x830] sm:$0xff]
      %v677 = vld [vmem:[%s1 + $0x838] sm:$0xff]
      %v678 = vld [vmem:[%s1 + $0x840] sm:$0xff]
      %v679 = vld [vmem:[%s1 + $0x848] sm:$0xff]
      %v680 = vld [vmem:[%s1 + $0x850] sm:$0xff]
      %v681 = vld [vmem:[%s1 + $0x858] sm:$0xff]
      %v682 = vld [vmem:[%s1 + $0x860] sm:$0xff]
      %v683 = vld [vmem:[%s1 + $0x868] sm:$0xff]
      %v684 = vld [vmem:[%s1 + $0x870] sm:$0xff]
      %v685 = vld [vmem:[%s1 + $0x878] sm:$0xff]
      %v686 = vld [vmem:[%s1 + $0x880] sm:$0xff]
      %v687 = vld [vmem:[%s1 + $0x888] sm:$0xff]
      %v688 = vld [vmem:[%s1 + $0x890] sm:$0xff]
      %v689 = vld [vmem:[%s1 + $0x898] sm:$0xff]
      %v690 = vld [vmem:[%s1 + $0x8a0] sm:$0xff]
      %v691 = vld [vmem:[%s1 + $0x8a8] sm:$0xff]
      %v692 = vld [vmem:[%s1 + $0x8b0] sm:$0xff]
      %v693 = vld [vmem:[%s1 + $0x8b8] sm:$0xff]
      %v694 = vld [vmem:[%s1 + $0x8c0] sm:$0xff]
      %v695 = vld [vmem:[%s1 + $0x8c8] sm:$0xff]
      %v696 = vld [vmem:[%s1 + $0x8d0] sm:$0xff]
      %v697 = vld [vmem:[%s1 + $0x8d8] sm:$0xff]
      %v698 = vld [vmem:[%s1 + $0x8e0] sm:$0xff]
      %v699 = vld [vmem:[%s1 + $0x8e8] sm:$0xff]
      %v700 = vld [vmem:[%s1 + $0x8f0] sm:$0xff]
      %v701 = vld [vmem:[%s1 + $0x8f8] sm:$0xff]
      %v702 = vld [vmem:[%s1 + $0x900] sm:$0xff]
      %v703 = vld [vmem:[%s1 + $0x908] sm:$0xff]
      %v704 = vld [vmem:[%s1 + $0x910] sm:$0xff]
      %v705 = vld [vmem:[%s1 + $0x918] sm:$0xff]
      %v706 = vld [vmem:[%s1 + $0x920] sm:$0xff]
      %v707 = vld [vmem:[%s1 + $0x928] sm:$0xff]
      %v708 = vld [vmem:[%s1 + $0x930] sm:$0xff]
      %v709 = vld [vmem:[%s1 + $0x938] sm:$0xff]
      %v710 = vld [vmem:[%s1 + $0x940] sm:$0xff]
      %v711 = vld [vmem:[%s1 + $0x948] sm:$0xff]
      %v712 = vld [vmem:[%s1 + $0x950] sm:$0xff]
      %v713 = vld [vmem:[%s1 + $0x958] sm:$0xff]
      %v714 = vld [vmem:[%s1 + $0x960] sm:$0xff]
      %v715 = vld [vmem:[%s1 + $0x968] sm:$0xff]
      %v716 = vld [vmem:[%s1 + $0x970] sm:$0xff]
      %v717 = vld [vmem:[%s1 + $0x978] sm:$0xff]
      %v718 = vld [vmem:[%s1 + $0x980] sm:$0xff]
      %v719 = vld [vmem:[%s1 + $0x988] sm:$0xff]
      %v720 = vld [vmem:[%s1 + $0x990] sm:$0xff]
      %v721 = vld [vmem:[%s1 + $0x998] sm:$0xff]
      %v722 = vld [vmem:[%s1 + $0x9a0] sm:$0xff]
      %v723 = vld [vmem:[%s1 + $0x9a8] sm:$0xff]
      %v724 = vld [vmem:[%s1 + $0x9b0] sm:$0xff]
      %v725 = vld [vmem:[%s1 + $0x9b8] sm:$0xff]
      %v726 = vld [vmem:[%s1 + $0x9c0] sm:$0xff]
      %v727 = vld [vmem:[%s1 + $0x9c8] sm:$0xff]
      %v728 = vld [vmem:[%s1 + $0x9d0] sm:$0xff]
      %v729 = vld [vmem:[%s1 + $0x9d8] sm:$0xff]
      %v730 = vld [vmem:[%s1 + $0x9e0] sm:$0xff]
      %v731 = vld [vmem:[%s1 + $0x9e8] sm:$0xff]
      %v732 = vld [vmem:[%s1 + $0x9f0] sm:$0xff]
      %v733 = vld [vmem:[%s1 + $0x9f8] sm:$0xff]
      %v734 = vld [vmem:[%s1 + $0xa00] sm:$0xff]
      %v735 = vld [vmem:[%s1 + $0xa08] sm:$0xff]
      %v736 = vld [vmem:[%s1 + $0xa10] sm:$0xff]
      %v737 = vld [vmem:[%s1 + $0xa18] sm:$0xff]
      %v738 = vld [vmem:[%s1 + $0xa20] sm:$0xff]
      %v739 = vld [vmem:[%s1 + $0xa28] sm:$0xff]
      %v740 = vld [vmem:[%s1 + $0xa30] sm:$0xff]
      %v741 = vld [vmem:[%s1 + $0xa38] sm:$0xff]
      %v742 = vld [vmem:[%s1 + $0xa40] sm:$0xff]
      %v743 = vld [vmem:[%s1 + $0xa48] sm:$0xff]
      %v744 = vld [vmem:[%s1 + $0xa50] sm:$0xff]
      %v745 = vld [vmem:[%s1 + $0xa58] sm:$0xff]
      %v746 = vld [vmem:[%s1 + $0xa60] sm:$0xff]
      %v747 = vld [vmem:[%s1 + $0xa68] sm:$0xff]
      %v748 = vld [vmem:[%s1 + $0xa70] sm:$0xff]
      %v749 = vld [vmem:[%s1 + $0xa78] sm:$0xff]
      %v750 = vld [vmem:[%s1 + $0xa80] sm:$0xff]
      %v751 = vld [vmem:[%s1 + $0xa88] sm:$0xff]
      %v752 = vld [vmem:[%s1 + $0xa90] sm:$0xff]
      %v753 = vld [vmem:[%s1 + $0xa98] sm:$0xff]
      %v754 = vld [vmem:[%s1 + $0xaa0] sm:$0xff]
      %v755 = vld [vmem:[%s1 + $0xaa8] sm:$0xff]
      %v756 = vld [vmem:[%s1 + $0xab0] sm:$0xff]
      %v757 = vld [vmem:[%s1 + $0xab8] sm:$0xff]
      %v758 = vld [vmem:[%s1 + $0xac0] sm:$0xff]
      %v759 = vld [vmem:[%s1 + $0xac8] sm:$0xff]
      %v760 = vld [vmem:[%s1 + $0xad0] sm:$0xff]
      %v761 = vld [vmem:[%s1 + $0xad8] sm:$0xff]
      %v762 = vld [vmem:[%s1 + $0xae0] sm:$0xff]
      %v763 = vld [vmem:[%s1 + $0xae8] sm:$0xff]
      %v764 = vld [vmem:[%s1 + $0xaf0] sm:$0xff]
      %v765 = vld [vmem:[%s1 + $0xaf8] sm:$0xff]
      %v766 = vld [vmem:[%s1 + $0xb00] sm:$0xff]
      %v767 = vld [vmem:[%s1 + $0xb08] sm:$0xff]
      %v768 = vld [vmem:[%s1 + $0xb10] sm:$0xff]
      %v769 = vld [vmem:[%s1 + $0xb18] sm:$0xff]
      %v770 = vld [vmem:[%s1 + $0xb20] sm:$0xff]
      %v771 = vld [vmem:[%s1 + $0xb28] sm:$0xff]
      %v772 = vld [vmem:[%s1 + $0xb30] sm:$0xff]
      %v773 = vld [vmem:[%s1 + $0xb38] sm:$0xff]
      %v774 = vld [vmem:[%s1 + $0xb40] sm:$0xff]
      %v775 = vld [vmem:[%s1 + $0xb48] sm:$0xff]
      %v776 = vld [vmem:[%s1 + $0xb50] sm:$0xff]
      %v777 = vld [vmem:[%s1 + $0xb58] sm:$0xff]
      %v778 = vld [vmem:[%s1 + $0xb60] sm:$0xff]
      %v779 = vld [vmem:[%s1 + $0xb68] sm:$0xff]
      %v780 = vld [vmem:[%s1 + $0xb70] sm:$0xff]
      %v781 = vld [vmem:[%s1 + $0xb78] sm:$0xff]
      %v782 = vld [vmem:[%s1 + $0xb80] sm:$0xff]
      %v783 = vld [vmem:[%s1 + $0xb88] sm:$0xff]
      %v784 = vld [vmem:[%s1 + $0xb90] sm:$0xff]
      %v785 = vld [vmem:[%s1 + $0xb98] sm:$0xff]
      %v786 = vld [vmem:[%s1 + $0xba0] sm:$0xff]
      %v787 = vld [vmem:[%s1 + $0xba8] sm:$0xff]
      %v788 = vld [vmem:[%s1 + $0xbb0] sm:$0xff]
      %v789 = vld [vmem:[%s1 + $0xbb8] sm:$0xff]
      %v790 = vld [vmem:[%s1 + $0xbc0] sm:$0xff]
      %v791 = vld [vmem:[%s1 + $0xbc8] sm:$0xff]
      %v792 = vld [vmem:[%s1 + $0xbd0] sm:$0xff]
      %v793 = vld [vmem:[%s1 + $0xbd8] sm:$0xff]
      %v794 = vld [vmem:[%s1 + $0xbe0] sm:$0xff]
      %v795 = vld [vmem:[%s1 + $0xbe8] sm:$0xff]
      %v796 = vld [vmem:[%s1 + $0xbf0] sm:$0xff]
      %v797 = vld [vmem:[%s1 + $0xbf8] sm:$0xff]
      %v798 = vld [vmem:[%s1 + $0xc00] sm:$0xff]
      %v799 = vld [vmem:[%s1 + $0xc08] sm:$0xff]
      %v800 = vld [vmem:[%s1 + $0xc10] sm:$0xff]
      %v801 = vld [vmem:[%s1 + $0xc18] sm:$0xff]
      %v802 = vld [vmem:[%s1 + $0xc20] sm:$0xff]
      %v803 = vld [vmem:[%s1 + $0xc28] sm:$0xff]
      %v804 = vld [vmem:[%s1 + $0xc30] sm:$0xff]
      %v805 = vld [vmem:[%s1 + $0xc38] sm:$0xff]
      %v806 = vld [vmem:[%s1 + $0xc40] sm:$0xff]
      %v807 = vld [vmem:[%s1 + $0xc48] sm:$0xff]
      %v808 = vld [vmem:[%s1 + $0xc50] sm:$0xff]
      %v809 = vld [vmem:[%s1 + $0xc58] sm:$0xff]
      %v810 = vld [vmem:[%s1 + $0xc60] sm:$0xff]
      %v811 = vld [vmem:[%s1 + $0xc68] sm:$0xff]
      %v812 = vld [vmem:[%s1 + $0xc70] sm:$0xff]
      %v813 = vld [vmem:[%s1 + $0xc78] sm:$0xff]
      %v814 = vld [vmem:[%s1 + $0xc80] sm:$0xff]
      %v815 = vld [vmem:[%s1 + $0xc88] sm:$0xff]
      %v816 = vld [vmem:[%s1 + $0xc90] sm:$0xff]
      %v817 = vld [vmem:[%s1 + $0xc98] sm:$0xff]
      %v818 = vld [vmem:[%s1 + $0xca0] sm:$0xff]
      %v819 = vld [vmem:[%s1 + $0xca8] sm:$0xff]
      %v820 = vld [vmem:[%s1 + $0xcb0] sm:$0xff]
      %v821 = vld [vmem:[%s1 + $0xcb8] sm:$0xff]
      %v822 = vld [vmem:[%s1 + $0xcc0] sm:$0xff]
      %v823 = vld [vmem:[%s1 + $0xcc8] sm:$0xff]
      %v824 = vld [vmem:[%s1 + $0xcd0] sm:$0xff]
      %v825 = vld [vmem:[%s1 + $0xcd8] sm:$0xff]
      %v826 = vld [vmem:[%s1 + $0xce0] sm:$0xff]
      %v827 = vld [vmem:[%s1 + $0xce8] sm:$0xff]
      %v828 = vld [vmem:[%s1 + $0xcf0] sm:$0xff]
      %v829 = vld [vmem:[%s1 + $0xcf8] sm:$0xff]
      %v830 = vld [vmem:[%s1 + $0xd00] sm:$0xff]
      %v831 = vld [vmem:[%s1 + $0xd08] sm:$0xff]
      %v832 = vld [vmem:[%s1 + $0xd10] sm:$0xff]
      %v833 = vld [vmem:[%s1 + $0xd18] sm:$0xff]
      %v834 = vld [vmem:[%s1 + $0xd20] sm:$0xff]
      %v835 = vld [vmem:[%s1 + $0xd28] sm:$0xff]
      %v836 = vld [vmem:[%s1 + $0xd30] sm:$0xff]
      %v837 = vld [vmem:[%s1 + $0xd38] sm:$0xff]
      %v838 = vld [vmem:[%s1 + $0xd40] sm:$0xff]
      %v839 = vld [vmem:[%s1 + $0xd48] sm:$0xff]
      %v840 = vld [vmem:[%s1 + $0xd50] sm:$0xff]
      %v841 = vld [vmem:[%s1 + $0xd58] sm:$0xff]
      %v842 = vld [vmem:[%s1 + $0xd60] sm:$0xff]
      %v843 = vld [vmem:[%s1 + $0xd68] sm:$0xff]
      %v844 = vld [vmem:[%s1 + $0xd70] sm:$0xff]
      %v845 = vld [vmem:[%s1 + $0xd78] sm:$0xff]
      %v846 = vld [vmem:[%s1 + $0xd80] sm:$0xff]
      %v847 = vld [vmem:[%s1 + $0xd88] sm:$0xff]
      %v848 = vld [vmem:[%s1 + $0xd90] sm:$0xff]
      %v849 = vld [vmem:[%s1 + $0xd98] sm:$0xff]
      %v850 = vld [vmem:[%s1 + $0xda0] sm:$0xff]
      %v851 = vld [vmem:[%s1 + $0xda8] sm:$0xff]
      %v852 = vld [vmem:[%s1 + $0xdb0] sm:$0xff]
      %v853 = vld [vmem:[%s1 + $0xdb8] sm:$0xff]
      %v854 = vld [vmem:[%s1 + $0xdc0] sm:$0xff]
      %v855 = vld [vmem:[%s1 + $0xdc8] sm:$0xff]
      %v856 = vld [vmem:[%s1 + $0xdd0] sm:$0xff]
      %v857 = vld [vmem:[%s1 + $0xdd8] sm:$0xff]
      %v858 = vld [vmem:[%s1 + $0xde0] sm:$0xff]
      %v859 = vld [vmem:[%s1 + $0xde8] sm:$0xff]
      %v860 = vld [vmem:[%s1 + $0xdf0] sm:$0xff]
      %v861 = vld [vmem:[%s1 + $0xdf8] sm:$0xff]
      %v862 = vld [vmem:[%s1 + $0xe00] sm:$0xff]
      %v863 = vld [vmem:[%s1 + $0xe08] sm:$0xff]
      %v864 = vld [vmem:[%s1 + $0xe10] sm:$0xff]
      %v865 = vld [vmem:[%s1 + $0xe18] sm:$0xff]
      %v866 = vld [vmem:[%s1 + $0xe20] sm:$0xff]
      %v867 = vld [vmem:[%s1 + $0xe28] sm:$0xff]
      %v868 = vld [vmem:[%s1 + $0xe30] sm:$0xff]
      %v869 = vld [vmem:[%s1 + $0xe38] sm:$0xff]
      %v870 = vld [vmem:[%s1 + $0xe40] sm:$0xff]
      %v871 = vld [vmem:[%s1 + $0xe48] sm:$0xff]
      %v872 = vld [vmem:[%s1 + $0xe50] sm:$0xff]
      %v873 = vld [vmem:[%s1 + $0xe58] sm:$0xff]
      %v874 = vld [vmem:[%s1 + $0xe60] sm:$0xff]
      %v875 = vld [vmem:[%s1 + $0xe68] sm:$0xff]
      %v876 = vld [vmem:[%s1 + $0xe70] sm:$0xff]
      %v877 = vld [vmem:[%s1 + $0xe78] sm:$0xff]
      %v878 = vld [vmem:[%s1 + $0xe80] sm:$0xff]
      %v879 = vld [vmem:[%s1 + $0xe88] sm:$0xff]
      %v880 = vld [vmem:[%s1 + $0xe90] sm:$0xff]
      %v881 = vld [vmem:[%s1 + $0xe98] sm:$0xff]
      %v882 = vld [vmem:[%s1 + $0xea0] sm:$0xff]
      %v883 = vld [vmem:[%s1 + $0xea8] sm:$0xff]
      %v884 = vld [vmem:[%s1 + $0xeb0] sm:$0xff]
      %v885 = vld [vmem:[%s1 + $0xeb8] sm:$0xff]
      %v886 = vld [vmem:[%s1 + $0xec0] sm:$0xff]
      %v887 = vld [vmem:[%s1 + $0xec8] sm:$0xff]
      %v888 = vld [vmem:[%s1 + $0xed0] sm:$0xff]
      %v889 = vld [vmem:[%s1 + $0xed8] sm:$0xff]
      %v890 = vld [vmem:[%s1 + $0xee0] sm:$0xff]
      %v891 = vld [vmem:[%s1 + $0xee8] sm:$0xff]
      %v892 = vld [vmem:[%s1 + $0xef0] sm:$0xff]
      %v893 = vld [vmem:[%s1 + $0xef8] sm:$0xff]
      %v894 = vld [vmem:[%s1 + $0xf00] sm:$0xff]
      %v895 = vld [vmem:[%s1 + $0xf08] sm:$0xff]
      %v896 = vld [vmem:[%s1 + $0xf10] sm:$0xff]
      %v897 = vld [vmem:[%s1 + $0xf18] sm:$0xff]
      %v898 = vld [vmem:[%s1 + $0xf20] sm:$0xff]
      %v899 = vld [vmem:[%s1 + $0xf28] sm:$0xff]
      %v900 = vld [vmem:[%s1 + $0xf30] sm:$0xff]
      %v901 = vld [vmem:[%s1 + $0xf38] sm:$0xff]
      %v902 = vld [vmem:[%s1 + $0xf40] sm:$0xff]
      %v903 = vld [vmem:[%s1 + $0xf48] sm:$0xff]
      %v904 = vld [vmem:[%s1 + $0xf50] sm:$0xff]
      %v905 = vld [vmem:[%s1 + $0xf58] sm:$0xff]
      %v906 = vld [vmem:[%s1 + $0xf60] sm:$0xff]
      %v907 = vld [vmem:[%s1 + $0xf68] sm:$0xff]
      %v908 = vld [vmem:[%s1 + $0xf70] sm:$0xff]
      %v909 = vld [vmem:[%s1 + $0xf78] sm:$0xff]
      %v910 = vld [vmem:[%s1 + $0xf80] sm:$0xff]
      %v911 = vld [vmem:[%s1 + $0xf88] sm:$0xff]
      %v912 = vld [vmem:[%s1 + $0xf90] sm:$0xff]
      %v913 = vld [vmem:[%s1 + $0xf98] sm:$0xff]
      %v914 = vld [vmem:[%s1 + $0xfa0] sm:$0xff]
      %v915 = vld [vmem:[%s1 + $0xfa8] sm:$0xff]
      %v916 = vld [vmem:[%s1 + $0xfb0] sm:$0xff]
      %v917 = vld [vmem:[%s1 + $0xfb8] sm:$0xff]
      %v918 = vld [vmem:[%s1 + $0xfc0] sm:$0xff]
      %v919 = vld [vmem:[%s1 + $0xfc8] sm:$0xff]
      %v920 = vld [vmem:[%s1 + $0xfd0] sm:$0xff]
      %v921 = vld [vmem:[%s1 + $0xfd8] sm:$0xff]
      %v922 = vld [vmem:[%s1 + $0xfe0] sm:$0xff]
      %v923 = vld [vmem:[%s1 + $0xfe8] sm:$0xff]
      %v924 = vld [vmem:[%s1 + $0xff0] sm:$0xff]
      %v925 = vld [vmem:[%s1 + $0xff8] sm:$0xff]
      %v926 = vld [vmem:[%s2] sm:$0xf]
      %v928 = vlaneseq
      %v929 = vshrl.u32 %v928, 7
      %v930 = vsub.s32 0, %v929
      %v931 = vrot.slane %v926, %v930
      %v932 = vlaneseq
      %v933 = vshrl.u32 %v932, 7
      %v934 = vsub.s32 1, %v933
      %v935 = vrot.slane %v926, %v934
      %v936 = vlaneseq
      %v937 = vshrl.u32 %v936, 7
      %v938 = vsub.s32 2, %v937
      %v939 = vrot.slane %v926, %v938
      %v940 = vlaneseq
      %v941 = vshrl.u32 %v940, 7
      %v942 = vsub.s32 3, %v941
      %v943 = vrot.slane %v926, %v942
      %v1076 = vunpack.c.l.b16 %v286
      %v1077 = vunpack.c.h.b16 %v286
      %v1078 = vunpack.c.l.b16 %v287
      %v1079 = vunpack.c.h.b16 %v287
      %v1080 = vunpack.c.l.b16 %v288
      %v1081 = vunpack.c.h.b16 %v288
      %v1082 = vunpack.c.l.b16 %v289
      %v1083 = vunpack.c.h.b16 %v289
      %v1084 = vunpack.c.l.b16 %v290
      %v1085 = vunpack.c.h.b16 %v290
      %v1086 = vunpack.c.l.b16 %v291
      %v1087 = vunpack.c.h.b16 %v291
      %v1088 = vunpack.c.l.b16 %v292
      %v1089 = vunpack.c.h.b16 %v292
      %v1090 = vunpack.c.l.b16 %v293
      %v1091 = vunpack.c.h.b16 %v293
      %v1092 = vunpack.c.l.b16 %v294
      %v1093 = vunpack.c.h.b16 %v294
      %v1094 = vunpack.c.l.b16 %v295
      %v1095 = vunpack.c.h.b16 %v295
      %v1096 = vunpack.c.l.b16 %v296
      %v1097 = vunpack.c.h.b16 %v296
      %v1098 = vunpack.c.l.b16 %v297
      %v1099 = vunpack.c.h.b16 %v297
      %v1100 = vunpack.c.l.b16 %v298
      %v1101 = vunpack.c.h.b16 %v298
      %v1102 = vunpack.c.l.b16 %v299
      %v1103 = vunpack.c.h.b16 %v299
      %v1104 = vunpack.c.l.b16 %v300
      %v1105 = vunpack.c.h.b16 %v300
      %v1106 = vunpack.c.l.b16 %v301
      %v1107 = vunpack.c.h.b16 %v301
      %v1108 = vunpack.c.l.b16 %v302
      %v1109 = vunpack.c.h.b16 %v302
      %v1110 = vunpack.c.l.b16 %v303
      %v1111 = vunpack.c.h.b16 %v303
      %v1112 = vunpack.c.l.b16 %v304
      %v1113 = vunpack.c.h.b16 %v304
      %v1114 = vunpack.c.l.b16 %v305
      %v1115 = vunpack.c.h.b16 %v305
      %v1116 = vunpack.c.l.b16 %v306
      %v1117 = vunpack.c.h.b16 %v306
      %v1118 = vunpack.c.l.b16 %v307
      %v1119 = vunpack.c.h.b16 %v307
      %v1120 = vunpack.c.l.b16 %v308
      %v1121 = vunpack.c.h.b16 %v308
      %v1122 = vunpack.c.l.b16 %v309
      %v1123 = vunpack.c.h.b16 %v309
      %v1124 = vunpack.c.l.b16 %v310
      %v1125 = vunpack.c.h.b16 %v310
      %v1126 = vunpack.c.l.b16 %v311
      %v1127 = vunpack.c.h.b16 %v311
      %v1128 = vunpack.c.l.b16 %v312
      %v1129 = vunpack.c.h.b16 %v312
      %v1130 = vunpack.c.l.b16 %v313
      %v1131 = vunpack.c.h.b16 %v313
      %v1132 = vunpack.c.l.b16 %v314
      %v1133 = vunpack.c.h.b16 %v314
      %v1134 = vunpack.c.l.b16 %v315
      %v1135 = vunpack.c.h.b16 %v315
      %v1136 = vunpack.c.l.b16 %v316
      %v1137 = vunpack.c.h.b16 %v316
      %v1138 = vunpack.c.l.b16 %v317
      %v1139 = vunpack.c.h.b16 %v317
      %v1140 = vunpack.c.l.b16 %v318
      %v1141 = vunpack.c.h.b16 %v318
      %v1142 = vunpack.c.l.b16 %v319
      %v1143 = vunpack.c.h.b16 %v319
      %v1144 = vunpack.c.l.b16 %v320
      %v1145 = vunpack.c.h.b16 %v320
      %v1146 = vunpack.c.l.b16 %v321
      %v1147 = vunpack.c.h.b16 %v321
      %v1148 = vunpack.c.l.b16 %v322
      %v1149 = vunpack.c.h.b16 %v322
      %v1150 = vunpack.c.l.b16 %v323
      %v1151 = vunpack.c.h.b16 %v323
      %v1152 = vunpack.c.l.b16 %v324
      %v1153 = vunpack.c.h.b16 %v324
      %v1154 = vunpack.c.l.b16 %v325
      %v1155 = vunpack.c.h.b16 %v325
      %v1156 = vunpack.c.l.b16 %v326
      %v1157 = vunpack.c.h.b16 %v326
      %v1158 = vunpack.c.l.b16 %v327
      %v1159 = vunpack.c.h.b16 %v327
      %v1160 = vunpack.c.l.b16 %v328
      %v1161 = vunpack.c.h.b16 %v328
      %v1162 = vunpack.c.l.b16 %v329
      %v1163 = vunpack.c.h.b16 %v329
      %v1164 = vunpack.c.l.b16 %v330
      %v1165 = vunpack.c.h.b16 %v330
      %v1166 = vunpack.c.l.b16 %v331
      %v1167 = vunpack.c.h.b16 %v331
      %v1168 = vunpack.c.l.b16 %v332
      %v1169 = vunpack.c.h.b16 %v332
      %v1170 = vunpack.c.l.b16 %v333
      %v1171 = vunpack.c.h.b16 %v333
      %v1172 = vunpack.c.l.b16 %v334
      %v1173 = vunpack.c.h.b16 %v334
      %v1174 = vunpack.c.l.b16 %v335
      %v1175 = vunpack.c.h.b16 %v335
      %v1176 = vunpack.c.l.b16 %v336
      %v1177 = vunpack.c.h.b16 %v336
      %v1178 = vunpack.c.l.b16 %v337
      %v1179 = vunpack.c.h.b16 %v337
      %v1180 = vunpack.c.l.b16 %v338
      %v1181 = vunpack.c.h.b16 %v338
      %v1182 = vunpack.c.l.b16 %v339
      %v1183 = vunpack.c.h.b16 %v339
      %v1184 = vunpack.c.l.b16 %v340
      %v1185 = vunpack.c.h.b16 %v340
      %v1186 = vunpack.c.l.b16 %v341
      %v1187 = vunpack.c.h.b16 %v341
      %v1188 = vunpack.c.l.b16 %v342
      %v1189 = vunpack.c.h.b16 %v342
      %v1190 = vunpack.c.l.b16 %v343
      %v1191 = vunpack.c.h.b16 %v343
      %v1192 = vunpack.c.l.b16 %v344
      %v1193 = vunpack.c.h.b16 %v344
      %v1194 = vunpack.c.l.b16 %v345
      %v1195 = vunpack.c.h.b16 %v345
      %v1196 = vunpack.c.l.b16 %v346
      %v1197 = vunpack.c.h.b16 %v346
      %v1198 = vunpack.c.l.b16 %v347
      %v1199 = vunpack.c.h.b16 %v347
      %v1200 = vunpack.c.l.b16 %v348
      %v1201 = vunpack.c.h.b16 %v348
      %v1202 = vunpack.c.l.b16 %v349
      %v1203 = vunpack.c.h.b16 %v349
      %v1204 = vunpack.c.l.b16 %v350
      %v1205 = vunpack.c.h.b16 %v350
      %v1206 = vunpack.c.l.b16 %v351
      %v1207 = vunpack.c.h.b16 %v351
      %v1208 = vunpack.c.l.b16 %v352
      %v1209 = vunpack.c.h.b16 %v352
      %v1210 = vunpack.c.l.b16 %v353
      %v1211 = vunpack.c.h.b16 %v353
      %v1212 = vunpack.c.l.b16 %v354
      %v1213 = vunpack.c.h.b16 %v354
      %v1214 = vunpack.c.l.b16 %v355
      %v1215 = vunpack.c.h.b16 %v355
      %v1216 = vunpack.c.l.b16 %v356
      %v1217 = vunpack.c.h.b16 %v356
      %v1218 = vunpack.c.l.b16 %v357
      %v1219 = vunpack.c.h.b16 %v357
      %v1220 = vunpack.c.l.b16 %v358
      %v1221 = vunpack.c.h.b16 %v358
      %v1222 = vunpack.c.l.b16 %v359
      %v1223 = vunpack.c.h.b16 %v359
      %v1224 = vunpack.c.l.b16 %v360
      %v1225 = vunpack.c.h.b16 %v360
      %v1226 = vunpack.c.l.b16 %v361
      %v1227 = vunpack.c.h.b16 %v361
      %v1228 = vunpack.c.l.b16 %v362
      %v1229 = vunpack.c.h.b16 %v362
      %v1230 = vunpack.c.l.b16 %v363
      %v1231 = vunpack.c.h.b16 %v363
      %v1232 = vunpack.c.l.b16 %v364
      %v1233 = vunpack.c.h.b16 %v364
      %v1234 = vunpack.c.l.b16 %v365
      %v1235 = vunpack.c.h.b16 %v365
      %v1236 = vunpack.c.l.b16 %v366
      %v1237 = vunpack.c.h.b16 %v366
      %v1238 = vunpack.c.l.b16 %v367
      %v1239 = vunpack.c.h.b16 %v367
      %v1240 = vunpack.c.l.b16 %v368
      %v1241 = vunpack.c.h.b16 %v368
      %v1242 = vunpack.c.l.b16 %v369
      %v1243 = vunpack.c.h.b16 %v369
      %v1244 = vunpack.c.l.b16 %v370
      %v1245 = vunpack.c.h.b16 %v370
      %v1246 = vunpack.c.l.b16 %v371
      %v1247 = vunpack.c.h.b16 %v371
      %v1248 = vunpack.c.l.b16 %v372
      %v1249 = vunpack.c.h.b16 %v372
      %v1250 = vunpack.c.l.b16 %v373
      %v1251 = vunpack.c.h.b16 %v373
      %v1252 = vunpack.c.l.b16 %v374
      %v1253 = vunpack.c.h.b16 %v374
      %v1254 = vunpack.c.l.b16 %v375
      %v1255 = vunpack.c.h.b16 %v375
      %v1256 = vunpack.c.l.b16 %v376
      %v1257 = vunpack.c.h.b16 %v376
      %v1258 = vunpack.c.l.b16 %v377
      %v1259 = vunpack.c.h.b16 %v377
      %v1260 = vunpack.c.l.b16 %v378
      %v1261 = vunpack.c.h.b16 %v378
      %v1262 = vunpack.c.l.b16 %v379
      %v1263 = vunpack.c.h.b16 %v379
      %v1264 = vunpack.c.l.b16 %v380
      %v1265 = vunpack.c.h.b16 %v380
      %v1266 = vunpack.c.l.b16 %v381
      %v1267 = vunpack.c.h.b16 %v381
      %v1268 = vunpack.c.l.b16 %v382
      %v1269 = vunpack.c.h.b16 %v382
      %v1270 = vunpack.c.l.b16 %v383
      %v1271 = vunpack.c.h.b16 %v383
      %v1272 = vunpack.c.l.b16 %v384
      %v1273 = vunpack.c.h.b16 %v384
      %v1274 = vunpack.c.l.b16 %v385
      %v1275 = vunpack.c.h.b16 %v385
      %v1276 = vunpack.c.l.b16 %v386
      %v1277 = vunpack.c.h.b16 %v386
      %v1278 = vunpack.c.l.b16 %v387
      %v1279 = vunpack.c.h.b16 %v387
      %v1280 = vunpack.c.l.b16 %v388
      %v1281 = vunpack.c.h.b16 %v388
      %v1282 = vunpack.c.l.b16 %v389
      %v1283 = vunpack.c.h.b16 %v389
      %v1284 = vunpack.c.l.b16 %v390
      %v1285 = vunpack.c.h.b16 %v390
      %v1286 = vunpack.c.l.b16 %v391
      %v1287 = vunpack.c.h.b16 %v391
      %v1288 = vunpack.c.l.b16 %v392
      %v1289 = vunpack.c.h.b16 %v392
      %v1290 = vunpack.c.l.b16 %v393
      %v1291 = vunpack.c.h.b16 %v393
      %v1292 = vunpack.c.l.b16 %v394
      %v1293 = vunpack.c.h.b16 %v394
      %v1294 = vunpack.c.l.b16 %v395
      %v1295 = vunpack.c.h.b16 %v395
      %v1296 = vunpack.c.l.b16 %v396
      %v1297 = vunpack.c.h.b16 %v396
      %v1298 = vunpack.c.l.b16 %v397
      %v1299 = vunpack.c.h.b16 %v397
      %v1300 = vunpack.c.l.b16 %v398
      %v1301 = vunpack.c.h.b16 %v398
      %v1302 = vunpack.c.l.b16 %v399
      %v1303 = vunpack.c.h.b16 %v399
      %v1304 = vunpack.c.l.b16 %v400
      %v1305 = vunpack.c.h.b16 %v400
      %v1306 = vunpack.c.l.b16 %v401
      %v1307 = vunpack.c.h.b16 %v401
      %v1308 = vunpack.c.l.b16 %v402
      %v1309 = vunpack.c.h.b16 %v402
      %v1310 = vunpack.c.l.b16 %v403
      %v1311 = vunpack.c.h.b16 %v403
      %v1312 = vunpack.c.l.b16 %v404
      %v1313 = vunpack.c.h.b16 %v404
      %v1314 = vunpack.c.l.b16 %v405
      %v1315 = vunpack.c.h.b16 %v405
      %v1316 = vunpack.c.l.b16 %v406
      %v1317 = vunpack.c.h.b16 %v406
      %v1318 = vunpack.c.l.b16 %v407
      %v1319 = vunpack.c.h.b16 %v407
      %v1320 = vunpack.c.l.b16 %v408
      %v1321 = vunpack.c.h.b16 %v408
      %v1322 = vunpack.c.l.b16 %v409
      %v1323 = vunpack.c.h.b16 %v409
      %v1324 = vunpack.c.l.b16 %v410
      %v1325 = vunpack.c.h.b16 %v410
      %v1326 = vunpack.c.l.b16 %v411
      %v1327 = vunpack.c.h.b16 %v411
      %v1328 = vunpack.c.l.b16 %v412
      %v1329 = vunpack.c.h.b16 %v412
      %v1330 = vunpack.c.l.b16 %v413
      %v1331 = vunpack.c.h.b16 %v413
      %v1332 = vpack.c.b16 %v1092, %v1076
      %v1333 = vpack.c.b16 %v1093, %v1077
      %v1334 = vpack.c.b16 %v1094, %v1078
      %v1335 = vpack.c.b16 %v1095, %v1079
      %v1336 = vpack.c.b16 %v1096, %v1080
      %v1337 = vpack.c.b16 %v1097, %v1081
      %v1338 = vpack.c.b16 %v1098, %v1082
      %v1339 = vpack.c.b16 %v1099, %v1083
      %v1340 = vpack.c.b16 %v1100, %v1084
      %v1341 = vpack.c.b16 %v1101, %v1085
      %v1342 = vpack.c.b16 %v1102, %v1086
      %v1343 = vpack.c.b16 %v1103, %v1087
      %v1344 = vpack.c.b16 %v1104, %v1088
      %v1345 = vpack.c.b16 %v1105, %v1089
      %v1346 = vpack.c.b16 %v1106, %v1090
      %v1347 = vpack.c.b16 %v1107, %v1091
      %v1348 = vpack.c.b16 %v1124, %v1108
      %v1349 = vpack.c.b16 %v1125, %v1109
      %v1350 = vpack.c.b16 %v1126, %v1110
      %v1351 = vpack.c.b16 %v1127, %v1111
      %v1352 = vpack.c.b16 %v1128, %v1112
      %v1353 = vpack.c.b16 %v1129, %v1113
      %v1354 = vpack.c.b16 %v1130, %v1114
      %v1355 = vpack.c.b16 %v1131, %v1115
      %v1356 = vpack.c.b16 %v1132, %v1116
      %v1357 = vpack.c.b16 %v1133, %v1117
      %v1358 = vpack.c.b16 %v1134, %v1118
      %v1359 = vpack.c.b16 %v1135, %v1119
      %v1360 = vpack.c.b16 %v1136, %v1120
      %v1361 = vpack.c.b16 %v1137, %v1121
      %v1362 = vpack.c.b16 %v1138, %v1122
      %v1363 = vpack.c.b16 %v1139, %v1123
      %v1364 = vpack.c.b16 %v1156, %v1140
      %v1365 = vpack.c.b16 %v1157, %v1141
      %v1366 = vpack.c.b16 %v1158, %v1142
      %v1367 = vpack.c.b16 %v1159, %v1143
      %v1368 = vpack.c.b16 %v1160, %v1144
      %v1369 = vpack.c.b16 %v1161, %v1145
      %v1370 = vpack.c.b16 %v1162, %v1146
      %v1371 = vpack.c.b16 %v1163, %v1147
      %v1372 = vpack.c.b16 %v1164, %v1148
      %v1373 = vpack.c.b16 %v1165, %v1149
      %v1374 = vpack.c.b16 %v1166, %v1150
      %v1375 = vpack.c.b16 %v1167, %v1151
      %v1376 = vpack.c.b16 %v1168, %v1152
      %v1377 = vpack.c.b16 %v1169, %v1153
      %v1378 = vpack.c.b16 %v1170, %v1154
      %v1379 = vpack.c.b16 %v1171, %v1155
      %v1380 = vpack.c.b16 %v1188, %v1172
      %v1381 = vpack.c.b16 %v1189, %v1173
      %v1382 = vpack.c.b16 %v1190, %v1174
      %v1383 = vpack.c.b16 %v1191, %v1175
      %v1384 = vpack.c.b16 %v1192, %v1176
      %v1385 = vpack.c.b16 %v1193, %v1177
      %v1386 = vpack.c.b16 %v1194, %v1178
      %v1387 = vpack.c.b16 %v1195, %v1179
      %v1388 = vpack.c.b16 %v1196, %v1180
      %v1389 = vpack.c.b16 %v1197, %v1181
      %v1390 = vpack.c.b16 %v1198, %v1182
      %v1391 = vpack.c.b16 %v1199, %v1183
      %v1392 = vpack.c.b16 %v1200, %v1184
      %v1393 = vpack.c.b16 %v1201, %v1185
      %v1394 = vpack.c.b16 %v1202, %v1186
      %v1395 = vpack.c.b16 %v1203, %v1187
      %v1396 = vpack.c.b16 %v1220, %v1204
      %v1397 = vpack.c.b16 %v1221, %v1205
      %v1398 = vpack.c.b16 %v1222, %v1206
      %v1399 = vpack.c.b16 %v1223, %v1207
      %v1400 = vpack.c.b16 %v1224, %v1208
      %v1401 = vpack.c.b16 %v1225, %v1209
      %v1402 = vpack.c.b16 %v1226, %v1210
      %v1403 = vpack.c.b16 %v1227, %v1211
      %v1404 = vpack.c.b16 %v1228, %v1212
      %v1405 = vpack.c.b16 %v1229, %v1213
      %v1406 = vpack.c.b16 %v1230, %v1214
      %v1407 = vpack.c.b16 %v1231, %v1215
      %v1408 = vpack.c.b16 %v1232, %v1216
      %v1409 = vpack.c.b16 %v1233, %v1217
      %v1410 = vpack.c.b16 %v1234, %v1218
      %v1411 = vpack.c.b16 %v1235, %v1219
      %v1412 = vpack.c.b16 %v1252, %v1236
      %v1413 = vpack.c.b16 %v1253, %v1237
      %v1414 = vpack.c.b16 %v1254, %v1238
      %v1415 = vpack.c.b16 %v1255, %v1239
      %v1416 = vpack.c.b16 %v1256, %v1240
      %v1417 = vpack.c.b16 %v1257, %v1241
      %v1418 = vpack.c.b16 %v1258, %v1242
      %v1419 = vpack.c.b16 %v1259, %v1243
      %v1420 = vpack.c.b16 %v1260, %v1244
      %v1421 = vpack.c.b16 %v1261, %v1245
      %v1422 = vpack.c.b16 %v1262, %v1246
      %v1423 = vpack.c.b16 %v1263, %v1247
      %v1424 = vpack.c.b16 %v1264, %v1248
      %v1425 = vpack.c.b16 %v1265, %v1249
      %v1426 = vpack.c.b16 %v1266, %v1250
      %v1427 = vpack.c.b16 %v1267, %v1251
      %v1428 = vpack.c.b16 %v1284, %v1268
      %v1429 = vpack.c.b16 %v1285, %v1269
      %v1430 = vpack.c.b16 %v1286, %v1270
      %v1431 = vpack.c.b16 %v1287, %v1271
      %v1432 = vpack.c.b16 %v1288, %v1272
      %v1433 = vpack.c.b16 %v1289, %v1273
      %v1434 = vpack.c.b16 %v1290, %v1274
      %v1435 = vpack.c.b16 %v1291, %v1275
      %v1436 = vpack.c.b16 %v1292, %v1276
      %v1437 = vpack.c.b16 %v1293, %v1277
      %v1438 = vpack.c.b16 %v1294, %v1278
      %v1439 = vpack.c.b16 %v1295, %v1279
      %v1440 = vpack.c.b16 %v1296, %v1280
      %v1441 = vpack.c.b16 %v1297, %v1281
      %v1442 = vpack.c.b16 %v1298, %v1282
      %v1443 = vpack.c.b16 %v1299, %v1283
      %v1444 = vpack.c.b16 %v1316, %v1300
      %v1445 = vpack.c.b16 %v1317, %v1301
      %v1446 = vpack.c.b16 %v1318, %v1302
      %v1447 = vpack.c.b16 %v1319, %v1303
      %v1448 = vpack.c.b16 %v1320, %v1304
      %v1449 = vpack.c.b16 %v1321, %v1305
      %v1450 = vpack.c.b16 %v1322, %v1306
      %v1451 = vpack.c.b16 %v1323, %v1307
      %v1452 = vpack.c.b16 %v1324, %v1308
      %v1453 = vpack.c.b16 %v1325, %v1309
      %v1454 = vpack.c.b16 %v1326, %v1310
      %v1455 = vpack.c.b16 %v1327, %v1311
      %v1456 = vpack.c.b16 %v1328, %v1312
      %v1457 = vpack.c.b16 %v1329, %v1313
      %v1458 = vpack.c.b16 %v1330, %v1314
      %v1459 = vpack.c.b16 %v1331, %v1315
      %v2100 = vunpack.c.l.b16 %v414
      %v2101 = vunpack.c.h.b16 %v414
      %v2102 = vunpack.c.l.b16 %v415
      %v2103 = vunpack.c.h.b16 %v415
      %v2104 = vunpack.c.l.b16 %v416
      %v2105 = vunpack.c.h.b16 %v416
      %v2106 = vunpack.c.l.b16 %v417
      %v2107 = vunpack.c.h.b16 %v417
      %v2108 = vunpack.c.l.b16 %v418
      %v2109 = vunpack.c.h.b16 %v418
      %v2110 = vunpack.c.l.b16 %v419
      %v2111 = vunpack.c.h.b16 %v419
      %v2112 = vunpack.c.l.b16 %v420
      %v2113 = vunpack.c.h.b16 %v420
      %v2114 = vunpack.c.l.b16 %v421
      %v2115 = vunpack.c.h.b16 %v421
      %v2116 = vunpack.c.l.b16 %v422
      %v2117 = vunpack.c.h.b16 %v422
      %v2118 = vunpack.c.l.b16 %v423
      %v2119 = vunpack.c.h.b16 %v423
      %v2120 = vunpack.c.l.b16 %v424
      %v2121 = vunpack.c.h.b16 %v424
      %v2122 = vunpack.c.l.b16 %v425
      %v2123 = vunpack.c.h.b16 %v425
      %v2124 = vunpack.c.l.b16 %v426
      %v2125 = vunpack.c.h.b16 %v426
      %v2126 = vunpack.c.l.b16 %v427
      %v2127 = vunpack.c.h.b16 %v427
      %v2128 = vunpack.c.l.b16 %v428
      %v2129 = vunpack.c.h.b16 %v428
      %v2130 = vunpack.c.l.b16 %v429
      %v2131 = vunpack.c.h.b16 %v429
      %v2132 = vunpack.c.l.b16 %v430
      %v2133 = vunpack.c.h.b16 %v430
      %v2134 = vunpack.c.l.b16 %v431
      %v2135 = vunpack.c.h.b16 %v431
      %v2136 = vunpack.c.l.b16 %v432
      %v2137 = vunpack.c.h.b16 %v432
      %v2138 = vunpack.c.l.b16 %v433
      %v2139 = vunpack.c.h.b16 %v433
      %v2140 = vunpack.c.l.b16 %v434
      %v2141 = vunpack.c.h.b16 %v434
      %v2142 = vunpack.c.l.b16 %v435
      %v2143 = vunpack.c.h.b16 %v435
      %v2144 = vunpack.c.l.b16 %v436
      %v2145 = vunpack.c.h.b16 %v436
      %v2146 = vunpack.c.l.b16 %v437
      %v2147 = vunpack.c.h.b16 %v437
      %v2148 = vunpack.c.l.b16 %v438
      %v2149 = vunpack.c.h.b16 %v438
      %v2150 = vunpack.c.l.b16 %v439
      %v2151 = vunpack.c.h.b16 %v439
      %v2152 = vunpack.c.l.b16 %v440
      %v2153 = vunpack.c.h.b16 %v440
      %v2154 = vunpack.c.l.b16 %v441
      %v2155 = vunpack.c.h.b16 %v441
      %v2156 = vunpack.c.l.b16 %v442
      %v2157 = vunpack.c.h.b16 %v442
      %v2158 = vunpack.c.l.b16 %v443
      %v2159 = vunpack.c.h.b16 %v443
      %v2160 = vunpack.c.l.b16 %v444
      %v2161 = vunpack.c.h.b16 %v444
      %v2162 = vunpack.c.l.b16 %v445
      %v2163 = vunpack.c.h.b16 %v445
      %v2164 = vunpack.c.l.b16 %v446
      %v2165 = vunpack.c.h.b16 %v446
      %v2166 = vunpack.c.l.b16 %v447
      %v2167 = vunpack.c.h.b16 %v447
      %v2168 = vunpack.c.l.b16 %v448
      %v2169 = vunpack.c.h.b16 %v448
      %v2170 = vunpack.c.l.b16 %v449
      %v2171 = vunpack.c.h.b16 %v449
      %v2172 = vunpack.c.l.b16 %v450
      %v2173 = vunpack.c.h.b16 %v450
      %v2174 = vunpack.c.l.b16 %v451
      %v2175 = vunpack.c.h.b16 %v451
      %v2176 = vunpack.c.l.b16 %v452
      %v2177 = vunpack.c.h.b16 %v452
      %v2178 = vunpack.c.l.b16 %v453
      %v2179 = vunpack.c.h.b16 %v453
      %v2180 = vunpack.c.l.b16 %v454
      %v2181 = vunpack.c.h.b16 %v454
      %v2182 = vunpack.c.l.b16 %v455
      %v2183 = vunpack.c.h.b16 %v455
      %v2184 = vunpack.c.l.b16 %v456
      %v2185 = vunpack.c.h.b16 %v456
      %v2186 = vunpack.c.l.b16 %v457
      %v2187 = vunpack.c.h.b16 %v457
      %v2188 = vunpack.c.l.b16 %v458
      %v2189 = vunpack.c.h.b16 %v458
      %v2190 = vunpack.c.l.b16 %v459
      %v2191 = vunpack.c.h.b16 %v459
      %v2192 = vunpack.c.l.b16 %v460
      %v2193 = vunpack.c.h.b16 %v460
      %v2194 = vunpack.c.l.b16 %v461
      %v2195 = vunpack.c.h.b16 %v461
      %v2196 = vunpack.c.l.b16 %v462
      %v2197 = vunpack.c.h.b16 %v462
      %v2198 = vunpack.c.l.b16 %v463
      %v2199 = vunpack.c.h.b16 %v463
      %v2200 = vunpack.c.l.b16 %v464
      %v2201 = vunpack.c.h.b16 %v464
      %v2202 = vunpack.c.l.b16 %v465
      %v2203 = vunpack.c.h.b16 %v465
      %v2204 = vunpack.c.l.b16 %v466
      %v2205 = vunpack.c.h.b16 %v466
      %v2206 = vunpack.c.l.b16 %v467
      %v2207 = vunpack.c.h.b16 %v467
      %v2208 = vunpack.c.l.b16 %v468
      %v2209 = vunpack.c.h.b16 %v468
      %v2210 = vunpack.c.l.b16 %v469
      %v2211 = vunpack.c.h.b16 %v469
      %v2212 = vunpack.c.l.b16 %v470
      %v2213 = vunpack.c.h.b16 %v470
      %v2214 = vunpack.c.l.b16 %v471
      %v2215 = vunpack.c.h.b16 %v471
      %v2216 = vunpack.c.l.b16 %v472
      %v2217 = vunpack.c.h.b16 %v472
      %v2218 = vunpack.c.l.b16 %v473
      %v2219 = vunpack.c.h.b16 %v473
      %v2220 = vunpack.c.l.b16 %v474
      %v2221 = vunpack.c.h.b16 %v474
      %v2222 = vunpack.c.l.b16 %v475
      %v2223 = vunpack.c.h.b16 %v475
      %v2224 = vunpack.c.l.b16 %v476
      %v2225 = vunpack.c.h.b16 %v476
      %v2226 = vunpack.c.l.b16 %v477
      %v2227 = vunpack.c.h.b16 %v477
      %v2228 = vunpack.c.l.b16 %v478
      %v2229 = vunpack.c.h.b16 %v478
      %v2230 = vunpack.c.l.b16 %v479
      %v2231 = vunpack.c.h.b16 %v479
      %v2232 = vunpack.c.l.b16 %v480
      %v2233 = vunpack.c.h.b16 %v480
      %v2234 = vunpack.c.l.b16 %v481
      %v2235 = vunpack.c.h.b16 %v481
      %v2236 = vunpack.c.l.b16 %v482
      %v2237 = vunpack.c.h.b16 %v482
      %v2238 = vunpack.c.l.b16 %v483
      %v2239 = vunpack.c.h.b16 %v483
      %v2240 = vunpack.c.l.b16 %v484
      %v2241 = vunpack.c.h.b16 %v484
      %v2242 = vunpack.c.l.b16 %v485
      %v2243 = vunpack.c.h.b16 %v485
      %v2244 = vunpack.c.l.b16 %v486
      %v2245 = vunpack.c.h.b16 %v486
      %v2246 = vunpack.c.l.b16 %v487
      %v2247 = vunpack.c.h.b16 %v487
      %v2248 = vunpack.c.l.b16 %v488
      %v2249 = vunpack.c.h.b16 %v488
      %v2250 = vunpack.c.l.b16 %v489
      %v2251 = vunpack.c.h.b16 %v489
      %v2252 = vunpack.c.l.b16 %v490
      %v2253 = vunpack.c.h.b16 %v490
      %v2254 = vunpack.c.l.b16 %v491
      %v2255 = vunpack.c.h.b16 %v491
      %v2256 = vunpack.c.l.b16 %v492
      %v2257 = vunpack.c.h.b16 %v492
      %v2258 = vunpack.c.l.b16 %v493
      %v2259 = vunpack.c.h.b16 %v493
      %v2260 = vunpack.c.l.b16 %v494
      %v2261 = vunpack.c.h.b16 %v494
      %v2262 = vunpack.c.l.b16 %v495
      %v2263 = vunpack.c.h.b16 %v495
      %v2264 = vunpack.c.l.b16 %v496
      %v2265 = vunpack.c.h.b16 %v496
      %v2266 = vunpack.c.l.b16 %v497
      %v2267 = vunpack.c.h.b16 %v497
      %v2268 = vunpack.c.l.b16 %v498
      %v2269 = vunpack.c.h.b16 %v498
      %v2270 = vunpack.c.l.b16 %v499
      %v2271 = vunpack.c.h.b16 %v499
      %v2272 = vunpack.c.l.b16 %v500
      %v2273 = vunpack.c.h.b16 %v500
      %v2274 = vunpack.c.l.b16 %v501
      %v2275 = vunpack.c.h.b16 %v501
      %v2276 = vunpack.c.l.b16 %v502
      %v2277 = vunpack.c.h.b16 %v502
      %v2278 = vunpack.c.l.b16 %v503
      %v2279 = vunpack.c.h.b16 %v503
      %v2280 = vunpack.c.l.b16 %v504
      %v2281 = vunpack.c.h.b16 %v504
      %v2282 = vunpack.c.l.b16 %v505
      %v2283 = vunpack.c.h.b16 %v505
      %v2284 = vunpack.c.l.b16 %v506
      %v2285 = vunpack.c.h.b16 %v506
      %v2286 = vunpack.c.l.b16 %v507
      %v2287 = vunpack.c.h.b16 %v507
      %v2288 = vunpack.c.l.b16 %v508
      %v2289 = vunpack.c.h.b16 %v508
      %v2290 = vunpack.c.l.b16 %v509
      %v2291 = vunpack.c.h.b16 %v509
      %v2292 = vunpack.c.l.b16 %v510
      %v2293 = vunpack.c.h.b16 %v510
      %v2294 = vunpack.c.l.b16 %v511
      %v2295 = vunpack.c.h.b16 %v511
      %v2296 = vunpack.c.l.b16 %v512
      %v2297 = vunpack.c.h.b16 %v512
      %v2298 = vunpack.c.l.b16 %v513
      %v2299 = vunpack.c.h.b16 %v513
      %v2300 = vunpack.c.l.b16 %v514
      %v2301 = vunpack.c.h.b16 %v514
      %v2302 = vunpack.c.l.b16 %v515
      %v2303 = vunpack.c.h.b16 %v515
      %v2304 = vunpack.c.l.b16 %v516
      %v2305 = vunpack.c.h.b16 %v516
      %v2306 = vunpack.c.l.b16 %v517
      %v2307 = vunpack.c.h.b16 %v517
      %v2308 = vunpack.c.l.b16 %v518
      %v2309 = vunpack.c.h.b16 %v518
      %v2310 = vunpack.c.l.b16 %v519
      %v2311 = vunpack.c.h.b16 %v519
      %v2312 = vunpack.c.l.b16 %v520
      %v2313 = vunpack.c.h.b16 %v520
      %v2314 = vunpack.c.l.b16 %v521
      %v2315 = vunpack.c.h.b16 %v521
      %v2316 = vunpack.c.l.b16 %v522
      %v2317 = vunpack.c.h.b16 %v522
      %v2318 = vunpack.c.l.b16 %v523
      %v2319 = vunpack.c.h.b16 %v523
      %v2320 = vunpack.c.l.b16 %v524
      %v2321 = vunpack.c.h.b16 %v524
      %v2322 = vunpack.c.l.b16 %v525
      %v2323 = vunpack.c.h.b16 %v525
      %v2324 = vunpack.c.l.b16 %v526
      %v2325 = vunpack.c.h.b16 %v526
      %v2326 = vunpack.c.l.b16 %v527
      %v2327 = vunpack.c.h.b16 %v527
      %v2328 = vunpack.c.l.b16 %v528
      %v2329 = vunpack.c.h.b16 %v528
      %v2330 = vunpack.c.l.b16 %v529
      %v2331 = vunpack.c.h.b16 %v529
      %v2332 = vunpack.c.l.b16 %v530
      %v2333 = vunpack.c.h.b16 %v530
      %v2334 = vunpack.c.l.b16 %v531
      %v2335 = vunpack.c.h.b16 %v531
      %v2336 = vunpack.c.l.b16 %v532
      %v2337 = vunpack.c.h.b16 %v532
      %v2338 = vunpack.c.l.b16 %v533
      %v2339 = vunpack.c.h.b16 %v533
      %v2340 = vunpack.c.l.b16 %v534
      %v2341 = vunpack.c.h.b16 %v534
      %v2342 = vunpack.c.l.b16 %v535
      %v2343 = vunpack.c.h.b16 %v535
      %v2344 = vunpack.c.l.b16 %v536
      %v2345 = vunpack.c.h.b16 %v536
      %v2346 = vunpack.c.l.b16 %v537
      %v2347 = vunpack.c.h.b16 %v537
      %v2348 = vunpack.c.l.b16 %v538
      %v2349 = vunpack.c.h.b16 %v538
      %v2350 = vunpack.c.l.b16 %v539
      %v2351 = vunpack.c.h.b16 %v539
      %v2352 = vunpack.c.l.b16 %v540
      %v2353 = vunpack.c.h.b16 %v540
      %v2354 = vunpack.c.l.b16 %v541
      %v2355 = vunpack.c.h.b16 %v541
      %v2356 = vunpack.c.l.b16 %v542
      %v2357 = vunpack.c.h.b16 %v542
      %v2358 = vunpack.c.l.b16 %v543
      %v2359 = vunpack.c.h.b16 %v543
      %v2360 = vunpack.c.l.b16 %v544
      %v2361 = vunpack.c.h.b16 %v544
      %v2362 = vunpack.c.l.b16 %v545
      %v2363 = vunpack.c.h.b16 %v545
      %v2364 = vunpack.c.l.b16 %v546
      %v2365 = vunpack.c.h.b16 %v546
      %v2366 = vunpack.c.l.b16 %v547
      %v2367 = vunpack.c.h.b16 %v547
      %v2368 = vunpack.c.l.b16 %v548
      %v2369 = vunpack.c.h.b16 %v548
      %v2370 = vunpack.c.l.b16 %v549
      %v2371 = vunpack.c.h.b16 %v549
      %v2372 = vunpack.c.l.b16 %v550
      %v2373 = vunpack.c.h.b16 %v550
      %v2374 = vunpack.c.l.b16 %v551
      %v2375 = vunpack.c.h.b16 %v551
      %v2376 = vunpack.c.l.b16 %v552
      %v2377 = vunpack.c.h.b16 %v552
      %v2378 = vunpack.c.l.b16 %v553
      %v2379 = vunpack.c.h.b16 %v553
      %v2380 = vunpack.c.l.b16 %v554
      %v2381 = vunpack.c.h.b16 %v554
      %v2382 = vunpack.c.l.b16 %v555
      %v2383 = vunpack.c.h.b16 %v555
      %v2384 = vunpack.c.l.b16 %v556
      %v2385 = vunpack.c.h.b16 %v556
      %v2386 = vunpack.c.l.b16 %v557
      %v2387 = vunpack.c.h.b16 %v557
      %v2388 = vunpack.c.l.b16 %v558
      %v2389 = vunpack.c.h.b16 %v558
      %v2390 = vunpack.c.l.b16 %v559
      %v2391 = vunpack.c.h.b16 %v559
      %v2392 = vunpack.c.l.b16 %v560
      %v2393 = vunpack.c.h.b16 %v560
      %v2394 = vunpack.c.l.b16 %v561
      %v2395 = vunpack.c.h.b16 %v561
      %v2396 = vunpack.c.l.b16 %v562
      %v2397 = vunpack.c.h.b16 %v562
      %v2398 = vunpack.c.l.b16 %v563
      %v2399 = vunpack.c.h.b16 %v563
      %v2400 = vunpack.c.l.b16 %v564
      %v2401 = vunpack.c.h.b16 %v564
      %v2402 = vunpack.c.l.b16 %v565
      %v2403 = vunpack.c.h.b16 %v565
      %v2404 = vunpack.c.l.b16 %v566
      %v2405 = vunpack.c.h.b16 %v566
      %v2406 = vunpack.c.l.b16 %v567
      %v2407 = vunpack.c.h.b16 %v567
      %v2408 = vunpack.c.l.b16 %v568
      %v2409 = vunpack.c.h.b16 %v568
      %v2410 = vunpack.c.l.b16 %v569
      %v2411 = vunpack.c.h.b16 %v569
      %v2412 = vunpack.c.l.b16 %v570
      %v2413 = vunpack.c.h.b16 %v570
      %v2414 = vunpack.c.l.b16 %v571
      %v2415 = vunpack.c.h.b16 %v571
      %v2416 = vunpack.c.l.b16 %v572
      %v2417 = vunpack.c.h.b16 %v572
      %v2418 = vunpack.c.l.b16 %v573
      %v2419 = vunpack.c.h.b16 %v573
      %v2420 = vunpack.c.l.b16 %v574
      %v2421 = vunpack.c.h.b16 %v574
      %v2422 = vunpack.c.l.b16 %v575
      %v2423 = vunpack.c.h.b16 %v575
      %v2424 = vunpack.c.l.b16 %v576
      %v2425 = vunpack.c.h.b16 %v576
      %v2426 = vunpack.c.l.b16 %v577
      %v2427 = vunpack.c.h.b16 %v577
      %v2428 = vunpack.c.l.b16 %v578
      %v2429 = vunpack.c.h.b16 %v578
      %v2430 = vunpack.c.l.b16 %v579
      %v2431 = vunpack.c.h.b16 %v579
      %v2432 = vunpack.c.l.b16 %v580
      %v2433 = vunpack.c.h.b16 %v580
      %v2434 = vunpack.c.l.b16 %v581
      %v2435 = vunpack.c.h.b16 %v581
      %v2436 = vunpack.c.l.b16 %v582
      %v2437 = vunpack.c.h.b16 %v582
      %v2438 = vunpack.c.l.b16 %v583
      %v2439 = vunpack.c.h.b16 %v583
      %v2440 = vunpack.c.l.b16 %v584
      %v2441 = vunpack.c.h.b16 %v584
      %v2442 = vunpack.c.l.b16 %v585
      %v2443 = vunpack.c.h.b16 %v585
      %v2444 = vunpack.c.l.b16 %v586
      %v2445 = vunpack.c.h.b16 %v586
      %v2446 = vunpack.c.l.b16 %v587
      %v2447 = vunpack.c.h.b16 %v587
      %v2448 = vunpack.c.l.b16 %v588
      %v2449 = vunpack.c.h.b16 %v588
      %v2450 = vunpack.c.l.b16 %v589
      %v2451 = vunpack.c.h.b16 %v589
      %v2452 = vunpack.c.l.b16 %v590
      %v2453 = vunpack.c.h.b16 %v590
      %v2454 = vunpack.c.l.b16 %v591
      %v2455 = vunpack.c.h.b16 %v591
      %v2456 = vunpack.c.l.b16 %v592
      %v2457 = vunpack.c.h.b16 %v592
      %v2458 = vunpack.c.l.b16 %v593
      %v2459 = vunpack.c.h.b16 %v593
      %v2460 = vunpack.c.l.b16 %v594
      %v2461 = vunpack.c.h.b16 %v594
      %v2462 = vunpack.c.l.b16 %v595
      %v2463 = vunpack.c.h.b16 %v595
      %v2464 = vunpack.c.l.b16 %v596
      %v2465 = vunpack.c.h.b16 %v596
      %v2466 = vunpack.c.l.b16 %v597
      %v2467 = vunpack.c.h.b16 %v597
      %v2468 = vunpack.c.l.b16 %v598
      %v2469 = vunpack.c.h.b16 %v598
      %v2470 = vunpack.c.l.b16 %v599
      %v2471 = vunpack.c.h.b16 %v599
      %v2472 = vunpack.c.l.b16 %v600
      %v2473 = vunpack.c.h.b16 %v600
      %v2474 = vunpack.c.l.b16 %v601
      %v2475 = vunpack.c.h.b16 %v601
      %v2476 = vunpack.c.l.b16 %v602
      %v2477 = vunpack.c.h.b16 %v602
      %v2478 = vunpack.c.l.b16 %v603
      %v2479 = vunpack.c.h.b16 %v603
      %v2480 = vunpack.c.l.b16 %v604
      %v2481 = vunpack.c.h.b16 %v604
      %v2482 = vunpack.c.l.b16 %v605
      %v2483 = vunpack.c.h.b16 %v605
      %v2484 = vunpack.c.l.b16 %v606
      %v2485 = vunpack.c.h.b16 %v606
      %v2486 = vunpack.c.l.b16 %v607
      %v2487 = vunpack.c.h.b16 %v607
      %v2488 = vunpack.c.l.b16 %v608
      %v2489 = vunpack.c.h.b16 %v608
      %v2490 = vunpack.c.l.b16 %v609
      %v2491 = vunpack.c.h.b16 %v609
      %v2492 = vunpack.c.l.b16 %v610
      %v2493 = vunpack.c.h.b16 %v610
      %v2494 = vunpack.c.l.b16 %v611
      %v2495 = vunpack.c.h.b16 %v611
      %v2496 = vunpack.c.l.b16 %v612
      %v2497 = vunpack.c.h.b16 %v612
      %v2498 = vunpack.c.l.b16 %v613
      %v2499 = vunpack.c.h.b16 %v613
      %v2500 = vunpack.c.l.b16 %v614
      %v2501 = vunpack.c.h.b16 %v614
      %v2502 = vunpack.c.l.b16 %v615
      %v2503 = vunpack.c.h.b16 %v615
      %v2504 = vunpack.c.l.b16 %v616
      %v2505 = vunpack.c.h.b16 %v616
      %v2506 = vunpack.c.l.b16 %v617
      %v2507 = vunpack.c.h.b16 %v617
      %v2508 = vunpack.c.l.b16 %v618
      %v2509 = vunpack.c.h.b16 %v618
      %v2510 = vunpack.c.l.b16 %v619
      %v2511 = vunpack.c.h.b16 %v619
      %v2512 = vunpack.c.l.b16 %v620
      %v2513 = vunpack.c.h.b16 %v620
      %v2514 = vunpack.c.l.b16 %v621
      %v2515 = vunpack.c.h.b16 %v621
      %v2516 = vunpack.c.l.b16 %v622
      %v2517 = vunpack.c.h.b16 %v622
      %v2518 = vunpack.c.l.b16 %v623
      %v2519 = vunpack.c.h.b16 %v623
      %v2520 = vunpack.c.l.b16 %v624
      %v2521 = vunpack.c.h.b16 %v624
      %v2522 = vunpack.c.l.b16 %v625
      %v2523 = vunpack.c.h.b16 %v625
      %v2524 = vunpack.c.l.b16 %v626
      %v2525 = vunpack.c.h.b16 %v626
      %v2526 = vunpack.c.l.b16 %v627
      %v2527 = vunpack.c.h.b16 %v627
      %v2528 = vunpack.c.l.b16 %v628
      %v2529 = vunpack.c.h.b16 %v628
      %v2530 = vunpack.c.l.b16 %v629
      %v2531 = vunpack.c.h.b16 %v629
      %v2532 = vunpack.c.l.b16 %v630
      %v2533 = vunpack.c.h.b16 %v630
      %v2534 = vunpack.c.l.b16 %v631
      %v2535 = vunpack.c.h.b16 %v631
      %v2536 = vunpack.c.l.b16 %v632
      %v2537 = vunpack.c.h.b16 %v632
      %v2538 = vunpack.c.l.b16 %v633
      %v2539 = vunpack.c.h.b16 %v633
      %v2540 = vunpack.c.l.b16 %v634
      %v2541 = vunpack.c.h.b16 %v634
      %v2542 = vunpack.c.l.b16 %v635
      %v2543 = vunpack.c.h.b16 %v635
      %v2544 = vunpack.c.l.b16 %v636
      %v2545 = vunpack.c.h.b16 %v636
      %v2546 = vunpack.c.l.b16 %v637
      %v2547 = vunpack.c.h.b16 %v637
      %v2548 = vunpack.c.l.b16 %v638
      %v2549 = vunpack.c.h.b16 %v638
      %v2550 = vunpack.c.l.b16 %v639
      %v2551 = vunpack.c.h.b16 %v639
      %v2552 = vunpack.c.l.b16 %v640
      %v2553 = vunpack.c.h.b16 %v640
      %v2554 = vunpack.c.l.b16 %v641
      %v2555 = vunpack.c.h.b16 %v641
      %v2556 = vunpack.c.l.b16 %v642
      %v2557 = vunpack.c.h.b16 %v642
      %v2558 = vunpack.c.l.b16 %v643
      %v2559 = vunpack.c.h.b16 %v643
      %v2560 = vunpack.c.l.b16 %v644
      %v2561 = vunpack.c.h.b16 %v644
      %v2562 = vunpack.c.l.b16 %v645
      %v2563 = vunpack.c.h.b16 %v645
      %v2564 = vunpack.c.l.b16 %v646
      %v2565 = vunpack.c.h.b16 %v646
      %v2566 = vunpack.c.l.b16 %v647
      %v2567 = vunpack.c.h.b16 %v647
      %v2568 = vunpack.c.l.b16 %v648
      %v2569 = vunpack.c.h.b16 %v648
      %v2570 = vunpack.c.l.b16 %v649
      %v2571 = vunpack.c.h.b16 %v649
      %v2572 = vunpack.c.l.b16 %v650
      %v2573 = vunpack.c.h.b16 %v650
      %v2574 = vunpack.c.l.b16 %v651
      %v2575 = vunpack.c.h.b16 %v651
      %v2576 = vunpack.c.l.b16 %v652
      %v2577 = vunpack.c.h.b16 %v652
      %v2578 = vunpack.c.l.b16 %v653
      %v2579 = vunpack.c.h.b16 %v653
      %v2580 = vunpack.c.l.b16 %v654
      %v2581 = vunpack.c.h.b16 %v654
      %v2582 = vunpack.c.l.b16 %v655
      %v2583 = vunpack.c.h.b16 %v655
      %v2584 = vunpack.c.l.b16 %v656
      %v2585 = vunpack.c.h.b16 %v656
      %v2586 = vunpack.c.l.b16 %v657
      %v2587 = vunpack.c.h.b16 %v657
      %v2588 = vunpack.c.l.b16 %v658
      %v2589 = vunpack.c.h.b16 %v658
      %v2590 = vunpack.c.l.b16 %v659
      %v2591 = vunpack.c.h.b16 %v659
      %v2592 = vunpack.c.l.b16 %v660
      %v2593 = vunpack.c.h.b16 %v660
      %v2594 = vunpack.c.l.b16 %v661
      %v2595 = vunpack.c.h.b16 %v661
      %v2596 = vunpack.c.l.b16 %v662
      %v2597 = vunpack.c.h.b16 %v662
      %v2598 = vunpack.c.l.b16 %v663
      %v2599 = vunpack.c.h.b16 %v663
      %v2600 = vunpack.c.l.b16 %v664
      %v2601 = vunpack.c.h.b16 %v664
      %v2602 = vunpack.c.l.b16 %v665
      %v2603 = vunpack.c.h.b16 %v665
      %v2604 = vunpack.c.l.b16 %v666
      %v2605 = vunpack.c.h.b16 %v666
      %v2606 = vunpack.c.l.b16 %v667
      %v2607 = vunpack.c.h.b16 %v667
      %v2608 = vunpack.c.l.b16 %v668
      %v2609 = vunpack.c.h.b16 %v668
      %v2610 = vunpack.c.l.b16 %v669
      %v2611 = vunpack.c.h.b16 %v669
      %v2612 = vunpack.c.l.b16 %v670
      %v2613 = vunpack.c.h.b16 %v670
      %v2614 = vunpack.c.l.b16 %v671
      %v2615 = vunpack.c.h.b16 %v671
      %v2616 = vunpack.c.l.b16 %v672
      %v2617 = vunpack.c.h.b16 %v672
      %v2618 = vunpack.c.l.b16 %v673
      %v2619 = vunpack.c.h.b16 %v673
      %v2620 = vunpack.c.l.b16 %v674
      %v2621 = vunpack.c.h.b16 %v674
      %v2622 = vunpack.c.l.b16 %v675
      %v2623 = vunpack.c.h.b16 %v675
      %v2624 = vunpack.c.l.b16 %v676
      %v2625 = vunpack.c.h.b16 %v676
      %v2626 = vunpack.c.l.b16 %v677
      %v2627 = vunpack.c.h.b16 %v677
      %v2628 = vunpack.c.l.b16 %v678
      %v2629 = vunpack.c.h.b16 %v678
      %v2630 = vunpack.c.l.b16 %v679
      %v2631 = vunpack.c.h.b16 %v679
      %v2632 = vunpack.c.l.b16 %v680
      %v2633 = vunpack.c.h.b16 %v680
      %v2634 = vunpack.c.l.b16 %v681
      %v2635 = vunpack.c.h.b16 %v681
      %v2636 = vunpack.c.l.b16 %v682
      %v2637 = vunpack.c.h.b16 %v682
      %v2638 = vunpack.c.l.b16 %v683
      %v2639 = vunpack.c.h.b16 %v683
      %v2640 = vunpack.c.l.b16 %v684
      %v2641 = vunpack.c.h.b16 %v684
      %v2642 = vunpack.c.l.b16 %v685
      %v2643 = vunpack.c.h.b16 %v685
      %v2644 = vunpack.c.l.b16 %v686
      %v2645 = vunpack.c.h.b16 %v686
      %v2646 = vunpack.c.l.b16 %v687
      %v2647 = vunpack.c.h.b16 %v687
      %v2648 = vunpack.c.l.b16 %v688
      %v2649 = vunpack.c.h.b16 %v688
      %v2650 = vunpack.c.l.b16 %v689
      %v2651 = vunpack.c.h.b16 %v689
      %v2652 = vunpack.c.l.b16 %v690
      %v2653 = vunpack.c.h.b16 %v690
      %v2654 = vunpack.c.l.b16 %v691
      %v2655 = vunpack.c.h.b16 %v691
      %v2656 = vunpack.c.l.b16 %v692
      %v2657 = vunpack.c.h.b16 %v692
      %v2658 = vunpack.c.l.b16 %v693
      %v2659 = vunpack.c.h.b16 %v693
      %v2660 = vunpack.c.l.b16 %v694
      %v2661 = vunpack.c.h.b16 %v694
      %v2662 = vunpack.c.l.b16 %v695
      %v2663 = vunpack.c.h.b16 %v695
      %v2664 = vunpack.c.l.b16 %v696
      %v2665 = vunpack.c.h.b16 %v696
      %v2666 = vunpack.c.l.b16 %v697
      %v2667 = vunpack.c.h.b16 %v697
      %v2668 = vunpack.c.l.b16 %v698
      %v2669 = vunpack.c.h.b16 %v698
      %v2670 = vunpack.c.l.b16 %v699
      %v2671 = vunpack.c.h.b16 %v699
      %v2672 = vunpack.c.l.b16 %v700
      %v2673 = vunpack.c.h.b16 %v700
      %v2674 = vunpack.c.l.b16 %v701
      %v2675 = vunpack.c.h.b16 %v701
      %v2676 = vunpack.c.l.b16 %v702
      %v2677 = vunpack.c.h.b16 %v702
      %v2678 = vunpack.c.l.b16 %v703
      %v2679 = vunpack.c.h.b16 %v703
      %v2680 = vunpack.c.l.b16 %v704
      %v2681 = vunpack.c.h.b16 %v704
      %v2682 = vunpack.c.l.b16 %v705
      %v2683 = vunpack.c.h.b16 %v705
      %v2684 = vunpack.c.l.b16 %v706
      %v2685 = vunpack.c.h.b16 %v706
      %v2686 = vunpack.c.l.b16 %v707
      %v2687 = vunpack.c.h.b16 %v707
      %v2688 = vunpack.c.l.b16 %v708
      %v2689 = vunpack.c.h.b16 %v708
      %v2690 = vunpack.c.l.b16 %v709
      %v2691 = vunpack.c.h.b16 %v709
      %v2692 = vunpack.c.l.b16 %v710
      %v2693 = vunpack.c.h.b16 %v710
      %v2694 = vunpack.c.l.b16 %v711
      %v2695 = vunpack.c.h.b16 %v711
      %v2696 = vunpack.c.l.b16 %v712
      %v2697 = vunpack.c.h.b16 %v712
      %v2698 = vunpack.c.l.b16 %v713
      %v2699 = vunpack.c.h.b16 %v713
      %v2700 = vunpack.c.l.b16 %v714
      %v2701 = vunpack.c.h.b16 %v714
      %v2702 = vunpack.c.l.b16 %v715
      %v2703 = vunpack.c.h.b16 %v715
      %v2704 = vunpack.c.l.b16 %v716
      %v2705 = vunpack.c.h.b16 %v716
      %v2706 = vunpack.c.l.b16 %v717
      %v2707 = vunpack.c.h.b16 %v717
      %v2708 = vunpack.c.l.b16 %v718
      %v2709 = vunpack.c.h.b16 %v718
      %v2710 = vunpack.c.l.b16 %v719
      %v2711 = vunpack.c.h.b16 %v719
      %v2712 = vunpack.c.l.b16 %v720
      %v2713 = vunpack.c.h.b16 %v720
      %v2714 = vunpack.c.l.b16 %v721
      %v2715 = vunpack.c.h.b16 %v721
      %v2716 = vunpack.c.l.b16 %v722
      %v2717 = vunpack.c.h.b16 %v722
      %v2718 = vunpack.c.l.b16 %v723
      %v2719 = vunpack.c.h.b16 %v723
      %v2720 = vunpack.c.l.b16 %v724
      %v2721 = vunpack.c.h.b16 %v724
      %v2722 = vunpack.c.l.b16 %v725
      %v2723 = vunpack.c.h.b16 %v725
      %v2724 = vunpack.c.l.b16 %v726
      %v2725 = vunpack.c.h.b16 %v726
      %v2726 = vunpack.c.l.b16 %v727
      %v2727 = vunpack.c.h.b16 %v727
      %v2728 = vunpack.c.l.b16 %v728
      %v2729 = vunpack.c.h.b16 %v728
      %v2730 = vunpack.c.l.b16 %v729
      %v2731 = vunpack.c.h.b16 %v729
      %v2732 = vunpack.c.l.b16 %v730
      %v2733 = vunpack.c.h.b16 %v730
      %v2734 = vunpack.c.l.b16 %v731
      %v2735 = vunpack.c.h.b16 %v731
      %v2736 = vunpack.c.l.b16 %v732
      %v2737 = vunpack.c.h.b16 %v732
      %v2738 = vunpack.c.l.b16 %v733
      %v2739 = vunpack.c.h.b16 %v733
      %v2740 = vunpack.c.l.b16 %v734
      %v2741 = vunpack.c.h.b16 %v734
      %v2742 = vunpack.c.l.b16 %v735
      %v2743 = vunpack.c.h.b16 %v735
      %v2744 = vunpack.c.l.b16 %v736
      %v2745 = vunpack.c.h.b16 %v736
      %v2746 = vunpack.c.l.b16 %v737
      %v2747 = vunpack.c.h.b16 %v737
      %v2748 = vunpack.c.l.b16 %v738
      %v2749 = vunpack.c.h.b16 %v738
      %v2750 = vunpack.c.l.b16 %v739
      %v2751 = vunpack.c.h.b16 %v739
      %v2752 = vunpack.c.l.b16 %v740
      %v2753 = vunpack.c.h.b16 %v740
      %v2754 = vunpack.c.l.b16 %v741
      %v2755 = vunpack.c.h.b16 %v741
      %v2756 = vunpack.c.l.b16 %v742
      %v2757 = vunpack.c.h.b16 %v742
      %v2758 = vunpack.c.l.b16 %v743
      %v2759 = vunpack.c.h.b16 %v743
      %v2760 = vunpack.c.l.b16 %v744
      %v2761 = vunpack.c.h.b16 %v744
      %v2762 = vunpack.c.l.b16 %v745
      %v2763 = vunpack.c.h.b16 %v745
      %v2764 = vunpack.c.l.b16 %v746
      %v2765 = vunpack.c.h.b16 %v746
      %v2766 = vunpack.c.l.b16 %v747
      %v2767 = vunpack.c.h.b16 %v747
      %v2768 = vunpack.c.l.b16 %v748
      %v2769 = vunpack.c.h.b16 %v748
      %v2770 = vunpack.c.l.b16 %v749
      %v2771 = vunpack.c.h.b16 %v749
      %v2772 = vunpack.c.l.b16 %v750
      %v2773 = vunpack.c.h.b16 %v750
      %v2774 = vunpack.c.l.b16 %v751
      %v2775 = vunpack.c.h.b16 %v751
      %v2776 = vunpack.c.l.b16 %v752
      %v2777 = vunpack.c.h.b16 %v752
      %v2778 = vunpack.c.l.b16 %v753
      %v2779 = vunpack.c.h.b16 %v753
      %v2780 = vunpack.c.l.b16 %v754
      %v2781 = vunpack.c.h.b16 %v754
      %v2782 = vunpack.c.l.b16 %v755
      %v2783 = vunpack.c.h.b16 %v755
      %v2784 = vunpack.c.l.b16 %v756
      %v2785 = vunpack.c.h.b16 %v756
      %v2786 = vunpack.c.l.b16 %v757
      %v2787 = vunpack.c.h.b16 %v757
      %v2788 = vunpack.c.l.b16 %v758
      %v2789 = vunpack.c.h.b16 %v758
      %v2790 = vunpack.c.l.b16 %v759
      %v2791 = vunpack.c.h.b16 %v759
      %v2792 = vunpack.c.l.b16 %v760
      %v2793 = vunpack.c.h.b16 %v760
      %v2794 = vunpack.c.l.b16 %v761
      %v2795 = vunpack.c.h.b16 %v761
      %v2796 = vunpack.c.l.b16 %v762
      %v2797 = vunpack.c.h.b16 %v762
      %v2798 = vunpack.c.l.b16 %v763
      %v2799 = vunpack.c.h.b16 %v763
      %v2800 = vunpack.c.l.b16 %v764
      %v2801 = vunpack.c.h.b16 %v764
      %v2802 = vunpack.c.l.b16 %v765
      %v2803 = vunpack.c.h.b16 %v765
      %v2804 = vunpack.c.l.b16 %v766
      %v2805 = vunpack.c.h.b16 %v766
      %v2806 = vunpack.c.l.b16 %v767
      %v2807 = vunpack.c.h.b16 %v767
      %v2808 = vunpack.c.l.b16 %v768
      %v2809 = vunpack.c.h.b16 %v768
      %v2810 = vunpack.c.l.b16 %v769
      %v2811 = vunpack.c.h.b16 %v769
      %v2812 = vunpack.c.l.b16 %v770
      %v2813 = vunpack.c.h.b16 %v770
      %v2814 = vunpack.c.l.b16 %v771
      %v2815 = vunpack.c.h.b16 %v771
      %v2816 = vunpack.c.l.b16 %v772
      %v2817 = vunpack.c.h.b16 %v772
      %v2818 = vunpack.c.l.b16 %v773
      %v2819 = vunpack.c.h.b16 %v773
      %v2820 = vunpack.c.l.b16 %v774
      %v2821 = vunpack.c.h.b16 %v774
      %v2822 = vunpack.c.l.b16 %v775
      %v2823 = vunpack.c.h.b16 %v775
      %v2824 = vunpack.c.l.b16 %v776
      %v2825 = vunpack.c.h.b16 %v776
      %v2826 = vunpack.c.l.b16 %v777
      %v2827 = vunpack.c.h.b16 %v777
      %v2828 = vunpack.c.l.b16 %v778
      %v2829 = vunpack.c.h.b16 %v778
      %v2830 = vunpack.c.l.b16 %v779
      %v2831 = vunpack.c.h.b16 %v779
      %v2832 = vunpack.c.l.b16 %v780
      %v2833 = vunpack.c.h.b16 %v780
      %v2834 = vunpack.c.l.b16 %v781
      %v2835 = vunpack.c.h.b16 %v781
      %v2836 = vunpack.c.l.b16 %v782
      %v2837 = vunpack.c.h.b16 %v782
      %v2838 = vunpack.c.l.b16 %v783
      %v2839 = vunpack.c.h.b16 %v783
      %v2840 = vunpack.c.l.b16 %v784
      %v2841 = vunpack.c.h.b16 %v784
      %v2842 = vunpack.c.l.b16 %v785
      %v2843 = vunpack.c.h.b16 %v785
      %v2844 = vunpack.c.l.b16 %v786
      %v2845 = vunpack.c.h.b16 %v786
      %v2846 = vunpack.c.l.b16 %v787
      %v2847 = vunpack.c.h.b16 %v787
      %v2848 = vunpack.c.l.b16 %v788
      %v2849 = vunpack.c.h.b16 %v788
      %v2850 = vunpack.c.l.b16 %v789
      %v2851 = vunpack.c.h.b16 %v789
      %v2852 = vunpack.c.l.b16 %v790
      %v2853 = vunpack.c.h.b16 %v790
      %v2854 = vunpack.c.l.b16 %v791
      %v2855 = vunpack.c.h.b16 %v791
      %v2856 = vunpack.c.l.b16 %v792
      %v2857 = vunpack.c.h.b16 %v792
      %v2858 = vunpack.c.l.b16 %v793
      %v2859 = vunpack.c.h.b16 %v793
      %v2860 = vunpack.c.l.b16 %v794
      %v2861 = vunpack.c.h.b16 %v794
      %v2862 = vunpack.c.l.b16 %v795
      %v2863 = vunpack.c.h.b16 %v795
      %v2864 = vunpack.c.l.b16 %v796
      %v2865 = vunpack.c.h.b16 %v796
      %v2866 = vunpack.c.l.b16 %v797
      %v2867 = vunpack.c.h.b16 %v797
      %v2868 = vunpack.c.l.b16 %v798
      %v2869 = vunpack.c.h.b16 %v798
      %v2870 = vunpack.c.l.b16 %v799
      %v2871 = vunpack.c.h.b16 %v799
      %v2872 = vunpack.c.l.b16 %v800
      %v2873 = vunpack.c.h.b16 %v800
      %v2874 = vunpack.c.l.b16 %v801
      %v2875 = vunpack.c.h.b16 %v801
      %v2876 = vunpack.c.l.b16 %v802
      %v2877 = vunpack.c.h.b16 %v802
      %v2878 = vunpack.c.l.b16 %v803
      %v2879 = vunpack.c.h.b16 %v803
      %v2880 = vunpack.c.l.b16 %v804
      %v2881 = vunpack.c.h.b16 %v804
      %v2882 = vunpack.c.l.b16 %v805
      %v2883 = vunpack.c.h.b16 %v805
      %v2884 = vunpack.c.l.b16 %v806
      %v2885 = vunpack.c.h.b16 %v806
      %v2886 = vunpack.c.l.b16 %v807
      %v2887 = vunpack.c.h.b16 %v807
      %v2888 = vunpack.c.l.b16 %v808
      %v2889 = vunpack.c.h.b16 %v808
      %v2890 = vunpack.c.l.b16 %v809
      %v2891 = vunpack.c.h.b16 %v809
      %v2892 = vunpack.c.l.b16 %v810
      %v2893 = vunpack.c.h.b16 %v810
      %v2894 = vunpack.c.l.b16 %v811
      %v2895 = vunpack.c.h.b16 %v811
      %v2896 = vunpack.c.l.b16 %v812
      %v2897 = vunpack.c.h.b16 %v812
      %v2898 = vunpack.c.l.b16 %v813
      %v2899 = vunpack.c.h.b16 %v813
      %v2900 = vunpack.c.l.b16 %v814
      %v2901 = vunpack.c.h.b16 %v814
      %v2902 = vunpack.c.l.b16 %v815
      %v2903 = vunpack.c.h.b16 %v815
      %v2904 = vunpack.c.l.b16 %v816
      %v2905 = vunpack.c.h.b16 %v816
      %v2906 = vunpack.c.l.b16 %v817
      %v2907 = vunpack.c.h.b16 %v817
      %v2908 = vunpack.c.l.b16 %v818
      %v2909 = vunpack.c.h.b16 %v818
      %v2910 = vunpack.c.l.b16 %v819
      %v2911 = vunpack.c.h.b16 %v819
      %v2912 = vunpack.c.l.b16 %v820
      %v2913 = vunpack.c.h.b16 %v820
      %v2914 = vunpack.c.l.b16 %v821
      %v2915 = vunpack.c.h.b16 %v821
      %v2916 = vunpack.c.l.b16 %v822
      %v2917 = vunpack.c.h.b16 %v822
      %v2918 = vunpack.c.l.b16 %v823
      %v2919 = vunpack.c.h.b16 %v823
      %v2920 = vunpack.c.l.b16 %v824
      %v2921 = vunpack.c.h.b16 %v824
      %v2922 = vunpack.c.l.b16 %v825
      %v2923 = vunpack.c.h.b16 %v825
      %v2924 = vunpack.c.l.b16 %v826
      %v2925 = vunpack.c.h.b16 %v826
      %v2926 = vunpack.c.l.b16 %v827
      %v2927 = vunpack.c.h.b16 %v827
      %v2928 = vunpack.c.l.b16 %v828
      %v2929 = vunpack.c.h.b16 %v828
      %v2930 = vunpack.c.l.b16 %v829
      %v2931 = vunpack.c.h.b16 %v829
      %v2932 = vunpack.c.l.b16 %v830
      %v2933 = vunpack.c.h.b16 %v830
      %v2934 = vunpack.c.l.b16 %v831
      %v2935 = vunpack.c.h.b16 %v831
      %v2936 = vunpack.c.l.b16 %v832
      %v2937 = vunpack.c.h.b16 %v832
      %v2938 = vunpack.c.l.b16 %v833
      %v2939 = vunpack.c.h.b16 %v833
      %v2940 = vunpack.c.l.b16 %v834
      %v2941 = vunpack.c.h.b16 %v834
      %v2942 = vunpack.c.l.b16 %v835
      %v2943 = vunpack.c.h.b16 %v835
      %v2944 = vunpack.c.l.b16 %v836
      %v2945 = vunpack.c.h.b16 %v836
      %v2946 = vunpack.c.l.b16 %v837
      %v2947 = vunpack.c.h.b16 %v837
      %v2948 = vunpack.c.l.b16 %v838
      %v2949 = vunpack.c.h.b16 %v838
      %v2950 = vunpack.c.l.b16 %v839
      %v2951 = vunpack.c.h.b16 %v839
      %v2952 = vunpack.c.l.b16 %v840
      %v2953 = vunpack.c.h.b16 %v840
      %v2954 = vunpack.c.l.b16 %v841
      %v2955 = vunpack.c.h.b16 %v841
      %v2956 = vunpack.c.l.b16 %v842
      %v2957 = vunpack.c.h.b16 %v842
      %v2958 = vunpack.c.l.b16 %v843
      %v2959 = vunpack.c.h.b16 %v843
      %v2960 = vunpack.c.l.b16 %v844
      %v2961 = vunpack.c.h.b16 %v844
      %v2962 = vunpack.c.l.b16 %v845
      %v2963 = vunpack.c.h.b16 %v845
      %v2964 = vunpack.c.l.b16 %v846
      %v2965 = vunpack.c.h.b16 %v846
      %v2966 = vunpack.c.l.b16 %v847
      %v2967 = vunpack.c.h.b16 %v847
      %v2968 = vunpack.c.l.b16 %v848
      %v2969 = vunpack.c.h.b16 %v848
      %v2970 = vunpack.c.l.b16 %v849
      %v2971 = vunpack.c.h.b16 %v849
      %v2972 = vunpack.c.l.b16 %v850
      %v2973 = vunpack.c.h.b16 %v850
      %v2974 = vunpack.c.l.b16 %v851
      %v2975 = vunpack.c.h.b16 %v851
      %v2976 = vunpack.c.l.b16 %v852
      %v2977 = vunpack.c.h.b16 %v852
      %v2978 = vunpack.c.l.b16 %v853
      %v2979 = vunpack.c.h.b16 %v853
      %v2980 = vunpack.c.l.b16 %v854
      %v2981 = vunpack.c.h.b16 %v854
      %v2982 = vunpack.c.l.b16 %v855
      %v2983 = vunpack.c.h.b16 %v855
      %v2984 = vunpack.c.l.b16 %v856
      %v2985 = vunpack.c.h.b16 %v856
      %v2986 = vunpack.c.l.b16 %v857
      %v2987 = vunpack.c.h.b16 %v857
      %v2988 = vunpack.c.l.b16 %v858
      %v2989 = vunpack.c.h.b16 %v858
      %v2990 = vunpack.c.l.b16 %v859
      %v2991 = vunpack.c.h.b16 %v859
      %v2992 = vunpack.c.l.b16 %v860
      %v2993 = vunpack.c.h.b16 %v860
      %v2994 = vunpack.c.l.b16 %v861
      %v2995 = vunpack.c.h.b16 %v861
      %v2996 = vunpack.c.l.b16 %v862
      %v2997 = vunpack.c.h.b16 %v862
      %v2998 = vunpack.c.l.b16 %v863
      %v2999 = vunpack.c.h.b16 %v863
      %v3000 = vunpack.c.l.b16 %v864
      %v3001 = vunpack.c.h.b16 %v864
      %v3002 = vunpack.c.l.b16 %v865
      %v3003 = vunpack.c.h.b16 %v865
      %v3004 = vunpack.c.l.b16 %v866
      %v3005 = vunpack.c.h.b16 %v866
      %v3006 = vunpack.c.l.b16 %v867
      %v3007 = vunpack.c.h.b16 %v867
      %v3008 = vunpack.c.l.b16 %v868
      %v3009 = vunpack.c.h.b16 %v868
      %v3010 = vunpack.c.l.b16 %v869
      %v3011 = vunpack.c.h.b16 %v869
      %v3012 = vunpack.c.l.b16 %v870
      %v3013 = vunpack.c.h.b16 %v870
      %v3014 = vunpack.c.l.b16 %v871
      %v3015 = vunpack.c.h.b16 %v871
      %v3016 = vunpack.c.l.b16 %v872
      %v3017 = vunpack.c.h.b16 %v872
      %v3018 = vunpack.c.l.b16 %v873
      %v3019 = vunpack.c.h.b16 %v873
      %v3020 = vunpack.c.l.b16 %v874
      %v3021 = vunpack.c.h.b16 %v874
      %v3022 = vunpack.c.l.b16 %v875
      %v3023 = vunpack.c.h.b16 %v875
      %v3024 = vunpack.c.l.b16 %v876
      %v3025 = vunpack.c.h.b16 %v876
      %v3026 = vunpack.c.l.b16 %v877
      %v3027 = vunpack.c.h.b16 %v877
      %v3028 = vunpack.c.l.b16 %v878
      %v3029 = vunpack.c.h.b16 %v878
      %v3030 = vunpack.c.l.b16 %v879
      %v3031 = vunpack.c.h.b16 %v879
      %v3032 = vunpack.c.l.b16 %v880
      %v3033 = vunpack.c.h.b16 %v880
      %v3034 = vunpack.c.l.b16 %v881
      %v3035 = vunpack.c.h.b16 %v881
      %v3036 = vunpack.c.l.b16 %v882
      %v3037 = vunpack.c.h.b16 %v882
      %v3038 = vunpack.c.l.b16 %v883
      %v3039 = vunpack.c.h.b16 %v883
      %v3040 = vunpack.c.l.b16 %v884
      %v3041 = vunpack.c.h.b16 %v884
      %v3042 = vunpack.c.l.b16 %v885
      %v3043 = vunpack.c.h.b16 %v885
      %v3044 = vunpack.c.l.b16 %v886
      %v3045 = vunpack.c.h.b16 %v886
      %v3046 = vunpack.c.l.b16 %v887
      %v3047 = vunpack.c.h.b16 %v887
      %v3048 = vunpack.c.l.b16 %v888
      %v3049 = vunpack.c.h.b16 %v888
      %v3050 = vunpack.c.l.b16 %v889
      %v3051 = vunpack.c.h.b16 %v889
      %v3052 = vunpack.c.l.b16 %v890
      %v3053 = vunpack.c.h.b16 %v890
      %v3054 = vunpack.c.l.b16 %v891
      %v3055 = vunpack.c.h.b16 %v891
      %v3056 = vunpack.c.l.b16 %v892
      %v3057 = vunpack.c.h.b16 %v892
      %v3058 = vunpack.c.l.b16 %v893
      %v3059 = vunpack.c.h.b16 %v893
      %v3060 = vunpack.c.l.b16 %v894
      %v3061 = vunpack.c.h.b16 %v894
      %v3062 = vunpack.c.l.b16 %v895
      %v3063 = vunpack.c.h.b16 %v895
      %v3064 = vunpack.c.l.b16 %v896
      %v3065 = vunpack.c.h.b16 %v896
      %v3066 = vunpack.c.l.b16 %v897
      %v3067 = vunpack.c.h.b16 %v897
      %v3068 = vunpack.c.l.b16 %v898
      %v3069 = vunpack.c.h.b16 %v898
      %v3070 = vunpack.c.l.b16 %v899
      %v3071 = vunpack.c.h.b16 %v899
      %v3072 = vunpack.c.l.b16 %v900
      %v3073 = vunpack.c.h.b16 %v900
      %v3074 = vunpack.c.l.b16 %v901
      %v3075 = vunpack.c.h.b16 %v901
      %v3076 = vunpack.c.l.b16 %v902
      %v3077 = vunpack.c.h.b16 %v902
      %v3078 = vunpack.c.l.b16 %v903
      %v3079 = vunpack.c.h.b16 %v903
      %v3080 = vunpack.c.l.b16 %v904
      %v3081 = vunpack.c.h.b16 %v904
      %v3082 = vunpack.c.l.b16 %v905
      %v3083 = vunpack.c.h.b16 %v905
      %v3084 = vunpack.c.l.b16 %v906
      %v3085 = vunpack.c.h.b16 %v906
      %v3086 = vunpack.c.l.b16 %v907
      %v3087 = vunpack.c.h.b16 %v907
      %v3088 = vunpack.c.l.b16 %v908
      %v3089 = vunpack.c.h.b16 %v908
      %v3090 = vunpack.c.l.b16 %v909
      %v3091 = vunpack.c.h.b16 %v909
      %v3092 = vunpack.c.l.b16 %v910
      %v3093 = vunpack.c.h.b16 %v910
      %v3094 = vunpack.c.l.b16 %v911
      %v3095 = vunpack.c.h.b16 %v911
      %v3096 = vunpack.c.l.b16 %v912
      %v3097 = vunpack.c.h.b16 %v912
      %v3098 = vunpack.c.l.b16 %v913
      %v3099 = vunpack.c.h.b16 %v913
      %v3100 = vunpack.c.l.b16 %v914
      %v3101 = vunpack.c.h.b16 %v914
      %v3102 = vunpack.c.l.b16 %v915
      %v3103 = vunpack.c.h.b16 %v915
      %v3104 = vunpack.c.l.b16 %v916
      %v3105 = vunpack.c.h.b16 %v916
      %v3106 = vunpack.c.l.b16 %v917
      %v3107 = vunpack.c.h.b16 %v917
      %v3108 = vunpack.c.l.b16 %v918
      %v3109 = vunpack.c.h.b16 %v918
      %v3110 = vunpack.c.l.b16 %v919
      %v3111 = vunpack.c.h.b16 %v919
      %v3112 = vunpack.c.l.b16 %v920
      %v3113 = vunpack.c.h.b16 %v920
      %v3114 = vunpack.c.l.b16 %v921
      %v3115 = vunpack.c.h.b16 %v921
      %v3116 = vunpack.c.l.b16 %v922
      %v3117 = vunpack.c.h.b16 %v922
      %v3118 = vunpack.c.l.b16 %v923
      %v3119 = vunpack.c.h.b16 %v923
      %v3120 = vunpack.c.l.b16 %v924
      %v3121 = vunpack.c.h.b16 %v924
      %v3122 = vunpack.c.l.b16 %v925
      %v3123 = vunpack.c.h.b16 %v925
      %v3124 = vpack.c.b16 %v2104, %v2100
      %v3125 = vpack.c.b16 %v2105, %v2101
      %v3126 = vpack.c.b16 %v2106, %v2102
      %v3127 = vpack.c.b16 %v2107, %v2103
      %v3128 = vpack.c.b16 %v2112, %v2108
      %v3129 = vpack.c.b16 %v2113, %v2109
      %v3130 = vpack.c.b16 %v2114, %v2110
      %v3131 = vpack.c.b16 %v2115, %v2111
      %v3132 = vpack.c.b16 %v2120, %v2116
      %v3133 = vpack.c.b16 %v2121, %v2117
      %v3134 = vpack.c.b16 %v2122, %v2118
      %v3135 = vpack.c.b16 %v2123, %v2119
      %v3136 = vpack.c.b16 %v2128, %v2124
      %v3137 = vpack.c.b16 %v2129, %v2125
      %v3138 = vpack.c.b16 %v2130, %v2126
      %v3139 = vpack.c.b16 %v2131, %v2127
      %v3140 = vpack.c.b16 %v2136, %v2132
      %v3141 = vpack.c.b16 %v2137, %v2133
      %v3142 = vpack.c.b16 %v2138, %v2134
      %v3143 = vpack.c.b16 %v2139, %v2135
      %v3144 = vpack.c.b16 %v2144, %v2140
      %v3145 = vpack.c.b16 %v2145, %v2141
      %v3146 = vpack.c.b16 %v2146, %v2142
      %v3147 = vpack.c.b16 %v2147, %v2143
      %v3148 = vpack.c.b16 %v2152, %v2148
      %v3149 = vpack.c.b16 %v2153, %v2149
      %v3150 = vpack.c.b16 %v2154, %v2150
      %v3151 = vpack.c.b16 %v2155, %v2151
      %v3152 = vpack.c.b16 %v2160, %v2156
      %v3153 = vpack.c.b16 %v2161, %v2157
      %v3154 = vpack.c.b16 %v2162, %v2158
      %v3155 = vpack.c.b16 %v2163, %v2159
      %v3156 = vpack.c.b16 %v2168, %v2164
      %v3157 = vpack.c.b16 %v2169, %v2165
      %v3158 = vpack.c.b16 %v2170, %v2166
      %v3159 = vpack.c.b16 %v2171, %v2167
      %v3160 = vpack.c.b16 %v2176, %v2172
      %v3161 = vpack.c.b16 %v2177, %v2173
      %v3162 = vpack.c.b16 %v2178, %v2174
      %v3163 = vpack.c.b16 %v2179, %v2175
      %v3164 = vpack.c.b16 %v2184, %v2180
      %v3165 = vpack.c.b16 %v2185, %v2181
      %v3166 = vpack.c.b16 %v2186, %v2182
      %v3167 = vpack.c.b16 %v2187, %v2183
      %v3168 = vpack.c.b16 %v2192, %v2188
      %v3169 = vpack.c.b16 %v2193, %v2189
      %v3170 = vpack.c.b16 %v2194, %v2190
      %v3171 = vpack.c.b16 %v2195, %v2191
      %v3172 = vpack.c.b16 %v2200, %v2196
      %v3173 = vpack.c.b16 %v2201, %v2197
      %v3174 = vpack.c.b16 %v2202, %v2198
      %v3175 = vpack.c.b16 %v2203, %v2199
      %v3176 = vpack.c.b16 %v2208, %v2204
      %v3177 = vpack.c.b16 %v2209, %v2205
      %v3178 = vpack.c.b16 %v2210, %v2206
      %v3179 = vpack.c.b16 %v2211, %v2207
      %v3180 = vpack.c.b16 %v2216, %v2212
      %v3181 = vpack.c.b16 %v2217, %v2213
      %v3182 = vpack.c.b16 %v2218, %v2214
      %v3183 = vpack.c.b16 %v2219, %v2215
      %v3184 = vpack.c.b16 %v2224, %v2220
      %v3185 = vpack.c.b16 %v2225, %v2221
      %v3186 = vpack.c.b16 %v2226, %v2222
      %v3187 = vpack.c.b16 %v2227, %v2223
      %v3188 = vpack.c.b16 %v2232, %v2228
      %v3189 = vpack.c.b16 %v2233, %v2229
      %v3190 = vpack.c.b16 %v2234, %v2230
      %v3191 = vpack.c.b16 %v2235, %v2231
      %v3192 = vpack.c.b16 %v2240, %v2236
      %v3193 = vpack.c.b16 %v2241, %v2237
      %v3194 = vpack.c.b16 %v2242, %v2238
      %v3195 = vpack.c.b16 %v2243, %v2239
      %v3196 = vpack.c.b16 %v2248, %v2244
      %v3197 = vpack.c.b16 %v2249, %v2245
      %v3198 = vpack.c.b16 %v2250, %v2246
      %v3199 = vpack.c.b16 %v2251, %v2247
      %v3200 = vpack.c.b16 %v2256, %v2252
      %v3201 = vpack.c.b16 %v2257, %v2253
      %v3202 = vpack.c.b16 %v2258, %v2254
      %v3203 = vpack.c.b16 %v2259, %v2255
      %v3204 = vpack.c.b16 %v2264, %v2260
      %v3205 = vpack.c.b16 %v2265, %v2261
      %v3206 = vpack.c.b16 %v2266, %v2262
      %v3207 = vpack.c.b16 %v2267, %v2263
      %v3208 = vpack.c.b16 %v2272, %v2268
      %v3209 = vpack.c.b16 %v2273, %v2269
      %v3210 = vpack.c.b16 %v2274, %v2270
      %v3211 = vpack.c.b16 %v2275, %v2271
      %v3212 = vpack.c.b16 %v2280, %v2276
      %v3213 = vpack.c.b16 %v2281, %v2277
      %v3214 = vpack.c.b16 %v2282, %v2278
      %v3215 = vpack.c.b16 %v2283, %v2279
      %v3216 = vpack.c.b16 %v2288, %v2284
      %v3217 = vpack.c.b16 %v2289, %v2285
      %v3218 = vpack.c.b16 %v2290, %v2286
      %v3219 = vpack.c.b16 %v2291, %v2287
      %v3220 = vpack.c.b16 %v2296, %v2292
      %v3221 = vpack.c.b16 %v2297, %v2293
      %v3222 = vpack.c.b16 %v2298, %v2294
      %v3223 = vpack.c.b16 %v2299, %v2295
      %v3224 = vpack.c.b16 %v2304, %v2300
      %v3225 = vpack.c.b16 %v2305, %v2301
      %v3226 = vpack.c.b16 %v2306, %v2302
      %v3227 = vpack.c.b16 %v2307, %v2303
      %v3228 = vpack.c.b16 %v2312, %v2308
      %v3229 = vpack.c.b16 %v2313, %v2309
      %v3230 = vpack.c.b16 %v2314, %v2310
      %v3231 = vpack.c.b16 %v2315, %v2311
      %v3232 = vpack.c.b16 %v2320, %v2316
      %v3233 = vpack.c.b16 %v2321, %v2317
      %v3234 = vpack.c.b16 %v2322, %v2318
      %v3235 = vpack.c.b16 %v2323, %v2319
      %v3236 = vpack.c.b16 %v2328, %v2324
      %v3237 = vpack.c.b16 %v2329, %v2325
      %v3238 = vpack.c.b16 %v2330, %v2326
      %v3239 = vpack.c.b16 %v2331, %v2327
      %v3240 = vpack.c.b16 %v2336, %v2332
      %v3241 = vpack.c.b16 %v2337, %v2333
      %v3242 = vpack.c.b16 %v2338, %v2334
      %v3243 = vpack.c.b16 %v2339, %v2335
      %v3244 = vpack.c.b16 %v2344, %v2340
      %v3245 = vpack.c.b16 %v2345, %v2341
      %v3246 = vpack.c.b16 %v2346, %v2342
      %v3247 = vpack.c.b16 %v2347, %v2343
      %v3248 = vpack.c.b16 %v2352, %v2348
      %v3249 = vpack.c.b16 %v2353, %v2349
      %v3250 = vpack.c.b16 %v2354, %v2350
      %v3251 = vpack.c.b16 %v2355, %v2351
      %v3252 = vpack.c.b16 %v2360, %v2356
      %v3253 = vpack.c.b16 %v2361, %v2357
      %v3254 = vpack.c.b16 %v2362, %v2358
      %v3255 = vpack.c.b16 %v2363, %v2359
      %v3256 = vpack.c.b16 %v2368, %v2364
      %v3257 = vpack.c.b16 %v2369, %v2365
      %v3258 = vpack.c.b16 %v2370, %v2366
      %v3259 = vpack.c.b16 %v2371, %v2367
      %v3260 = vpack.c.b16 %v2376, %v2372
      %v3261 = vpack.c.b16 %v2377, %v2373
      %v3262 = vpack.c.b16 %v2378, %v2374
      %v3263 = vpack.c.b16 %v2379, %v2375
      %v3264 = vpack.c.b16 %v2384, %v2380
      %v3265 = vpack.c.b16 %v2385, %v2381
      %v3266 = vpack.c.b16 %v2386, %v2382
      %v3267 = vpack.c.b16 %v2387, %v2383
      %v3268 = vpack.c.b16 %v2392, %v2388
      %v3269 = vpack.c.b16 %v2393, %v2389
      %v3270 = vpack.c.b16 %v2394, %v2390
      %v3271 = vpack.c.b16 %v2395, %v2391
      %v3272 = vpack.c.b16 %v2400, %v2396
      %v3273 = vpack.c.b16 %v2401, %v2397
      %v3274 = vpack.c.b16 %v2402, %v2398
      %v3275 = vpack.c.b16 %v2403, %v2399
      %v3276 = vpack.c.b16 %v2408, %v2404
      %v3277 = vpack.c.b16 %v2409, %v2405
      %v3278 = vpack.c.b16 %v2410, %v2406
      %v3279 = vpack.c.b16 %v2411, %v2407
      %v3280 = vpack.c.b16 %v2416, %v2412
      %v3281 = vpack.c.b16 %v2417, %v2413
      %v3282 = vpack.c.b16 %v2418, %v2414
      %v3283 = vpack.c.b16 %v2419, %v2415
      %v3284 = vpack.c.b16 %v2424, %v2420
      %v3285 = vpack.c.b16 %v2425, %v2421
      %v3286 = vpack.c.b16 %v2426, %v2422
      %v3287 = vpack.c.b16 %v2427, %v2423
      %v3288 = vpack.c.b16 %v2432, %v2428
      %v3289 = vpack.c.b16 %v2433, %v2429
      %v3290 = vpack.c.b16 %v2434, %v2430
      %v3291 = vpack.c.b16 %v2435, %v2431
      %v3292 = vpack.c.b16 %v2440, %v2436
      %v3293 = vpack.c.b16 %v2441, %v2437
      %v3294 = vpack.c.b16 %v2442, %v2438
      %v3295 = vpack.c.b16 %v2443, %v2439
      %v3296 = vpack.c.b16 %v2448, %v2444
      %v3297 = vpack.c.b16 %v2449, %v2445
      %v3298 = vpack.c.b16 %v2450, %v2446
      %v3299 = vpack.c.b16 %v2451, %v2447
      %v3300 = vpack.c.b16 %v2456, %v2452
      %v3301 = vpack.c.b16 %v2457, %v2453
      %v3302 = vpack.c.b16 %v2458, %v2454
      %v3303 = vpack.c.b16 %v2459, %v2455
      %v3304 = vpack.c.b16 %v2464, %v2460
      %v3305 = vpack.c.b16 %v2465, %v2461
      %v3306 = vpack.c.b16 %v2466, %v2462
      %v3307 = vpack.c.b16 %v2467, %v2463
      %v3308 = vpack.c.b16 %v2472, %v2468
      %v3309 = vpack.c.b16 %v2473, %v2469
      %v3310 = vpack.c.b16 %v2474, %v2470
      %v3311 = vpack.c.b16 %v2475, %v2471
      %v3312 = vpack.c.b16 %v2480, %v2476
      %v3313 = vpack.c.b16 %v2481, %v2477
      %v3314 = vpack.c.b16 %v2482, %v2478
      %v3315 = vpack.c.b16 %v2483, %v2479
      %v3316 = vpack.c.b16 %v2488, %v2484
      %v3317 = vpack.c.b16 %v2489, %v2485
      %v3318 = vpack.c.b16 %v2490, %v2486
      %v3319 = vpack.c.b16 %v2491, %v2487
      %v3320 = vpack.c.b16 %v2496, %v2492
      %v3321 = vpack.c.b16 %v2497, %v2493
      %v3322 = vpack.c.b16 %v2498, %v2494
      %v3323 = vpack.c.b16 %v2499, %v2495
      %v3324 = vpack.c.b16 %v2504, %v2500
      %v3325 = vpack.c.b16 %v2505, %v2501
      %v3326 = vpack.c.b16 %v2506, %v2502
      %v3327 = vpack.c.b16 %v2507, %v2503
      %v3328 = vpack.c.b16 %v2512, %v2508
      %v3329 = vpack.c.b16 %v2513, %v2509
      %v3330 = vpack.c.b16 %v2514, %v2510
      %v3331 = vpack.c.b16 %v2515, %v2511
      %v3332 = vpack.c.b16 %v2520, %v2516
      %v3333 = vpack.c.b16 %v2521, %v2517
      %v3334 = vpack.c.b16 %v2522, %v2518
      %v3335 = vpack.c.b16 %v2523, %v2519
      %v3336 = vpack.c.b16 %v2528, %v2524
      %v3337 = vpack.c.b16 %v2529, %v2525
      %v3338 = vpack.c.b16 %v2530, %v2526
      %v3339 = vpack.c.b16 %v2531, %v2527
      %v3340 = vpack.c.b16 %v2536, %v2532
      %v3341 = vpack.c.b16 %v2537, %v2533
      %v3342 = vpack.c.b16 %v2538, %v2534
      %v3343 = vpack.c.b16 %v2539, %v2535
      %v3344 = vpack.c.b16 %v2544, %v2540
      %v3345 = vpack.c.b16 %v2545, %v2541
      %v3346 = vpack.c.b16 %v2546, %v2542
      %v3347 = vpack.c.b16 %v2547, %v2543
      %v3348 = vpack.c.b16 %v2552, %v2548
      %v3349 = vpack.c.b16 %v2553, %v2549
      %v3350 = vpack.c.b16 %v2554, %v2550
      %v3351 = vpack.c.b16 %v2555, %v2551
      %v3352 = vpack.c.b16 %v2560, %v2556
      %v3353 = vpack.c.b16 %v2561, %v2557
      %v3354 = vpack.c.b16 %v2562, %v2558
      %v3355 = vpack.c.b16 %v2563, %v2559
      %v3356 = vpack.c.b16 %v2568, %v2564
      %v3357 = vpack.c.b16 %v2569, %v2565
      %v3358 = vpack.c.b16 %v2570, %v2566
      %v3359 = vpack.c.b16 %v2571, %v2567
      %v3360 = vpack.c.b16 %v2576, %v2572
      %v3361 = vpack.c.b16 %v2577, %v2573
      %v3362 = vpack.c.b16 %v2578, %v2574
      %v3363 = vpack.c.b16 %v2579, %v2575
      %v3364 = vpack.c.b16 %v2584, %v2580
      %v3365 = vpack.c.b16 %v2585, %v2581
      %v3366 = vpack.c.b16 %v2586, %v2582
      %v3367 = vpack.c.b16 %v2587, %v2583
      %v3368 = vpack.c.b16 %v2592, %v2588
      %v3369 = vpack.c.b16 %v2593, %v2589
      %v3370 = vpack.c.b16 %v2594, %v2590
      %v3371 = vpack.c.b16 %v2595, %v2591
      %v3372 = vpack.c.b16 %v2600, %v2596
      %v3373 = vpack.c.b16 %v2601, %v2597
      %v3374 = vpack.c.b16 %v2602, %v2598
      %v3375 = vpack.c.b16 %v2603, %v2599
      %v3376 = vpack.c.b16 %v2608, %v2604
      %v3377 = vpack.c.b16 %v2609, %v2605
      %v3378 = vpack.c.b16 %v2610, %v2606
      %v3379 = vpack.c.b16 %v2611, %v2607
      %v3380 = vpack.c.b16 %v2616, %v2612
      %v3381 = vpack.c.b16 %v2617, %v2613
      %v3382 = vpack.c.b16 %v2618, %v2614
      %v3383 = vpack.c.b16 %v2619, %v2615
      %v3384 = vpack.c.b16 %v2624, %v2620
      %v3385 = vpack.c.b16 %v2625, %v2621
      %v3386 = vpack.c.b16 %v2626, %v2622
      %v3387 = vpack.c.b16 %v2627, %v2623
      %v3388 = vpack.c.b16 %v2632, %v2628
      %v3389 = vpack.c.b16 %v2633, %v2629
      %v3390 = vpack.c.b16 %v2634, %v2630
      %v3391 = vpack.c.b16 %v2635, %v2631
      %v3392 = vpack.c.b16 %v2640, %v2636
      %v3393 = vpack.c.b16 %v2641, %v2637
      %v3394 = vpack.c.b16 %v2642, %v2638
      %v3395 = vpack.c.b16 %v2643, %v2639
      %v3396 = vpack.c.b16 %v2648, %v2644
      %v3397 = vpack.c.b16 %v2649, %v2645
      %v3398 = vpack.c.b16 %v2650, %v2646
      %v3399 = vpack.c.b16 %v2651, %v2647
      %v3400 = vpack.c.b16 %v2656, %v2652
      %v3401 = vpack.c.b16 %v2657, %v2653
      %v3402 = vpack.c.b16 %v2658, %v2654
      %v3403 = vpack.c.b16 %v2659, %v2655
      %v3404 = vpack.c.b16 %v2664, %v2660
      %v3405 = vpack.c.b16 %v2665, %v2661
      %v3406 = vpack.c.b16 %v2666, %v2662
      %v3407 = vpack.c.b16 %v2667, %v2663
      %v3408 = vpack.c.b16 %v2672, %v2668
      %v3409 = vpack.c.b16 %v2673, %v2669
      %v3410 = vpack.c.b16 %v2674, %v2670
      %v3411 = vpack.c.b16 %v2675, %v2671
      %v3412 = vpack.c.b16 %v2680, %v2676
      %v3413 = vpack.c.b16 %v2681, %v2677
      %v3414 = vpack.c.b16 %v2682, %v2678
      %v3415 = vpack.c.b16 %v2683, %v2679
      %v3416 = vpack.c.b16 %v2688, %v2684
      %v3417 = vpack.c.b16 %v2689, %v2685
      %v3418 = vpack.c.b16 %v2690, %v2686
      %v3419 = vpack.c.b16 %v2691, %v2687
      %v3420 = vpack.c.b16 %v2696, %v2692
      %v3421 = vpack.c.b16 %v2697, %v2693
      %v3422 = vpack.c.b16 %v2698, %v2694
      %v3423 = vpack.c.b16 %v2699, %v2695
      %v3424 = vpack.c.b16 %v2704, %v2700
      %v3425 = vpack.c.b16 %v2705, %v2701
      %v3426 = vpack.c.b16 %v2706, %v2702
      %v3427 = vpack.c.b16 %v2707, %v2703
      %v3428 = vpack.c.b16 %v2712, %v2708
      %v3429 = vpack.c.b16 %v2713, %v2709
      %v3430 = vpack.c.b16 %v2714, %v2710
      %v3431 = vpack.c.b16 %v2715, %v2711
      %v3432 = vpack.c.b16 %v2720, %v2716
      %v3433 = vpack.c.b16 %v2721, %v2717
      %v3434 = vpack.c.b16 %v2722, %v2718
      %v3435 = vpack.c.b16 %v2723, %v2719
      %v3436 = vpack.c.b16 %v2728, %v2724
      %v3437 = vpack.c.b16 %v2729, %v2725
      %v3438 = vpack.c.b16 %v2730, %v2726
      %v3439 = vpack.c.b16 %v2731, %v2727
      %v3440 = vpack.c.b16 %v2736, %v2732
      %v3441 = vpack.c.b16 %v2737, %v2733
      %v3442 = vpack.c.b16 %v2738, %v2734
      %v3443 = vpack.c.b16 %v2739, %v2735
      %v3444 = vpack.c.b16 %v2744, %v2740
      %v3445 = vpack.c.b16 %v2745, %v2741
      %v3446 = vpack.c.b16 %v2746, %v2742
      %v3447 = vpack.c.b16 %v2747, %v2743
      %v3448 = vpack.c.b16 %v2752, %v2748
      %v3449 = vpack.c.b16 %v2753, %v2749
      %v3450 = vpack.c.b16 %v2754, %v2750
      %v3451 = vpack.c.b16 %v2755, %v2751
      %v3452 = vpack.c.b16 %v2760, %v2756
      %v3453 = vpack.c.b16 %v2761, %v2757
      %v3454 = vpack.c.b16 %v2762, %v2758
      %v3455 = vpack.c.b16 %v2763, %v2759
      %v3456 = vpack.c.b16 %v2768, %v2764
      %v3457 = vpack.c.b16 %v2769, %v2765
      %v3458 = vpack.c.b16 %v2770, %v2766
      %v3459 = vpack.c.b16 %v2771, %v2767
      %v3460 = vpack.c.b16 %v2776, %v2772
      %v3461 = vpack.c.b16 %v2777, %v2773
      %v3462 = vpack.c.b16 %v2778, %v2774
      %v3463 = vpack.c.b16 %v2779, %v2775
      %v3464 = vpack.c.b16 %v2784, %v2780
      %v3465 = vpack.c.b16 %v2785, %v2781
      %v3466 = vpack.c.b16 %v2786, %v2782
      %v3467 = vpack.c.b16 %v2787, %v2783
      %v3468 = vpack.c.b16 %v2792, %v2788
      %v3469 = vpack.c.b16 %v2793, %v2789
      %v3470 = vpack.c.b16 %v2794, %v2790
      %v3471 = vpack.c.b16 %v2795, %v2791
      %v3472 = vpack.c.b16 %v2800, %v2796
      %v3473 = vpack.c.b16 %v2801, %v2797
      %v3474 = vpack.c.b16 %v2802, %v2798
      %v3475 = vpack.c.b16 %v2803, %v2799
      %v3476 = vpack.c.b16 %v2808, %v2804
      %v3477 = vpack.c.b16 %v2809, %v2805
      %v3478 = vpack.c.b16 %v2810, %v2806
      %v3479 = vpack.c.b16 %v2811, %v2807
      %v3480 = vpack.c.b16 %v2816, %v2812
      %v3481 = vpack.c.b16 %v2817, %v2813
      %v3482 = vpack.c.b16 %v2818, %v2814
      %v3483 = vpack.c.b16 %v2819, %v2815
      %v3484 = vpack.c.b16 %v2824, %v2820
      %v3485 = vpack.c.b16 %v2825, %v2821
      %v3486 = vpack.c.b16 %v2826, %v2822
      %v3487 = vpack.c.b16 %v2827, %v2823
      %v3488 = vpack.c.b16 %v2832, %v2828
      %v3489 = vpack.c.b16 %v2833, %v2829
      %v3490 = vpack.c.b16 %v2834, %v2830
      %v3491 = vpack.c.b16 %v2835, %v2831
      %v3492 = vpack.c.b16 %v2840, %v2836
      %v3493 = vpack.c.b16 %v2841, %v2837
      %v3494 = vpack.c.b16 %v2842, %v2838
      %v3495 = vpack.c.b16 %v2843, %v2839
      %v3496 = vpack.c.b16 %v2848, %v2844
      %v3497 = vpack.c.b16 %v2849, %v2845
      %v3498 = vpack.c.b16 %v2850, %v2846
      %v3499 = vpack.c.b16 %v2851, %v2847
      %v3500 = vpack.c.b16 %v2856, %v2852
      %v3501 = vpack.c.b16 %v2857, %v2853
      %v3502 = vpack.c.b16 %v2858, %v2854
      %v3503 = vpack.c.b16 %v2859, %v2855
      %v3504 = vpack.c.b16 %v2864, %v2860
      %v3505 = vpack.c.b16 %v2865, %v2861
      %v3506 = vpack.c.b16 %v2866, %v2862
      %v3507 = vpack.c.b16 %v2867, %v2863
      %v3508 = vpack.c.b16 %v2872, %v2868
      %v3509 = vpack.c.b16 %v2873, %v2869
      %v3510 = vpack.c.b16 %v2874, %v2870
      %v3511 = vpack.c.b16 %v2875, %v2871
      %v3512 = vpack.c.b16 %v2880, %v2876
      %v3513 = vpack.c.b16 %v2881, %v2877
      %v3514 = vpack.c.b16 %v2882, %v2878
      %v3515 = vpack.c.b16 %v2883, %v2879
      %v3516 = vpack.c.b16 %v2888, %v2884
      %v3517 = vpack.c.b16 %v2889, %v2885
      %v3518 = vpack.c.b16 %v2890, %v2886
      %v3519 = vpack.c.b16 %v2891, %v2887
      %v3520 = vpack.c.b16 %v2896, %v2892
      %v3521 = vpack.c.b16 %v2897, %v2893
      %v3522 = vpack.c.b16 %v2898, %v2894
      %v3523 = vpack.c.b16 %v2899, %v2895
      %v3524 = vpack.c.b16 %v2904, %v2900
      %v3525 = vpack.c.b16 %v2905, %v2901
      %v3526 = vpack.c.b16 %v2906, %v2902
      %v3527 = vpack.c.b16 %v2907, %v2903
      %v3528 = vpack.c.b16 %v2912, %v2908
      %v3529 = vpack.c.b16 %v2913, %v2909
      %v3530 = vpack.c.b16 %v2914, %v2910
      %v3531 = vpack.c.b16 %v2915, %v2911
      %v3532 = vpack.c.b16 %v2920, %v2916
      %v3533 = vpack.c.b16 %v2921, %v2917
      %v3534 = vpack.c.b16 %v2922, %v2918
      %v3535 = vpack.c.b16 %v2923, %v2919
      %v3536 = vpack.c.b16 %v2928, %v2924
      %v3537 = vpack.c.b16 %v2929, %v2925
      %v3538 = vpack.c.b16 %v2930, %v2926
      %v3539 = vpack.c.b16 %v2931, %v2927
      %v3540 = vpack.c.b16 %v2936, %v2932
      %v3541 = vpack.c.b16 %v2937, %v2933
      %v3542 = vpack.c.b16 %v2938, %v2934
      %v3543 = vpack.c.b16 %v2939, %v2935
      %v3544 = vpack.c.b16 %v2944, %v2940
      %v3545 = vpack.c.b16 %v2945, %v2941
      %v3546 = vpack.c.b16 %v2946, %v2942
      %v3547 = vpack.c.b16 %v2947, %v2943
      %v3548 = vpack.c.b16 %v2952, %v2948
      %v3549 = vpack.c.b16 %v2953, %v2949
      %v3550 = vpack.c.b16 %v2954, %v2950
      %v3551 = vpack.c.b16 %v2955, %v2951
      %v3552 = vpack.c.b16 %v2960, %v2956
      %v3553 = vpack.c.b16 %v2961, %v2957
      %v3554 = vpack.c.b16 %v2962, %v2958
      %v3555 = vpack.c.b16 %v2963, %v2959
      %v3556 = vpack.c.b16 %v2968, %v2964
      %v3557 = vpack.c.b16 %v2969, %v2965
      %v3558 = vpack.c.b16 %v2970, %v2966
      %v3559 = vpack.c.b16 %v2971, %v2967
      %v3560 = vpack.c.b16 %v2976, %v2972
      %v3561 = vpack.c.b16 %v2977, %v2973
      %v3562 = vpack.c.b16 %v2978, %v2974
      %v3563 = vpack.c.b16 %v2979, %v2975
      %v3564 = vpack.c.b16 %v2984, %v2980
      %v3565 = vpack.c.b16 %v2985, %v2981
      %v3566 = vpack.c.b16 %v2986, %v2982
      %v3567 = vpack.c.b16 %v2987, %v2983
      %v3568 = vpack.c.b16 %v2992, %v2988
      %v3569 = vpack.c.b16 %v2993, %v2989
      %v3570 = vpack.c.b16 %v2994, %v2990
      %v3571 = vpack.c.b16 %v2995, %v2991
      %v3572 = vpack.c.b16 %v3000, %v2996
      %v3573 = vpack.c.b16 %v3001, %v2997
      %v3574 = vpack.c.b16 %v3002, %v2998
      %v3575 = vpack.c.b16 %v3003, %v2999
      %v3576 = vpack.c.b16 %v3008, %v3004
      %v3577 = vpack.c.b16 %v3009, %v3005
      %v3578 = vpack.c.b16 %v3010, %v3006
      %v3579 = vpack.c.b16 %v3011, %v3007
      %v3580 = vpack.c.b16 %v3016, %v3012
      %v3581 = vpack.c.b16 %v3017, %v3013
      %v3582 = vpack.c.b16 %v3018, %v3014
      %v3583 = vpack.c.b16 %v3019, %v3015
      %v3584 = vpack.c.b16 %v3024, %v3020
      %v3585 = vpack.c.b16 %v3025, %v3021
      %v3586 = vpack.c.b16 %v3026, %v3022
      %v3587 = vpack.c.b16 %v3027, %v3023
      %v3588 = vpack.c.b16 %v3032, %v3028
      %v3589 = vpack.c.b16 %v3033, %v3029
      %v3590 = vpack.c.b16 %v3034, %v3030
      %v3591 = vpack.c.b16 %v3035, %v3031
      %v3592 = vpack.c.b16 %v3040, %v3036
      %v3593 = vpack.c.b16 %v3041, %v3037
      %v3594 = vpack.c.b16 %v3042, %v3038
      %v3595 = vpack.c.b16 %v3043, %v3039
      %v3596 = vpack.c.b16 %v3048, %v3044
      %v3597 = vpack.c.b16 %v3049, %v3045
      %v3598 = vpack.c.b16 %v3050, %v3046
      %v3599 = vpack.c.b16 %v3051, %v3047
      %v3600 = vpack.c.b16 %v3056, %v3052
      %v3601 = vpack.c.b16 %v3057, %v3053
      %v3602 = vpack.c.b16 %v3058, %v3054
      %v3603 = vpack.c.b16 %v3059, %v3055
      %v3604 = vpack.c.b16 %v3064, %v3060
      %v3605 = vpack.c.b16 %v3065, %v3061
      %v3606 = vpack.c.b16 %v3066, %v3062
      %v3607 = vpack.c.b16 %v3067, %v3063
      %v3608 = vpack.c.b16 %v3072, %v3068
      %v3609 = vpack.c.b16 %v3073, %v3069
      %v3610 = vpack.c.b16 %v3074, %v3070
      %v3611 = vpack.c.b16 %v3075, %v3071
      %v3612 = vpack.c.b16 %v3080, %v3076
      %v3613 = vpack.c.b16 %v3081, %v3077
      %v3614 = vpack.c.b16 %v3082, %v3078
      %v3615 = vpack.c.b16 %v3083, %v3079
      %v3616 = vpack.c.b16 %v3088, %v3084
      %v3617 = vpack.c.b16 %v3089, %v3085
      %v3618 = vpack.c.b16 %v3090, %v3086
      %v3619 = vpack.c.b16 %v3091, %v3087
      %v3620 = vpack.c.b16 %v3096, %v3092
      %v3621 = vpack.c.b16 %v3097, %v3093
      %v3622 = vpack.c.b16 %v3098, %v3094
      %v3623 = vpack.c.b16 %v3099, %v3095
      %v3624 = vpack.c.b16 %v3104, %v3100
      %v3625 = vpack.c.b16 %v3105, %v3101
      %v3626 = vpack.c.b16 %v3106, %v3102
      %v3627 = vpack.c.b16 %v3107, %v3103
      %v3628 = vpack.c.b16 %v3112, %v3108
      %v3629 = vpack.c.b16 %v3113, %v3109
      %v3630 = vpack.c.b16 %v3114, %v3110
      %v3631 = vpack.c.b16 %v3115, %v3111
      %v3632 = vpack.c.b16 %v3120, %v3116
      %v3633 = vpack.c.b16 %v3121, %v3117
      %v3634 = vpack.c.b16 %v3122, %v3118
      %v3635 = vpack.c.b16 %v3123, %v3119
      %4148 = vmatprep.subr.bf16.mxu0 %v3125
      %4149 = vmatpush1.bf16.msra.mxu0 %v3124
      %4150 = vmatprep.subr.bf16.mxu0 %v3129
      %4151 = vmatpush1.bf16.msra.mxu0 %v3128
      %4152 = vmatprep.subr.bf16.mxu0 %v3133
      %4153 = vmatpush1.bf16.msra.mxu0 %v3132
      %4154 = vmatprep.subr.bf16.mxu0 %v3137
      %4155 = vmatpush1.bf16.msra.mxu0 %v3136
      %4156 = vmatprep.subr.bf16.mxu0 %v3141
      %4157 = vmatpush1.bf16.msra.mxu0 %v3140
      %4158 = vmatprep.subr.bf16.mxu0 %v3145
      %4159 = vmatpush1.bf16.msra.mxu0 %v3144
      %4160 = vmatprep.subr.bf16.mxu0 %v3149
      %4161 = vmatpush1.bf16.msra.mxu0 %v3148
      %4162 = vmatprep.subr.bf16.mxu0 %v3153
      %4163 = vmatpush1.bf16.msra.mxu0 %v3152
      %4164 = vmatprep.subr.bf16.mxu0 %v3157
      %4165 = vmatpush1.bf16.msra.mxu0 %v3156
      %4166 = vmatprep.subr.bf16.mxu0 %v3161
      %4167 = vmatpush1.bf16.msra.mxu0 %v3160
      %4168 = vmatprep.subr.bf16.mxu0 %v3165
      %4169 = vmatpush1.bf16.msra.mxu0 %v3164
      %4170 = vmatprep.subr.bf16.mxu0 %v3169
      %4171 = vmatpush1.bf16.msra.mxu0 %v3168
      %4172 = vmatprep.subr.bf16.mxu0 %v3173
      %4173 = vmatpush1.bf16.msra.mxu0 %v3172
      %4174 = vmatprep.subr.bf16.mxu0 %v3177
      %4175 = vmatpush1.bf16.msra.mxu0 %v3176
      %4176 = vmatprep.subr.bf16.mxu0 %v3181
      %4177 = vmatpush1.bf16.msra.mxu0 %v3180
      %4178 = vmatprep.subr.bf16.mxu0 %v3185
      %4179 = vmatpush1.bf16.msra.mxu0 %v3184
      %4180 = vmatprep.mubr.bf16.mxu0 %v1333
      %4181 = vmatmul.mubr.bf16.gmra.mrb[0].mxu0 %v1332
      %v4182 = vpop.f32.mrb[0].mxu0
      %v4183 = vadd.f32 %v931, %v4182
      %v4184 = vpop.f32.mrb[0].mxu0
      %v4185 = vadd.f32 %v935, %v4184
      %v4186 = vpop.f32.mrb[0].mxu0
      %v4187 = vadd.f32 %v931, %v4186
      %v4188 = vpop.f32.mrb[0].mxu0
      %v4189 = vadd.f32 %v935, %v4188
      %4190 = vmatprep.mubr.bf16.mxu0 %v1349
      %4191 = vmatmul.mubr.bf16.gmra.mrb[0].mxu0 %v1348
      %v4192 = vpop.f32.mrb[0].mxu0
      %v4193 = vadd.f32 %v931, %v4192
      %v4194 = vpop.f32.mrb[0].mxu0
      %v4195 = vadd.f32 %v935, %v4194
      %v4196 = vpop.f32.mrb[0].mxu0
      %v4197 = vadd.f32 %v931, %v4196
      %v4198 = vpop.f32.mrb[0].mxu0
      %v4199 = vadd.f32 %v935, %v4198
      %4200 = vmatprep.mubr.bf16.mxu0 %v1365
      %4201 = vmatmul.mubr.bf16.gmra.mrb[0].mxu0 %v1364
      %v4202 = vpop.f32.mrb[0].mxu0
      %v4203 = vadd.f32 %v931, %v4202
      %v4204 = vpop.f32.mrb[0].mxu0
      %v4205 = vadd.f32 %v935, %v4204
      %v4206 = vpop.f32.mrb[0].mxu0
      %v4207 = vadd.f32 %v931, %v4206
      %v4208 = vpop.f32.mrb[0].mxu0
      %v4209 = vadd.f32 %v935, %v4208
      %4210 = vmatprep.mubr.bf16.mxu0 %v1381
      %4211 = vmatmul.mubr.bf16.gmra.mrb[0].mxu0 %v1380
      %v4212 = vpop.f32.mrb[0].mxu0
      %v4213 = vadd.f32 %v931, %v4212
      %v4214 = vpop.f32.mrb[0].mxu0
      %v4215 = vadd.f32 %v935, %v4214
      %v4216 = vpop.f32.mrb[0].mxu0
      %v4217 = vadd.f32 %v931, %v4216
      %v4218 = vpop.f32.mrb[0].mxu0
      %v4219 = vadd.f32 %v935, %v4218
      %4220 = vmatprep.mubr.bf16.mxu0 %v1397
      %4221 = vmatmul.mubr.bf16.gmra.mrb[0].mxu0 %v1396
      %v4222 = vpop.f32.mrb[0].mxu0
      %v4223 = vadd.f32 %v931, %v4222
      %v4224 = vpop.f32.mrb[0].mxu0
      %v4225 = vadd.f32 %v935, %v4224
      %v4226 = vpop.f32.mrb[0].mxu0
      %v4227 = vadd.f32 %v931, %v4226
      %v4228 = vpop.f32.mrb[0].mxu0
      %v4229 = vadd.f32 %v935, %v4228
      %4230 = vmatprep.mubr.bf16.mxu0 %v1413
      %4231 = vmatmul.mubr.bf16.gmra.mrb[0].mxu0 %v1412
      %v4232 = vpop.f32.mrb[0].mxu0
      %v4233 = vadd.f32 %v931, %v4232
      %v4234 = vpop.f32.mrb[0].mxu0
      %v4235 = vadd.f32 %v935, %v4234
      %v4236 = vpop.f32.mrb[0].mxu0
      %v4237 = vadd.f32 %v931, %v4236
      %v4238 = vpop.f32.mrb[0].mxu0
      %v4239 = vadd.f32 %v935, %v4238
      %4240 = vmatprep.mubr.bf16.mxu0 %v1429
      %4241 = vmatmul.mubr.bf16.gmra.mrb[0].mxu0 %v1428
      %v4242 = vpop.f32.mrb[0].mxu0
      %v4243 = vadd.f32 %v931, %v4242
      %v4244 = vpop.f32.mrb[0].mxu0
      %v4245 = vadd.f32 %v935, %v4244
      %v4246 = vpop.f32.mrb[0].mxu0
      %v4247 = vadd.f32 %v931, %v4246
      %v4248 = vpop.f32.mrb[0].mxu0
      %v4249 = vadd.f32 %v935, %v4248
      %4250 = vmatprep.mubr.bf16.mxu0 %v1445
      %4251 = vmatmul.mubr.bf16.gmra.mrb[0].mxu0 %v1444
      %v4252 = vpop.f32.mrb[0].mxu0
      %v4253 = vadd.f32 %v931, %v4252
      %v4254 = vpop.f32.mrb[0].mxu0
      %v4255 = vadd.f32 %v935, %v4254
      %v4256 = vpop.f32.mrb[0].mxu0
      %v4257 = vadd.f32 %v931, %v4256
      %v4258 = vpop.f32.mrb[0].mxu0
      %v4259 = vadd.f32 %v935, %v4258
      %4260 = vdwg.mxu0
      %4261 = vmatprep.subr.bf16.mxu0 %v3189
      %4262 = vmatpush1.bf16.msra.mxu0 %v3188
      %4263 = vmatprep.subr.bf16.mxu0 %v3193
      %4264 = vmatpush1.bf16.msra.mxu0 %v3192
      %4265 = vmatprep.subr.bf16.mxu0 %v3197
      %4266 = vmatpush1.bf16.msra.mxu0 %v3196
      %4267 = vmatprep.subr.bf16.mxu0 %v3201
      %4268 = vmatpush1.bf16.msra.mxu0 %v3200
      %4269 = vmatprep.subr.bf16.mxu0 %v3205
      %4270 = vmatpush1.bf16.msra.mxu0 %v3204
      %4271 = vmatprep.subr.bf16.mxu0 %v3209
      %4272 = vmatpush1.bf16.msra.mxu0 %v3208
      %4273 = vmatprep.subr.bf16.mxu0 %v3213
      %4274 = vmatpush1.bf16.msra.mxu0 %v3212
      %4275 = vmatprep.subr.bf16.mxu0 %v3217
      %4276 = vmatpush1.bf16.msra.mxu0 %v3216
      %4277 = vmatprep.subr.bf16.mxu0 %v3221
      %4278 = vmatpush1.bf16.msra.mxu0 %v3220
      %4279 = vmatprep.subr.bf16.mxu0 %v3225
      %4280 = vmatpush1.bf16.msra.mxu0 %v3224
      %4281 = vmatprep.subr.bf16.mxu0 %v3229
      %4282 = vmatpush1.bf16.msra.mxu0 %v3228
      %4283 = vmatprep.subr.bf16.mxu0 %v3233
      %4284 = vmatpush1.bf16.msra.mxu0 %v3232
      %4285 = vmatprep.subr.bf16.mxu0 %v3237
      %4286 = vmatpush1.bf16.msra.mxu0 %v3236
      %4287 = vmatprep.subr.bf16.mxu0 %v3241
      %4288 = vmatpush1.bf16.msra.mxu0 %v3240
      %4289 = vmatprep.subr.bf16.mxu0 %v3245
      %4290 = vmatpush1.bf16.msra.mxu0 %v3244
      %4291 = vmatprep.subr.bf16.mxu0 %v3249
      %4292 = vmatpush1.bf16.msra.mxu0 %v3248
      %4293 = vmatprep.mubr.bf16.mxu0 %v1335
      %4294 = vmatmul.mubr.bf16.gmra.mrb[0].mxu0 %v1334
      %v4295 = vpop.f32.mrb[0].mxu0
      %v4296 = vadd.f32 %v4183, %v4295
      %v4297 = vpop.f32.mrb[0].mxu0
      %v4298 = vadd.f32 %v4185, %v4297
      %v4299 = vpop.f32.mrb[0].mxu0
      %v4300 = vadd.f32 %v4187, %v4299
      %v4301 = vpop.f32.mrb[0].mxu0
      %v4302 = vadd.f32 %v4189, %v4301
      %4303 = vmatprep.mubr.bf16.mxu0 %v1351
      %4304 = vmatmul.mubr.bf16.gmra.mrb[0].mxu0 %v1350
      %v4305 = vpop.f32.mrb[0].mxu0
      %v4306 = vadd.f32 %v4193, %v4305
      %v4307 = vpop.f32.mrb[0].mxu0
      %v4308 = vadd.f32 %v4195, %v4307
      %v4309 = vpop.f32.mrb[0].mxu0
      %v4310 = vadd.f32 %v4197, %v4309
      %v4311 = vpop.f32.mrb[0].mxu0
      %v4312 = vadd.f32 %v4199, %v4311
      %4313 = vmatprep.mubr.bf16.mxu0 %v1367
      %4314 = vmatmul.mubr.bf16.gmra.mrb[0].mxu0 %v1366
      %v4315 = vpop.f32.mrb[0].mxu0
      %v4316 = vadd.f32 %v4203, %v4315
      %v4317 = vpop.f32.mrb[0].mxu0
      %v4318 = vadd.f32 %v4205, %v4317
      %v4319 = vpop.f32.mrb[0].mxu0
      %v4320 = vadd.f32 %v4207, %v4319
      %v4321 = vpop.f32.mrb[0].mxu0
      %v4322 = vadd.f32 %v4209, %v4321
      %4323 = vmatprep.mubr.bf16.mxu0 %v1383
      %4324 = vmatmul.mubr.bf16.gmra.mrb[0].mxu0 %v1382
      %v4325 = vpop.f32.mrb[0].mxu0
      %v4326 = vadd.f32 %v4213, %v4325
      %v4327 = vpop.f32.mrb[0].mxu0
      %v4328 = vadd.f32 %v4215, %v4327
      %v4329 = vpop.f32.mrb[0].mxu0
      %v4330 = vadd.f32 %v4217, %v4329
      %v4331 = vpop.f32.mrb[0].mxu0
      %v4332 = vadd.f32 %v4219, %v4331
      %4333 = vmatprep.mubr.bf16.mxu0 %v1399
      %4334 = vmatmul.mubr.bf16.gmra.mrb[0].mxu0 %v1398
      %v4335 = vpop.f32.mrb[0].mxu0
      %v4336 = vadd.f32 %v4223, %v4335
      %v4337 = vpop.f32.mrb[0].mxu0
      %v4338 = vadd.f32 %v4225, %v4337
      %v4339 = vpop.f32.mrb[0].mxu0
      %v4340 = vadd.f32 %v4227, %v4339
      %v4341 = vpop.f32.mrb[0].mxu0
      %v4342 = vadd.f32 %v4229, %v4341
      %4343 = vmatprep.mubr.bf16.mxu0 %v1415
      %4344 = vmatmul.mubr.bf16.gmra.mrb[0].mxu0 %v1414
      %v4345 = vpop.f32.mrb[0].mxu0
      %v4346 = vadd.f32 %v4233, %v4345
      %v4347 = vpop.f32.mrb[0].mxu0
      %v4348 = vadd.f32 %v4235, %v4347
      %v4349 = vpop.f32.mrb[0].mxu0
      %v4350 = vadd.f32 %v4237, %v4349
      %v4351 = vpop.f32.mrb[0].mxu0
      %v4352 = vadd.f32 %v4239, %v4351
      %4353 = vmatprep.mubr.bf16.mxu0 %v1431
      %4354 = vmatmul.mubr.bf16.gmra.mrb[0].mxu0 %v1430
      %v4355 = vpop.f32.mrb[0].mxu0
      %v4356 = vadd.f32 %v4243, %v4355
      %v4357 = vpop.f32.mrb[0].mxu0
      %v4358 = vadd.f32 %v4245, %v4357
      %v4359 = vpop.f32.mrb[0].mxu0
      %v4360 = vadd.f32 %v4247, %v4359
      %v4361 = vpop.f32.mrb[0].mxu0
      %v4362 = vadd.f32 %v4249, %v4361
      %4363 = vmatprep.mubr.bf16.mxu0 %v1447
      %4364 = vmatmul.mubr.bf16.gmra.mrb[0].mxu0 %v1446
      %v4365 = vpop.f32.mrb[0].mxu0
      %v4366 = vadd.f32 %v4253, %v4365
      %v4367 = vpop.f32.mrb[0].mxu0
      %v4368 = vadd.f32 %v4255, %v4367
      %v4369 = vpop.f32.mrb[0].mxu0
      %v4370 = vadd.f32 %v4257, %v4369
      %v4371 = vpop.f32.mrb[0].mxu0
      %v4372 = vadd.f32 %v4259, %v4371
      %4373 = vdwg.mxu0
      %4374 = vmatprep.subr.bf16.mxu0 %v3253
      %4375 = vmatpush1.bf16.msra.mxu0 %v3252
      %4376 = vmatprep.subr.bf16.mxu0 %v3257
      %4377 = vmatpush1.bf16.msra.mxu0 %v3256
      %4378 = vmatprep.subr.bf16.mxu0 %v3261
      %4379 = vmatpush1.bf16.msra.mxu0 %v3260
      %4380 = vmatprep.subr.bf16.mxu0 %v3265
      %4381 = vmatpush1.bf16.msra.mxu0 %v3264
      %4382 = vmatprep.subr.bf16.mxu0 %v3269
      %4383 = vmatpush1.bf16.msra.mxu0 %v3268
      %4384 = vmatprep.subr.bf16.mxu0 %v3273
      %4385 = vmatpush1.bf16.msra.mxu0 %v3272
      %4386 = vmatprep.subr.bf16.mxu0 %v3277
      %4387 = vmatpush1.bf16.msra.mxu0 %v3276
      %4388 = vmatprep.subr.bf16.mxu0 %v3281
      %4389 = vmatpush1.bf16.msra.mxu0 %v3280
      %4390 = vmatprep.subr.bf16.mxu0 %v3285
      %4391 = vmatpush1.bf16.msra.mxu0 %v3284
      %4392 = vmatprep.subr.bf16.mxu0 %v3289
      %4393 = vmatpush1.bf16.msra.mxu0 %v3288
      %4394 = vmatprep.subr.bf16.mxu0 %v3293
      %4395 = vmatpush1.bf16.msra.mxu0 %v3292
      %4396 = vmatprep.subr.bf16.mxu0 %v3297
      %4397 = vmatpush1.bf16.msra.mxu0 %v3296
      %4398 = vmatprep.subr.bf16.mxu0 %v3301
      %4399 = vmatpush1.bf16.msra.mxu0 %v3300
      %4400 = vmatprep.subr.bf16.mxu0 %v3305
      %4401 = vmatpush1.bf16.msra.mxu0 %v3304
      %4402 = vmatprep.subr.bf16.mxu0 %v3309
      %4403 = vmatpush1.bf16.msra.mxu0 %v3308
      %4404 = vmatprep.subr.bf16.mxu0 %v3313
      %4405 = vmatpush1.bf16.msra.mxu0 %v3312
      %4406 = vmatprep.mubr.bf16.mxu0 %v1337
      %4407 = vmatmul.mubr.bf16.gmra.mrb[0].mxu0 %v1336
      %v4408 = vpop.f32.mrb[0].mxu0
      %v4409 = vadd.f32 %v4296, %v4408
      %v4410 = vpop.f32.mrb[0].mxu0
      %v4411 = vadd.f32 %v4298, %v4410
      %v4412 = vpop.f32.mrb[0].mxu0
      %v4413 = vadd.f32 %v4300, %v4412
      %v4414 = vpop.f32.mrb[0].mxu0
      %v4415 = vadd.f32 %v4302, %v4414
      %4416 = vmatprep.mubr.bf16.mxu0 %v1353
      %4417 = vmatmul.mubr.bf16.gmra.mrb[0].mxu0 %v1352
      %v4418 = vpop.f32.mrb[0].mxu0
      %v4419 = vadd.f32 %v4306, %v4418
      %v4420 = vpop.f32.mrb[0].mxu0
      %v4421 = vadd.f32 %v4308, %v4420
      %v4422 = vpop.f32.mrb[0].mxu0
      %v4423 = vadd.f32 %v4310, %v4422
      %v4424 = vpop.f32.mrb[0].mxu0
      %v4425 = vadd.f32 %v4312, %v4424
      %4426 = vmatprep.mubr.bf16.mxu0 %v1369
      %4427 = vmatmul.mubr.bf16.gmra.mrb[0].mxu0 %v1368
      %v4428 = vpop.f32.mrb[0].mxu0
      %v4429 = vadd.f32 %v4316, %v4428
      %v4430 = vpop.f32.mrb[0].mxu0
      %v4431 = vadd.f32 %v4318, %v4430
      %v4432 = vpop.f32.mrb[0].mxu0
      %v4433 = vadd.f32 %v4320, %v4432
      %v4434 = vpop.f32.mrb[0].mxu0
      %v4435 = vadd.f32 %v4322, %v4434
      %4436 = vmatprep.mubr.bf16.mxu0 %v1385
      %4437 = vmatmul.mubr.bf16.gmra.mrb[0].mxu0 %v1384
      %v4438 = vpop.f32.mrb[0].mxu0
      %v4439 = vadd.f32 %v4326, %v4438
      %v4440 = vpop.f32.mrb[0].mxu0
      %v4441 = vadd.f32 %v4328, %v4440
      %v4442 = vpop.f32.mrb[0].mxu0
      %v4443 = vadd.f32 %v4330, %v4442
      %v4444 = vpop.f32.mrb[0].mxu0
      %v4445 = vadd.f32 %v4332, %v4444
      %4446 = vmatprep.mubr.bf16.mxu0 %v1401
      %4447 = vmatmul.mubr.bf16.gmra.mrb[0].mxu0 %v1400
      %v4448 = vpop.f32.mrb[0].mxu0
      %v4449 = vadd.f32 %v4336, %v4448
      %v4450 = vpop.f32.mrb[0].mxu0
      %v4451 = vadd.f32 %v4338, %v4450
      %v4452 = vpop.f32.mrb[0].mxu0
      %v4453 = vadd.f32 %v4340, %v4452
      %v4454 = vpop.f32.mrb[0].mxu0
      %v4455 = vadd.f32 %v4342, %v4454
      %4456 = vmatprep.mubr.bf16.mxu0 %v1417
      %4457 = vmatmul.mubr.bf16.gmra.mrb[0].mxu0 %v1416
      %v4458 = vpop.f32.mrb[0].mxu0
      %v4459 = vadd.f32 %v4346, %v4458
      %v4460 = vpop.f32.mrb[0].mxu0
      %v4461 = vadd.f32 %v4348, %v4460
      %v4462 = vpop.f32.mrb[0].mxu0
      %v4463 = vadd.f32 %v4350, %v4462
      %v4464 = vpop.f32.mrb[0].mxu0
      %v4465 = vadd.f32 %v4352, %v4464
      %4466 = vmatprep.mubr.bf16.mxu0 %v1433
      %4467 = vmatmul.mubr.bf16.gmra.mrb[0].mxu0 %v1432
      %v4468 = vpop.f32.mrb[0].mxu0
      %v4469 = vadd.f32 %v4356, %v4468
      %v4470 = vpop.f32.mrb[0].mxu0
      %v4471 = vadd.f32 %v4358, %v4470
      %v4472 = vpop.f32.mrb[0].mxu0
      %v4473 = vadd.f32 %v4360, %v4472
      %v4474 = vpop.f32.mrb[0].mxu0
      %v4475 = vadd.f32 %v4362, %v4474
      %4476 = vmatprep.mubr.bf16.mxu0 %v1449
      %4477 = vmatmul.mubr.bf16.gmra.mrb[0].mxu0 %v1448
      %v4478 = vpop.f32.mrb[0].mxu0
      %v4479 = vadd.f32 %v4366, %v4478
      %v4480 = vpop.f32.mrb[0].mxu0
      %v4481 = vadd.f32 %v4368, %v4480
      %v4482 = vpop.f32.mrb[0].mxu0
      %v4483 = vadd.f32 %v4370, %v4482
      %v4484 = vpop.f32.mrb[0].mxu0
      %v4485 = vadd.f32 %v4372, %v4484
      %4486 = vdwg.mxu0
      %4487 = vmatprep.subr.bf16.mxu0 %v3317
      %4488 = vmatpush1.bf16.msra.mxu0 %v3316
      %4489 = vmatprep.subr.bf16.mxu0 %v3321
      %4490 = vmatpush1.bf16.msra.mxu0 %v3320
      %4491 = vmatprep.subr.bf16.mxu0 %v3325
      %4492 = vmatpush1.bf16.msra.mxu0 %v3324
      %4493 = vmatprep.subr.bf16.mxu0 %v3329
      %4494 = vmatpush1.bf16.msra.mxu0 %v3328
      %4495 = vmatprep.subr.bf16.mxu0 %v3333
      %4496 = vmatpush1.bf16.msra.mxu0 %v3332
      %4497 = vmatprep.subr.bf16.mxu0 %v3337
      %4498 = vmatpush1.bf16.msra.mxu0 %v3336
      %4499 = vmatprep.subr.bf16.mxu0 %v3341
      %4500 = vmatpush1.bf16.msra.mxu0 %v3340
      %4501 = vmatprep.subr.bf16.mxu0 %v3345
      %4502 = vmatpush1.bf16.msra.mxu0 %v3344
      %4503 = vmatprep.subr.bf16.mxu0 %v3349
      %4504 = vmatpush1.bf16.msra.mxu0 %v3348
      %4505 = vmatprep.subr.bf16.mxu0 %v3353
      %4506 = vmatpush1.bf16.msra.mxu0 %v3352
      %4507 = vmatprep.subr.bf16.mxu0 %v3357
      %4508 = vmatpush1.bf16.msra.mxu0 %v3356
      %4509 = vmatprep.subr.bf16.mxu0 %v3361
      %4510 = vmatpush1.bf16.msra.mxu0 %v3360
      %4511 = vmatprep.subr.bf16.mxu0 %v3365
      %4512 = vmatpush1.bf16.msra.mxu0 %v3364
      %4513 = vmatprep.subr.bf16.mxu0 %v3369
      %4514 = vmatpush1.bf16.msra.mxu0 %v3368
      %4515 = vmatprep.subr.bf16.mxu0 %v3373
      %4516 = vmatpush1.bf16.msra.mxu0 %v3372
      %4517 = vmatprep.subr.bf16.mxu0 %v3377
      %4518 = vmatpush1.bf16.msra.mxu0 %v3376
      %4519 = vmatprep.mubr.bf16.mxu0 %v1339
      %4520 = vmatmul.mubr.bf16.gmra.mrb[0].mxu0 %v1338
      %v4521 = vpop.f32.mrb[0].mxu0
      %v4522 = vadd.f32 %v4409, %v4521
      %v4523 = vpop.f32.mrb[0].mxu0
      %v4524 = vadd.f32 %v4411, %v4523
      %v4525 = vpop.f32.mrb[0].mxu0
      %v4526 = vadd.f32 %v4413, %v4525
      %v4527 = vpop.f32.mrb[0].mxu0
      %v4528 = vadd.f32 %v4415, %v4527
      %4529 = vmatprep.mubr.bf16.mxu0 %v1355
      %4530 = vmatmul.mubr.bf16.gmra.mrb[0].mxu0 %v1354
      %v4531 = vpop.f32.mrb[0].mxu0
      %v4532 = vadd.f32 %v4419, %v4531
      %v4533 = vpop.f32.mrb[0].mxu0
      %v4534 = vadd.f32 %v4421, %v4533
      %v4535 = vpop.f32.mrb[0].mxu0
      %v4536 = vadd.f32 %v4423, %v4535
      %v4537 = vpop.f32.mrb[0].mxu0
      %v4538 = vadd.f32 %v4425, %v4537
      %4539 = vmatprep.mubr.bf16.mxu0 %v1371
      %4540 = vmatmul.mubr.bf16.gmra.mrb[0].mxu0 %v1370
      %v4541 = vpop.f32.mrb[0].mxu0
      %v4542 = vadd.f32 %v4429, %v4541
      %v4543 = vpop.f32.mrb[0].mxu0
      %v4544 = vadd.f32 %v4431, %v4543
      %v4545 = vpop.f32.mrb[0].mxu0
      %v4546 = vadd.f32 %v4433, %v4545
      %v4547 = vpop.f32.mrb[0].mxu0
      %v4548 = vadd.f32 %v4435, %v4547
      %4549 = vmatprep.mubr.bf16.mxu0 %v1387
      %4550 = vmatmul.mubr.bf16.gmra.mrb[0].mxu0 %v1386
      %v4551 = vpop.f32.mrb[0].mxu0
      %v4552 = vadd.f32 %v4439, %v4551
      %v4553 = vpop.f32.mrb[0].mxu0
      %v4554 = vadd.f32 %v4441, %v4553
      %v4555 = vpop.f32.mrb[0].mxu0
      %v4556 = vadd.f32 %v4443, %v4555
      %v4557 = vpop.f32.mrb[0].mxu0
      %v4558 = vadd.f32 %v4445, %v4557
      %4559 = vmatprep.mubr.bf16.mxu0 %v1403
      %4560 = vmatmul.mubr.bf16.gmra.mrb[0].mxu0 %v1402
      %v4561 = vpop.f32.mrb[0].mxu0
      %v4562 = vadd.f32 %v4449, %v4561
      %v4563 = vpop.f32.mrb[0].mxu0
      %v4564 = vadd.f32 %v4451, %v4563
      %v4565 = vpop.f32.mrb[0].mxu0
      %v4566 = vadd.f32 %v4453, %v4565
      %v4567 = vpop.f32.mrb[0].mxu0
      %v4568 = vadd.f32 %v4455, %v4567
      %4569 = vmatprep.mubr.bf16.mxu0 %v1419
      %4570 = vmatmul.mubr.bf16.gmra.mrb[0].mxu0 %v1418
      %v4571 = vpop.f32.mrb[0].mxu0
      %v4572 = vadd.f32 %v4459, %v4571
      %v4573 = vpop.f32.mrb[0].mxu0
      %v4574 = vadd.f32 %v4461, %v4573
      %v4575 = vpop.f32.mrb[0].mxu0
      %v4576 = vadd.f32 %v4463, %v4575
      %v4577 = vpop.f32.mrb[0].mxu0
      %v4578 = vadd.f32 %v4465, %v4577
      %4579 = vmatprep.mubr.bf16.mxu0 %v1435
      %4580 = vmatmul.mubr.bf16.gmra.mrb[0].mxu0 %v1434
      %v4581 = vpop.f32.mrb[0].mxu0
      %v4582 = vadd.f32 %v4469, %v4581
      %v4583 = vpop.f32.mrb[0].mxu0
      %v4584 = vadd.f32 %v4471, %v4583
      %v4585 = vpop.f32.mrb[0].mxu0
      %v4586 = vadd.f32 %v4473, %v4585
      %v4587 = vpop.f32.mrb[0].mxu0
      %v4588 = vadd.f32 %v4475, %v4587
      %4589 = vmatprep.mubr.bf16.mxu0 %v1451
      %4590 = vmatmul.mubr.bf16.gmra.mrb[0].mxu0 %v1450
      %v4591 = vpop.f32.mrb[0].mxu0
      %v4592 = vadd.f32 %v4479, %v4591
      %v4593 = vpop.f32.mrb[0].mxu0
      %v4594 = vadd.f32 %v4481, %v4593
      %v4595 = vpop.f32.mrb[0].mxu0
      %v4596 = vadd.f32 %v4483, %v4595
      %v4597 = vpop.f32.mrb[0].mxu0
      %v4598 = vadd.f32 %v4485, %v4597
      %4599 = vdwg.mxu0
      %4600 = vmatprep.subr.bf16.mxu0 %v3381
      %4601 = vmatpush1.bf16.msra.mxu0 %v3380
      %4602 = vmatprep.subr.bf16.mxu0 %v3385
      %4603 = vmatpush1.bf16.msra.mxu0 %v3384
      %4604 = vmatprep.subr.bf16.mxu0 %v3389
      %4605 = vmatpush1.bf16.msra.mxu0 %v3388
      %4606 = vmatprep.subr.bf16.mxu0 %v3393
      %4607 = vmatpush1.bf16.msra.mxu0 %v3392
      %4608 = vmatprep.subr.bf16.mxu0 %v3397
      %4609 = vmatpush1.bf16.msra.mxu0 %v3396
      %4610 = vmatprep.subr.bf16.mxu0 %v3401
      %4611 = vmatpush1.bf16.msra.mxu0 %v3400
      %4612 = vmatprep.subr.bf16.mxu0 %v3405
      %4613 = vmatpush1.bf16.msra.mxu0 %v3404
      %4614 = vmatprep.subr.bf16.mxu0 %v3409
      %4615 = vmatpush1.bf16.msra.mxu0 %v3408
      %4616 = vmatprep.subr.bf16.mxu0 %v3413
      %4617 = vmatpush1.bf16.msra.mxu0 %v3412
      %4618 = vmatprep.subr.bf16.mxu0 %v3417
      %4619 = vmatpush1.bf16.msra.mxu0 %v3416
      %4620 = vmatprep.subr.bf16.mxu0 %v3421
      %4621 = vmatpush1.bf16.msra.mxu0 %v3420
      %4622 = vmatprep.subr.bf16.mxu0 %v3425
      %4623 = vmatpush1.bf16.msra.mxu0 %v3424
      %4624 = vmatprep.subr.bf16.mxu0 %v3429
      %4625 = vmatpush1.bf16.msra.mxu0 %v3428
      %4626 = vmatprep.subr.bf16.mxu0 %v3433
      %4627 = vmatpush1.bf16.msra.mxu0 %v3432
      %4628 = vmatprep.subr.bf16.mxu0 %v3437
      %4629 = vmatpush1.bf16.msra.mxu0 %v3436
      %4630 = vmatprep.subr.bf16.mxu0 %v3441
      %4631 = vmatpush1.bf16.msra.mxu0 %v3440
      %4632 = vmatprep.mubr.bf16.mxu0 %v1341
      %4633 = vmatmul.mubr.bf16.gmra.mrb[0].mxu0 %v1340
      %v4634 = vpop.f32.mrb[0].mxu0
      %v4635 = vadd.f32 %v4522, %v4634
      %v4636 = vpop.f32.mrb[0].mxu0
      %v4637 = vadd.f32 %v4524, %v4636
      %v4638 = vpop.f32.mrb[0].mxu0
      %v4639 = vadd.f32 %v4526, %v4638
      %v4640 = vpop.f32.mrb[0].mxu0
      %v4641 = vadd.f32 %v4528, %v4640
      %4642 = vmatprep.mubr.bf16.mxu0 %v1357
      %4643 = vmatmul.mubr.bf16.gmra.mrb[0].mxu0 %v1356
      %v4644 = vpop.f32.mrb[0].mxu0
      %v4645 = vadd.f32 %v4532, %v4644
      %v4646 = vpop.f32.mrb[0].mxu0
      %v4647 = vadd.f32 %v4534, %v4646
      %v4648 = vpop.f32.mrb[0].mxu0
      %v4649 = vadd.f32 %v4536, %v4648
      %v4650 = vpop.f32.mrb[0].mxu0
      %v4651 = vadd.f32 %v4538, %v4650
      %4652 = vmatprep.mubr.bf16.mxu0 %v1373
      %4653 = vmatmul.mubr.bf16.gmra.mrb[0].mxu0 %v1372
      %v4654 = vpop.f32.mrb[0].mxu0
      %v4655 = vadd.f32 %v4542, %v4654
      %v4656 = vpop.f32.mrb[0].mxu0
      %v4657 = vadd.f32 %v4544, %v4656
      %v4658 = vpop.f32.mrb[0].mxu0
      %v4659 = vadd.f32 %v4546, %v4658
      %v4660 = vpop.f32.mrb[0].mxu0
      %v4661 = vadd.f32 %v4548, %v4660
      %4662 = vmatprep.mubr.bf16.mxu0 %v1389
      %4663 = vmatmul.mubr.bf16.gmra.mrb[0].mxu0 %v1388
      %v4664 = vpop.f32.mrb[0].mxu0
      %v4665 = vadd.f32 %v4552, %v4664
      %v4666 = vpop.f32.mrb[0].mxu0
      %v4667 = vadd.f32 %v4554, %v4666
      %v4668 = vpop.f32.mrb[0].mxu0
      %v4669 = vadd.f32 %v4556, %v4668
      %v4670 = vpop.f32.mrb[0].mxu0
      %v4671 = vadd.f32 %v4558, %v4670
      %4672 = vmatprep.mubr.bf16.mxu0 %v1405
      %4673 = vmatmul.mubr.bf16.gmra.mrb[0].mxu0 %v1404
      %v4674 = vpop.f32.mrb[0].mxu0
      %v4675 = vadd.f32 %v4562, %v4674
      %v4676 = vpop.f32.mrb[0].mxu0
      %v4677 = vadd.f32 %v4564, %v4676
      %v4678 = vpop.f32.mrb[0].mxu0
      %v4679 = vadd.f32 %v4566, %v4678
      %v4680 = vpop.f32.mrb[0].mxu0
      %v4681 = vadd.f32 %v4568, %v4680
      %4682 = vmatprep.mubr.bf16.mxu0 %v1421
      %4683 = vmatmul.mubr.bf16.gmra.mrb[0].mxu0 %v1420
      %v4684 = vpop.f32.mrb[0].mxu0
      %v4685 = vadd.f32 %v4572, %v4684
      %v4686 = vpop.f32.mrb[0].mxu0
      %v4687 = vadd.f32 %v4574, %v4686
      %v4688 = vpop.f32.mrb[0].mxu0
      %v4689 = vadd.f32 %v4576, %v4688
      %v4690 = vpop.f32.mrb[0].mxu0
      %v4691 = vadd.f32 %v4578, %v4690
      %4692 = vmatprep.mubr.bf16.mxu0 %v1437
      %4693 = vmatmul.mubr.bf16.gmra.mrb[0].mxu0 %v1436
      %v4694 = vpop.f32.mrb[0].mxu0
      %v4695 = vadd.f32 %v4582, %v4694
      %v4696 = vpop.f32.mrb[0].mxu0
      %v4697 = vadd.f32 %v4584, %v4696
      %v4698 = vpop.f32.mrb[0].mxu0
      %v4699 = vadd.f32 %v4586, %v4698
      %v4700 = vpop.f32.mrb[0].mxu0
      %v4701 = vadd.f32 %v4588, %v4700
      %4702 = vmatprep.mubr.bf16.mxu0 %v1453
      %4703 = vmatmul.mubr.bf16.gmra.mrb[0].mxu0 %v1452
      %v4704 = vpop.f32.mrb[0].mxu0
      %v4705 = vadd.f32 %v4592, %v4704
      %v4706 = vpop.f32.mrb[0].mxu0
      %v4707 = vadd.f32 %v4594, %v4706
      %v4708 = vpop.f32.mrb[0].mxu0
      %v4709 = vadd.f32 %v4596, %v4708
      %v4710 = vpop.f32.mrb[0].mxu0
      %v4711 = vadd.f32 %v4598, %v4710
      %4712 = vdwg.mxu0
      %4713 = vmatprep.subr.bf16.mxu0 %v3445
      %4714 = vmatpush1.bf16.msra.mxu0 %v3444
      %4715 = vmatprep.subr.bf16.mxu0 %v3449
      %4716 = vmatpush1.bf16.msra.mxu0 %v3448
      %4717 = vmatprep.subr.bf16.mxu0 %v3453
      %4718 = vmatpush1.bf16.msra.mxu0 %v3452
      %4719 = vmatprep.subr.bf16.mxu0 %v3457
      %4720 = vmatpush1.bf16.msra.mxu0 %v3456
      %4721 = vmatprep.subr.bf16.mxu0 %v3461
      %4722 = vmatpush1.bf16.msra.mxu0 %v3460
      %4723 = vmatprep.subr.bf16.mxu0 %v3465
      %4724 = vmatpush1.bf16.msra.mxu0 %v3464
      %4725 = vmatprep.subr.bf16.mxu0 %v3469
      %4726 = vmatpush1.bf16.msra.mxu0 %v3468
      %4727 = vmatprep.subr.bf16.mxu0 %v3473
      %4728 = vmatpush1.bf16.msra.mxu0 %v3472
      %4729 = vmatprep.subr.bf16.mxu0 %v3477
      %4730 = vmatpush1.bf16.msra.mxu0 %v3476
      %4731 = vmatprep.subr.bf16.mxu0 %v3481
      %4732 = vmatpush1.bf16.msra.mxu0 %v3480
      %4733 = vmatprep.subr.bf16.mxu0 %v3485
      %4734 = vmatpush1.bf16.msra.mxu0 %v3484
      %4735 = vmatprep.subr.bf16.mxu0 %v3489
      %4736 = vmatpush1.bf16.msra.mxu0 %v3488
      %4737 = vmatprep.subr.bf16.mxu0 %v3493
      %4738 = vmatpush1.bf16.msra.mxu0 %v3492
      %4739 = vmatprep.subr.bf16.mxu0 %v3497
      %4740 = vmatpush1.bf16.msra.mxu0 %v3496
      %4741 = vmatprep.subr.bf16.mxu0 %v3501
      %4742 = vmatpush1.bf16.msra.mxu0 %v3500
      %4743 = vmatprep.subr.bf16.mxu0 %v3505
      %4744 = vmatpush1.bf16.msra.mxu0 %v3504
      %4745 = vmatprep.mubr.bf16.mxu0 %v1343
      %4746 = vmatmul.mubr.bf16.gmra.mrb[0].mxu0 %v1342
      %v4747 = vpop.f32.mrb[0].mxu0
      %v4748 = vadd.f32 %v4635, %v4747
      %v4749 = vpop.f32.mrb[0].mxu0
      %v4750 = vadd.f32 %v4637, %v4749
      %v4751 = vpop.f32.mrb[0].mxu0
      %v4752 = vadd.f32 %v4639, %v4751
      %v4753 = vpop.f32.mrb[0].mxu0
      %v4754 = vadd.f32 %v4641, %v4753
      %4755 = vmatprep.mubr.bf16.mxu0 %v1359
      %4756 = vmatmul.mubr.bf16.gmra.mrb[0].mxu0 %v1358
      %v4757 = vpop.f32.mrb[0].mxu0
      %v4758 = vadd.f32 %v4645, %v4757
      %v4759 = vpop.f32.mrb[0].mxu0
      %v4760 = vadd.f32 %v4647, %v4759
      %v4761 = vpop.f32.mrb[0].mxu0
      %v4762 = vadd.f32 %v4649, %v4761
      %v4763 = vpop.f32.mrb[0].mxu0
      %v4764 = vadd.f32 %v4651, %v4763
      %4765 = vmatprep.mubr.bf16.mxu0 %v1375
      %4766 = vmatmul.mubr.bf16.gmra.mrb[0].mxu0 %v1374
      %v4767 = vpop.f32.mrb[0].mxu0
      %v4768 = vadd.f32 %v4655, %v4767
      %v4769 = vpop.f32.mrb[0].mxu0
      %v4770 = vadd.f32 %v4657, %v4769
      %v4771 = vpop.f32.mrb[0].mxu0
      %v4772 = vadd.f32 %v4659, %v4771
      %v4773 = vpop.f32.mrb[0].mxu0
      %v4774 = vadd.f32 %v4661, %v4773
      %4775 = vmatprep.mubr.bf16.mxu0 %v1391
      %4776 = vmatmul.mubr.bf16.gmra.mrb[0].mxu0 %v1390
      %v4777 = vpop.f32.mrb[0].mxu0
      %v4778 = vadd.f32 %v4665, %v4777
      %v4779 = vpop.f32.mrb[0].mxu0
      %v4780 = vadd.f32 %v4667, %v4779
      %v4781 = vpop.f32.mrb[0].mxu0
      %v4782 = vadd.f32 %v4669, %v4781
      %v4783 = vpop.f32.mrb[0].mxu0
      %v4784 = vadd.f32 %v4671, %v4783
      %4785 = vmatprep.mubr.bf16.mxu0 %v1407
      %4786 = vmatmul.mubr.bf16.gmra.mrb[0].mxu0 %v1406
      %v4787 = vpop.f32.mrb[0].mxu0
      %v4788 = vadd.f32 %v4675, %v4787
      %v4789 = vpop.f32.mrb[0].mxu0
      %v4790 = vadd.f32 %v4677, %v4789
      %v4791 = vpop.f32.mrb[0].mxu0
      %v4792 = vadd.f32 %v4679, %v4791
      %v4793 = vpop.f32.mrb[0].mxu0
      %v4794 = vadd.f32 %v4681, %v4793
      %4795 = vmatprep.mubr.bf16.mxu0 %v1423
      %4796 = vmatmul.mubr.bf16.gmra.mrb[0].mxu0 %v1422
      %v4797 = vpop.f32.mrb[0].mxu0
      %v4798 = vadd.f32 %v4685, %v4797
      %v4799 = vpop.f32.mrb[0].mxu0
      %v4800 = vadd.f32 %v4687, %v4799
      %v4801 = vpop.f32.mrb[0].mxu0
      %v4802 = vadd.f32 %v4689, %v4801
      %v4803 = vpop.f32.mrb[0].mxu0
      %v4804 = vadd.f32 %v4691, %v4803
      %4805 = vmatprep.mubr.bf16.mxu0 %v1439
      %4806 = vmatmul.mubr.bf16.gmra.mrb[0].mxu0 %v1438
      %v4807 = vpop.f32.mrb[0].mxu0
      %v4808 = vadd.f32 %v4695, %v4807
      %v4809 = vpop.f32.mrb[0].mxu0
      %v4810 = vadd.f32 %v4697, %v4809
      %v4811 = vpop.f32.mrb[0].mxu0
      %v4812 = vadd.f32 %v4699, %v4811
      %v4813 = vpop.f32.mrb[0].mxu0
      %v4814 = vadd.f32 %v4701, %v4813
      %4815 = vmatprep.mubr.bf16.mxu0 %v1455
      %4816 = vmatmul.mubr.bf16.gmra.mrb[0].mxu0 %v1454
      %v4817 = vpop.f32.mrb[0].mxu0
      %v4818 = vadd.f32 %v4705, %v4817
      %v4819 = vpop.f32.mrb[0].mxu0
      %v4820 = vadd.f32 %v4707, %v4819
      %v4821 = vpop.f32.mrb[0].mxu0
      %v4822 = vadd.f32 %v4709, %v4821
      %v4823 = vpop.f32.mrb[0].mxu0
      %v4824 = vadd.f32 %v4711, %v4823
      %4825 = vdwg.mxu0
      %4826 = vmatprep.subr.bf16.mxu0 %v3509
      %4827 = vmatpush1.bf16.msra.mxu0 %v3508
      %4828 = vmatprep.subr.bf16.mxu0 %v3513
      %4829 = vmatpush1.bf16.msra.mxu0 %v3512
      %4830 = vmatprep.subr.bf16.mxu0 %v3517
      %4831 = vmatpush1.bf16.msra.mxu0 %v3516
      %4832 = vmatprep.subr.bf16.mxu0 %v3521
      %4833 = vmatpush1.bf16.msra.mxu0 %v3520
      %4834 = vmatprep.subr.bf16.mxu0 %v3525
      %4835 = vmatpush1.bf16.msra.mxu0 %v3524
      %4836 = vmatprep.subr.bf16.mxu0 %v3529
      %4837 = vmatpush1.bf16.msra.mxu0 %v3528
      %4838 = vmatprep.subr.bf16.mxu0 %v3533
      %4839 = vmatpush1.bf16.msra.mxu0 %v3532
      %4840 = vmatprep.subr.bf16.mxu0 %v3537
      %4841 = vmatpush1.bf16.msra.mxu0 %v3536
      %4842 = vmatprep.subr.bf16.mxu0 %v3541
      %4843 = vmatpush1.bf16.msra.mxu0 %v3540
      %4844 = vmatprep.subr.bf16.mxu0 %v3545
      %4845 = vmatpush1.bf16.msra.mxu0 %v3544
      %4846 = vmatprep.subr.bf16.mxu0 %v3549
      %4847 = vmatpush1.bf16.msra.mxu0 %v3548
      %4848 = vmatprep.subr.bf16.mxu0 %v3553
      %4849 = vmatpush1.bf16.msra.mxu0 %v3552
      %4850 = vmatprep.subr.bf16.mxu0 %v3557
      %4851 = vmatpush1.bf16.msra.mxu0 %v3556
      %4852 = vmatprep.subr.bf16.mxu0 %v3561
      %4853 = vmatpush1.bf16.msra.mxu0 %v3560
      %4854 = vmatprep.subr.bf16.mxu0 %v3565
      %4855 = vmatpush1.bf16.msra.mxu0 %v3564
      %4856 = vmatprep.subr.bf16.mxu0 %v3569
      %4857 = vmatpush1.bf16.msra.mxu0 %v3568
      %4858 = vmatprep.mubr.bf16.mxu0 %v1345
      %4859 = vmatmul.mubr.bf16.gmra.mrb[0].mxu0 %v1344
      %v4860 = vpop.f32.mrb[0].mxu0
      %v4861 = vadd.f32 %v4748, %v4860
      %v4862 = vpop.f32.mrb[0].mxu0
      %v4863 = vadd.f32 %v4750, %v4862
      %v4864 = vpop.f32.mrb[0].mxu0
      %v4865 = vadd.f32 %v4752, %v4864
      %v4866 = vpop.f32.mrb[0].mxu0
      %v4867 = vadd.f32 %v4754, %v4866
      %4868 = vmatprep.mubr.bf16.mxu0 %v1361
      %4869 = vmatmul.mubr.bf16.gmra.mrb[0].mxu0 %v1360
      %v4870 = vpop.f32.mrb[0].mxu0
      %v4871 = vadd.f32 %v4758, %v4870
      %v4872 = vpop.f32.mrb[0].mxu0
      %v4873 = vadd.f32 %v4760, %v4872
      %v4874 = vpop.f32.mrb[0].mxu0
      %v4875 = vadd.f32 %v4762, %v4874
      %v4876 = vpop.f32.mrb[0].mxu0
      %v4877 = vadd.f32 %v4764, %v4876
      %4878 = vmatprep.mubr.bf16.mxu0 %v1377
      %4879 = vmatmul.mubr.bf16.gmra.mrb[0].mxu0 %v1376
      %v4880 = vpop.f32.mrb[0].mxu0
      %v4881 = vadd.f32 %v4768, %v4880
      %v4882 = vpop.f32.mrb[0].mxu0
      %v4883 = vadd.f32 %v4770, %v4882
      %v4884 = vpop.f32.mrb[0].mxu0
      %v4885 = vadd.f32 %v4772, %v4884
      %v4886 = vpop.f32.mrb[0].mxu0
      %v4887 = vadd.f32 %v4774, %v4886
      %4888 = vmatprep.mubr.bf16.mxu0 %v1393
      %4889 = vmatmul.mubr.bf16.gmra.mrb[0].mxu0 %v1392
      %v4890 = vpop.f32.mrb[0].mxu0
      %v4891 = vadd.f32 %v4778, %v4890
      %v4892 = vpop.f32.mrb[0].mxu0
      %v4893 = vadd.f32 %v4780, %v4892
      %v4894 = vpop.f32.mrb[0].mxu0
      %v4895 = vadd.f32 %v4782, %v4894
      %v4896 = vpop.f32.mrb[0].mxu0
      %v4897 = vadd.f32 %v4784, %v4896
      %4898 = vmatprep.mubr.bf16.mxu0 %v1409
      %4899 = vmatmul.mubr.bf16.gmra.mrb[0].mxu0 %v1408
      %v4900 = vpop.f32.mrb[0].mxu0
      %v4901 = vadd.f32 %v4788, %v4900
      %v4902 = vpop.f32.mrb[0].mxu0
      %v4903 = vadd.f32 %v4790, %v4902
      %v4904 = vpop.f32.mrb[0].mxu0
      %v4905 = vadd.f32 %v4792, %v4904
      %v4906 = vpop.f32.mrb[0].mxu0
      %v4907 = vadd.f32 %v4794, %v4906
      %4908 = vmatprep.mubr.bf16.mxu0 %v1425
      %4909 = vmatmul.mubr.bf16.gmra.mrb[0].mxu0 %v1424
      %v4910 = vpop.f32.mrb[0].mxu0
      %v4911 = vadd.f32 %v4798, %v4910
      %v4912 = vpop.f32.mrb[0].mxu0
      %v4913 = vadd.f32 %v4800, %v4912
      %v4914 = vpop.f32.mrb[0].mxu0
      %v4915 = vadd.f32 %v4802, %v4914
      %v4916 = vpop.f32.mrb[0].mxu0
      %v4917 = vadd.f32 %v4804, %v4916
      %4918 = vmatprep.mubr.bf16.mxu0 %v1441
      %4919 = vmatmul.mubr.bf16.gmra.mrb[0].mxu0 %v1440
      %v4920 = vpop.f32.mrb[0].mxu0
      %v4921 = vadd.f32 %v4808, %v4920
      %v4922 = vpop.f32.mrb[0].mxu0
      %v4923 = vadd.f32 %v4810, %v4922
      %v4924 = vpop.f32.mrb[0].mxu0
      %v4925 = vadd.f32 %v4812, %v4924
      %v4926 = vpop.f32.mrb[0].mxu0
      %v4927 = vadd.f32 %v4814, %v4926
      %4928 = vmatprep.mubr.bf16.mxu0 %v1457
      %4929 = vmatmul.mubr.bf16.gmra.mrb[0].mxu0 %v1456
      %v4930 = vpop.f32.mrb[0].mxu0
      %v4931 = vadd.f32 %v4818, %v4930
      %v4932 = vpop.f32.mrb[0].mxu0
      %v4933 = vadd.f32 %v4820, %v4932
      %v4934 = vpop.f32.mrb[0].mxu0
      %v4935 = vadd.f32 %v4822, %v4934
      %v4936 = vpop.f32.mrb[0].mxu0
      %v4937 = vadd.f32 %v4824, %v4936
      %4938 = vdwg.mxu0
      %4939 = vmatprep.subr.bf16.mxu0 %v3573
      %4940 = vmatpush1.bf16.msra.mxu0 %v3572
      %4941 = vmatprep.subr.bf16.mxu0 %v3577
      %4942 = vmatpush1.bf16.msra.mxu0 %v3576
      %4943 = vmatprep.subr.bf16.mxu0 %v3581
      %4944 = vmatpush1.bf16.msra.mxu0 %v3580
      %4945 = vmatprep.subr.bf16.mxu0 %v3585
      %4946 = vmatpush1.bf16.msra.mxu0 %v3584
      %4947 = vmatprep.subr.bf16.mxu0 %v3589
      %4948 = vmatpush1.bf16.msra.mxu0 %v3588
      %4949 = vmatprep.subr.bf16.mxu0 %v3593
      %4950 = vmatpush1.bf16.msra.mxu0 %v3592
      %4951 = vmatprep.subr.bf16.mxu0 %v3597
      %4952 = vmatpush1.bf16.msra.mxu0 %v3596
      %4953 = vmatprep.subr.bf16.mxu0 %v3601
      %4954 = vmatpush1.bf16.msra.mxu0 %v3600
      %4955 = vmatprep.subr.bf16.mxu0 %v3605
      %4956 = vmatpush1.bf16.msra.mxu0 %v3604
      %4957 = vmatprep.subr.bf16.mxu0 %v3609
      %4958 = vmatpush1.bf16.msra.mxu0 %v3608
      %4959 = vmatprep.subr.bf16.mxu0 %v3613
      %4960 = vmatpush1.bf16.msra.mxu0 %v3612
      %4961 = vmatprep.subr.bf16.mxu0 %v3617
      %4962 = vmatpush1.bf16.msra.mxu0 %v3616
      %4963 = vmatprep.subr.bf16.mxu0 %v3621
      %4964 = vmatpush1.bf16.msra.mxu0 %v3620
      %4965 = vmatprep.subr.bf16.mxu0 %v3625
      %4966 = vmatpush1.bf16.msra.mxu0 %v3624
      %4967 = vmatprep.subr.bf16.mxu0 %v3629
      %4968 = vmatpush1.bf16.msra.mxu0 %v3628
      %4969 = vmatprep.subr.bf16.mxu0 %v3633
      %4970 = vmatpush1.bf16.msra.mxu0 %v3632
      %4971 = vmatprep.mubr.bf16.mxu0 %v1347
      %4972 = vmatmul.mubr.bf16.gmra.mrb[0].mxu0 %v1346
      %v4973 = vpop.f32.mrb[0].mxu0
      %v4974 = vadd.f32 %v4861, %v4973
      %v4975 = vpop.f32.mrb[0].mxu0
      %v4976 = vadd.f32 %v4863, %v4975
      %v4977 = vpop.f32.mrb[0].mxu0
      %v4978 = vadd.f32 %v4865, %v4977
      %v4979 = vpop.f32.mrb[0].mxu0
      %v4980 = vadd.f32 %v4867, %v4979
      %4981 = vmatprep.mubr.bf16.mxu0 %v1363
      %4982 = vmatmul.mubr.bf16.gmra.mrb[0].mxu0 %v1362
      %v4983 = vpop.f32.mrb[0].mxu0
      %v4984 = vadd.f32 %v4871, %v4983
      %v4985 = vpop.f32.mrb[0].mxu0
      %v4986 = vadd.f32 %v4873, %v4985
      %v4987 = vpop.f32.mrb[0].mxu0
      %v4988 = vadd.f32 %v4875, %v4987
      %v4989 = vpop.f32.mrb[0].mxu0
      %v4990 = vadd.f32 %v4877, %v4989
      %4991 = vmatprep.mubr.bf16.mxu0 %v1379
      %4992 = vmatmul.mubr.bf16.gmra.mrb[0].mxu0 %v1378
      %v4993 = vpop.f32.mrb[0].mxu0
      %v4994 = vadd.f32 %v4881, %v4993
      %v4995 = vpop.f32.mrb[0].mxu0
      %v4996 = vadd.f32 %v4883, %v4995
      %v4997 = vpop.f32.mrb[0].mxu0
      %v4998 = vadd.f32 %v4885, %v4997
      %v4999 = vpop.f32.mrb[0].mxu0
      %v5000 = vadd.f32 %v4887, %v4999
      %5001 = vmatprep.mubr.bf16.mxu0 %v1395
      %5002 = vmatmul.mubr.bf16.gmra.mrb[0].mxu0 %v1394
      %v5003 = vpop.f32.mrb[0].mxu0
      %v5004 = vadd.f32 %v4891, %v5003
      %v5005 = vpop.f32.mrb[0].mxu0
      %v5006 = vadd.f32 %v4893, %v5005
      %v5007 = vpop.f32.mrb[0].mxu0
      %v5008 = vadd.f32 %v4895, %v5007
      %v5009 = vpop.f32.mrb[0].mxu0
      %v5010 = vadd.f32 %v4897, %v5009
      %5011 = vmatprep.mubr.bf16.mxu0 %v1411
      %5012 = vmatmul.mubr.bf16.gmra.mrb[0].mxu0 %v1410
      %v5013 = vpop.f32.mrb[0].mxu0
      %v5014 = vadd.f32 %v4901, %v5013
      %v5015 = vpop.f32.mrb[0].mxu0
      %v5016 = vadd.f32 %v4903, %v5015
      %v5017 = vpop.f32.mrb[0].mxu0
      %v5018 = vadd.f32 %v4905, %v5017
      %v5019 = vpop.f32.mrb[0].mxu0
      %v5020 = vadd.f32 %v4907, %v5019
      %5021 = vmatprep.mubr.bf16.mxu0 %v1427
      %5022 = vmatmul.mubr.bf16.gmra.mrb[0].mxu0 %v1426
      %v5023 = vpop.f32.mrb[0].mxu0
      %v5024 = vadd.f32 %v4911, %v5023
      %v5025 = vpop.f32.mrb[0].mxu0
      %v5026 = vadd.f32 %v4913, %v5025
      %v5027 = vpop.f32.mrb[0].mxu0
      %v5028 = vadd.f32 %v4915, %v5027
      %v5029 = vpop.f32.mrb[0].mxu0
      %v5030 = vadd.f32 %v4917, %v5029
      %5031 = vmatprep.mubr.bf16.mxu0 %v1443
      %5032 = vmatmul.mubr.bf16.gmra.mrb[0].mxu0 %v1442
      %v5033 = vpop.f32.mrb[0].mxu0
      %v5034 = vadd.f32 %v4921, %v5033
      %v5035 = vpop.f32.mrb[0].mxu0
      %v5036 = vadd.f32 %v4923, %v5035
      %v5037 = vpop.f32.mrb[0].mxu0
      %v5038 = vadd.f32 %v4925, %v5037
      %v5039 = vpop.f32.mrb[0].mxu0
      %v5040 = vadd.f32 %v4927, %v5039
      %5041 = vmatprep.mubr.bf16.mxu0 %v1459
      %5042 = vmatmul.mubr.bf16.gmra.mrb[0].mxu0 %v1458
      %v5043 = vpop.f32.mrb[0].mxu0
      %v5044 = vadd.f32 %v4931, %v5043
      %v5045 = vpop.f32.mrb[0].mxu0
      %v5046 = vadd.f32 %v4933, %v5045
      %v5047 = vpop.f32.mrb[0].mxu0
      %v5048 = vadd.f32 %v4935, %v5047
      %v5049 = vpop.f32.mrb[0].mxu0
      %v5050 = vadd.f32 %v4937, %v5049
      %5051 = vdwg.mxu0
      %5052 = vmatprep.subr.bf16.mxu0 %v3127
      %5053 = vmatpush1.bf16.msra.mxu0 %v3126
      %5054 = vmatprep.subr.bf16.mxu0 %v3131
      %5055 = vmatpush1.bf16.msra.mxu0 %v3130
      %5056 = vmatprep.subr.bf16.mxu0 %v3135
      %5057 = vmatpush1.bf16.msra.mxu0 %v3134
      %5058 = vmatprep.subr.bf16.mxu0 %v3139
      %5059 = vmatpush1.bf16.msra.mxu0 %v3138
      %5060 = vmatprep.subr.bf16.mxu0 %v3143
      %5061 = vmatpush1.bf16.msra.mxu0 %v3142
      %5062 = vmatprep.subr.bf16.mxu0 %v3147
      %5063 = vmatpush1.bf16.msra.mxu0 %v3146
      %5064 = vmatprep.subr.bf16.mxu0 %v3151
      %5065 = vmatpush1.bf16.msra.mxu0 %v3150
      %5066 = vmatprep.subr.bf16.mxu0 %v3155
      %5067 = vmatpush1.bf16.msra.mxu0 %v3154
      %5068 = vmatprep.subr.bf16.mxu0 %v3159
      %5069 = vmatpush1.bf16.msra.mxu0 %v3158
      %5070 = vmatprep.subr.bf16.mxu0 %v3163
      %5071 = vmatpush1.bf16.msra.mxu0 %v3162
      %5072 = vmatprep.subr.bf16.mxu0 %v3167
      %5073 = vmatpush1.bf16.msra.mxu0 %v3166
      %5074 = vmatprep.subr.bf16.mxu0 %v3171
      %5075 = vmatpush1.bf16.msra.mxu0 %v3170
      %5076 = vmatprep.subr.bf16.mxu0 %v3175
      %5077 = vmatpush1.bf16.msra.mxu0 %v3174
      %5078 = vmatprep.subr.bf16.mxu0 %v3179
      %5079 = vmatpush1.bf16.msra.mxu0 %v3178
      %5080 = vmatprep.subr.bf16.mxu0 %v3183
      %5081 = vmatpush1.bf16.msra.mxu0 %v3182
      %5082 = vmatprep.subr.bf16.mxu0 %v3187
      %5083 = vmatpush1.bf16.msra.mxu0 %v3186
      %5084 = vmatprep.mubr.bf16.mxu0 %v1333
      %5085 = vmatmul.mubr.bf16.gmra.mrb[0].mxu0 %v1332
      %v5086 = vpop.f32.mrb[0].mxu0
      %v5087 = vadd.f32 %v939, %v5086
      %v5088 = vpop.f32.mrb[0].mxu0
      %v5089 = vadd.f32 %v943, %v5088
      %v5090 = vpop.f32.mrb[0].mxu0
      %v5091 = vadd.f32 %v939, %v5090
      %v5092 = vpop.f32.mrb[0].mxu0
      %v5093 = vadd.f32 %v943, %v5092
      %5094 = vmatprep.mubr.bf16.mxu0 %v1349
      %5095 = vmatmul.mubr.bf16.gmra.mrb[0].mxu0 %v1348
      %v5096 = vpop.f32.mrb[0].mxu0
      %v5097 = vadd.f32 %v939, %v5096
      %v5098 = vpop.f32.mrb[0].mxu0
      %v5099 = vadd.f32 %v943, %v5098
      %v5100 = vpop.f32.mrb[0].mxu0
      %v5101 = vadd.f32 %v939, %v5100
      %v5102 = vpop.f32.mrb[0].mxu0
      %v5103 = vadd.f32 %v943, %v5102
      %5104 = vmatprep.mubr.bf16.mxu0 %v1365
      %5105 = vmatmul.mubr.bf16.gmra.mrb[0].mxu0 %v1364
      %v5106 = vpop.f32.mrb[0].mxu0
      %v5107 = vadd.f32 %v939, %v5106
      %v5108 = vpop.f32.mrb[0].mxu0
      %v5109 = vadd.f32 %v943, %v5108
      %v5110 = vpop.f32.mrb[0].mxu0
      %v5111 = vadd.f32 %v939, %v5110
      %v5112 = vpop.f32.mrb[0].mxu0
      %v5113 = vadd.f32 %v943, %v5112
      %5114 = vmatprep.mubr.bf16.mxu0 %v1381
      %5115 = vmatmul.mubr.bf16.gmra.mrb[0].mxu0 %v1380
      %v5116 = vpop.f32.mrb[0].mxu0
      %v5117 = vadd.f32 %v939, %v5116
      %v5118 = vpop.f32.mrb[0].mxu0
      %v5119 = vadd.f32 %v943, %v5118
      %v5120 = vpop.f32.mrb[0].mxu0
      %v5121 = vadd.f32 %v939, %v5120
      %v5122 = vpop.f32.mrb[0].mxu0
      %v5123 = vadd.f32 %v943, %v5122
      %5124 = vmatprep.mubr.bf16.mxu0 %v1397
      %5125 = vmatmul.mubr.bf16.gmra.mrb[0].mxu0 %v1396
      %v5126 = vpop.f32.mrb[0].mxu0
      %v5127 = vadd.f32 %v939, %v5126
      %v5128 = vpop.f32.mrb[0].mxu0
      %v5129 = vadd.f32 %v943, %v5128
      %v5130 = vpop.f32.mrb[0].mxu0
      %v5131 = vadd.f32 %v939, %v5130
      %v5132 = vpop.f32.mrb[0].mxu0
      %v5133 = vadd.f32 %v943, %v5132
      %5134 = vmatprep.mubr.bf16.mxu0 %v1413
      %5135 = vmatmul.mubr.bf16.gmra.mrb[0].mxu0 %v1412
      %v5136 = vpop.f32.mrb[0].mxu0
      %v5137 = vadd.f32 %v939, %v5136
      %v5138 = vpop.f32.mrb[0].mxu0
      %v5139 = vadd.f32 %v943, %v5138
      %v5140 = vpop.f32.mrb[0].mxu0
      %v5141 = vadd.f32 %v939, %v5140
      %v5142 = vpop.f32.mrb[0].mxu0
      %v5143 = vadd.f32 %v943, %v5142
      %5144 = vmatprep.mubr.bf16.mxu0 %v1429
      %5145 = vmatmul.mubr.bf16.gmra.mrb[0].mxu0 %v1428
      %v5146 = vpop.f32.mrb[0].mxu0
      %v5147 = vadd.f32 %v939, %v5146
      %v5148 = vpop.f32.mrb[0].mxu0
      %v5149 = vadd.f32 %v943, %v5148
      %v5150 = vpop.f32.mrb[0].mxu0
      %v5151 = vadd.f32 %v939, %v5150
      %v5152 = vpop.f32.mrb[0].mxu0
      %v5153 = vadd.f32 %v943, %v5152
      %5154 = vmatprep.mubr.bf16.mxu0 %v1445
      %5155 = vmatmul.mubr.bf16.gmra.mrb[0].mxu0 %v1444
      %v5156 = vpop.f32.mrb[0].mxu0
      %v5157 = vadd.f32 %v939, %v5156
      %v5158 = vpop.f32.mrb[0].mxu0
      %v5159 = vadd.f32 %v943, %v5158
      %v5160 = vpop.f32.mrb[0].mxu0
      %v5161 = vadd.f32 %v939, %v5160
      %v5162 = vpop.f32.mrb[0].mxu0
      %v5163 = vadd.f32 %v943, %v5162
      %5164 = vdwg.mxu0
      %5165 = vmatprep.subr.bf16.mxu0 %v3191
      %5166 = vmatpush1.bf16.msra.mxu0 %v3190
      %5167 = vmatprep.subr.bf16.mxu0 %v3195
      %5168 = vmatpush1.bf16.msra.mxu0 %v3194
      %5169 = vmatprep.subr.bf16.mxu0 %v3199
      %5170 = vmatpush1.bf16.msra.mxu0 %v3198
      %5171 = vmatprep.subr.bf16.mxu0 %v3203
      %5172 = vmatpush1.bf16.msra.mxu0 %v3202
      %5173 = vmatprep.subr.bf16.mxu0 %v3207
      %5174 = vmatpush1.bf16.msra.mxu0 %v3206
      %5175 = vmatprep.subr.bf16.mxu0 %v3211
      %5176 = vmatpush1.bf16.msra.mxu0 %v3210
      %5177 = vmatprep.subr.bf16.mxu0 %v3215
      %5178 = vmatpush1.bf16.msra.mxu0 %v3214
      %5179 = vmatprep.subr.bf16.mxu0 %v3219
      %5180 = vmatpush1.bf16.msra.mxu0 %v3218
      %5181 = vmatprep.subr.bf16.mxu0 %v3223
      %5182 = vmatpush1.bf16.msra.mxu0 %v3222
      %5183 = vmatprep.subr.bf16.mxu0 %v3227
      %5184 = vmatpush1.bf16.msra.mxu0 %v3226
      %5185 = vmatprep.subr.bf16.mxu0 %v3231
      %5186 = vmatpush1.bf16.msra.mxu0 %v3230
      %5187 = vmatprep.subr.bf16.mxu0 %v3235
      %5188 = vmatpush1.bf16.msra.mxu0 %v3234
      %5189 = vmatprep.subr.bf16.mxu0 %v3239
      %5190 = vmatpush1.bf16.msra.mxu0 %v3238
      %5191 = vmatprep.subr.bf16.mxu0 %v3243
      %5192 = vmatpush1.bf16.msra.mxu0 %v3242
      %5193 = vmatprep.subr.bf16.mxu0 %v3247
      %5194 = vmatpush1.bf16.msra.mxu0 %v3246
      %5195 = vmatprep.subr.bf16.mxu0 %v3251
      %5196 = vmatpush1.bf16.msra.mxu0 %v3250
      %5197 = vmatprep.mubr.bf16.mxu0 %v1335
      %5198 = vmatmul.mubr.bf16.gmra.mrb[0].mxu0 %v1334
      %v5199 = vpop.f32.mrb[0].mxu0
      %v5200 = vadd.f32 %v5087, %v5199
      %v5201 = vpop.f32.mrb[0].mxu0
      %v5202 = vadd.f32 %v5089, %v5201
      %v5203 = vpop.f32.mrb[0].mxu0
      %v5204 = vadd.f32 %v5091, %v5203
      %v5205 = vpop.f32.mrb[0].mxu0
      %v5206 = vadd.f32 %v5093, %v5205
      %5207 = vmatprep.mubr.bf16.mxu0 %v1351
      %5208 = vmatmul.mubr.bf16.gmra.mrb[0].mxu0 %v1350
      %v5209 = vpop.f32.mrb[0].mxu0
      %v5210 = vadd.f32 %v5097, %v5209
      %v5211 = vpop.f32.mrb[0].mxu0
      %v5212 = vadd.f32 %v5099, %v5211
      %v5213 = vpop.f32.mrb[0].mxu0
      %v5214 = vadd.f32 %v5101, %v5213
      %v5215 = vpop.f32.mrb[0].mxu0
      %v5216 = vadd.f32 %v5103, %v5215
      %5217 = vmatprep.mubr.bf16.mxu0 %v1367
      %5218 = vmatmul.mubr.bf16.gmra.mrb[0].mxu0 %v1366
      %v5219 = vpop.f32.mrb[0].mxu0
      %v5220 = vadd.f32 %v5107, %v5219
      %v5221 = vpop.f32.mrb[0].mxu0
      %v5222 = vadd.f32 %v5109, %v5221
      %v5223 = vpop.f32.mrb[0].mxu0
      %v5224 = vadd.f32 %v5111, %v5223
      %v5225 = vpop.f32.mrb[0].mxu0
      %v5226 = vadd.f32 %v5113, %v5225
      %5227 = vmatprep.mubr.bf16.mxu0 %v1383
      %5228 = vmatmul.mubr.bf16.gmra.mrb[0].mxu0 %v1382
      %v5229 = vpop.f32.mrb[0].mxu0
      %v5230 = vadd.f32 %v5117, %v5229
      %v5231 = vpop.f32.mrb[0].mxu0
      %v5232 = vadd.f32 %v5119, %v5231
      %v5233 = vpop.f32.mrb[0].mxu0
      %v5234 = vadd.f32 %v5121, %v5233
      %v5235 = vpop.f32.mrb[0].mxu0
      %v5236 = vadd.f32 %v5123, %v5235
      %5237 = vmatprep.mubr.bf16.mxu0 %v1399
      %5238 = vmatmul.mubr.bf16.gmra.mrb[0].mxu0 %v1398
      %v5239 = vpop.f32.mrb[0].mxu0
      %v5240 = vadd.f32 %v5127, %v5239
      %v5241 = vpop.f32.mrb[0].mxu0
      %v5242 = vadd.f32 %v5129, %v5241
      %v5243 = vpop.f32.mrb[0].mxu0
      %v5244 = vadd.f32 %v5131, %v5243
      %v5245 = vpop.f32.mrb[0].mxu0
      %v5246 = vadd.f32 %v5133, %v5245
      %5247 = vmatprep.mubr.bf16.mxu0 %v1415
      %5248 = vmatmul.mubr.bf16.gmra.mrb[0].mxu0 %v1414
      %v5249 = vpop.f32.mrb[0].mxu0
      %v5250 = vadd.f32 %v5137, %v5249
      %v5251 = vpop.f32.mrb[0].mxu0
      %v5252 = vadd.f32 %v5139, %v5251
      %v5253 = vpop.f32.mrb[0].mxu0
      %v5254 = vadd.f32 %v5141, %v5253
      %v5255 = vpop.f32.mrb[0].mxu0
      %v5256 = vadd.f32 %v5143, %v5255
      %5257 = vmatprep.mubr.bf16.mxu0 %v1431
      %5258 = vmatmul.mubr.bf16.gmra.mrb[0].mxu0 %v1430
      %v5259 = vpop.f32.mrb[0].mxu0
      %v5260 = vadd.f32 %v5147, %v5259
      %v5261 = vpop.f32.mrb[0].mxu0
      %v5262 = vadd.f32 %v5149, %v5261
      %v5263 = vpop.f32.mrb[0].mxu0
      %v5264 = vadd.f32 %v5151, %v5263
      %v5265 = vpop.f32.mrb[0].mxu0
      %v5266 = vadd.f32 %v5153, %v5265
      %5267 = vmatprep.mubr.bf16.mxu0 %v1447
      %5268 = vmatmul.mubr.bf16.gmra.mrb[0].mxu0 %v1446
      %v5269 = vpop.f32.mrb[0].mxu0
      %v5270 = vadd.f32 %v5157, %v5269
      %v5271 = vpop.f32.mrb[0].mxu0
      %v5272 = vadd.f32 %v5159, %v5271
      %v5273 = vpop.f32.mrb[0].mxu0
      %v5274 = vadd.f32 %v5161, %v5273
      %v5275 = vpop.f32.mrb[0].mxu0
      %v5276 = vadd.f32 %v5163, %v5275
      %5277 = vdwg.mxu0
      %5278 = vmatprep.subr.bf16.mxu0 %v3255
      %5279 = vmatpush1.bf16.msra.mxu0 %v3254
      %5280 = vmatprep.subr.bf16.mxu0 %v3259
      %5281 = vmatpush1.bf16.msra.mxu0 %v3258
      %5282 = vmatprep.subr.bf16.mxu0 %v3263
      %5283 = vmatpush1.bf16.msra.mxu0 %v3262
      %5284 = vmatprep.subr.bf16.mxu0 %v3267
      %5285 = vmatpush1.bf16.msra.mxu0 %v3266
      %5286 = vmatprep.subr.bf16.mxu0 %v3271
      %5287 = vmatpush1.bf16.msra.mxu0 %v3270
      %5288 = vmatprep.subr.bf16.mxu0 %v3275
      %5289 = vmatpush1.bf16.msra.mxu0 %v3274
      %5290 = vmatprep.subr.bf16.mxu0 %v3279
      %5291 = vmatpush1.bf16.msra.mxu0 %v3278
      %5292 = vmatprep.subr.bf16.mxu0 %v3283
      %5293 = vmatpush1.bf16.msra.mxu0 %v3282
      %5294 = vmatprep.subr.bf16.mxu0 %v3287
      %5295 = vmatpush1.bf16.msra.mxu0 %v3286
      %5296 = vmatprep.subr.bf16.mxu0 %v3291
      %5297 = vmatpush1.bf16.msra.mxu0 %v3290
      %5298 = vmatprep.subr.bf16.mxu0 %v3295
      %5299 = vmatpush1.bf16.msra.mxu0 %v3294
      %5300 = vmatprep.subr.bf16.mxu0 %v3299
      %5301 = vmatpush1.bf16.msra.mxu0 %v3298
      %5302 = vmatprep.subr.bf16.mxu0 %v3303
      %5303 = vmatpush1.bf16.msra.mxu0 %v3302
      %5304 = vmatprep.subr.bf16.mxu0 %v3307
      %5305 = vmatpush1.bf16.msra.mxu0 %v3306
      %5306 = vmatprep.subr.bf16.mxu0 %v3311
      %5307 = vmatpush1.bf16.msra.mxu0 %v3310
      %5308 = vmatprep.subr.bf16.mxu0 %v3315
      %5309 = vmatpush1.bf16.msra.mxu0 %v3314
      %5310 = vmatprep.mubr.bf16.mxu0 %v1337
      %5311 = vmatmul.mubr.bf16.gmra.mrb[0].mxu0 %v1336
      %v5312 = vpop.f32.mrb[0].mxu0
      %v5313 = vadd.f32 %v5200, %v5312
      %v5314 = vpop.f32.mrb[0].mxu0
      %v5315 = vadd.f32 %v5202, %v5314
      %v5316 = vpop.f32.mrb[0].mxu0
      %v5317 = vadd.f32 %v5204, %v5316
      %v5318 = vpop.f32.mrb[0].mxu0
      %v5319 = vadd.f32 %v5206, %v5318
      %5320 = vmatprep.mubr.bf16.mxu0 %v1353
      %5321 = vmatmul.mubr.bf16.gmra.mrb[0].mxu0 %v1352
      %v5322 = vpop.f32.mrb[0].mxu0
      %v5323 = vadd.f32 %v5210, %v5322
      %v5324 = vpop.f32.mrb[0].mxu0
      %v5325 = vadd.f32 %v5212, %v5324
      %v5326 = vpop.f32.mrb[0].mxu0
      %v5327 = vadd.f32 %v5214, %v5326
      %v5328 = vpop.f32.mrb[0].mxu0
      %v5329 = vadd.f32 %v5216, %v5328
      %5330 = vmatprep.mubr.bf16.mxu0 %v1369
      %5331 = vmatmul.mubr.bf16.gmra.mrb[0].mxu0 %v1368
      %v5332 = vpop.f32.mrb[0].mxu0
      %v5333 = vadd.f32 %v5220, %v5332
      %v5334 = vpop.f32.mrb[0].mxu0
      %v5335 = vadd.f32 %v5222, %v5334
      %v5336 = vpop.f32.mrb[0].mxu0
      %v5337 = vadd.f32 %v5224, %v5336
      %v5338 = vpop.f32.mrb[0].mxu0
      %v5339 = vadd.f32 %v5226, %v5338
      %5340 = vmatprep.mubr.bf16.mxu0 %v1385
      %5341 = vmatmul.mubr.bf16.gmra.mrb[0].mxu0 %v1384
      %v5342 = vpop.f32.mrb[0].mxu0
      %v5343 = vadd.f32 %v5230, %v5342
      %v5344 = vpop.f32.mrb[0].mxu0
      %v5345 = vadd.f32 %v5232, %v5344
      %v5346 = vpop.f32.mrb[0].mxu0
      %v5347 = vadd.f32 %v5234, %v5346
      %v5348 = vpop.f32.mrb[0].mxu0
      %v5349 = vadd.f32 %v5236, %v5348
      %5350 = vmatprep.mubr.bf16.mxu0 %v1401
      %5351 = vmatmul.mubr.bf16.gmra.mrb[0].mxu0 %v1400
      %v5352 = vpop.f32.mrb[0].mxu0
      %v5353 = vadd.f32 %v5240, %v5352
      %v5354 = vpop.f32.mrb[0].mxu0
      %v5355 = vadd.f32 %v5242, %v5354
      %v5356 = vpop.f32.mrb[0].mxu0
      %v5357 = vadd.f32 %v5244, %v5356
      %v5358 = vpop.f32.mrb[0].mxu0
      %v5359 = vadd.f32 %v5246, %v5358
      %5360 = vmatprep.mubr.bf16.mxu0 %v1417
      %5361 = vmatmul.mubr.bf16.gmra.mrb[0].mxu0 %v1416
      %v5362 = vpop.f32.mrb[0].mxu0
      %v5363 = vadd.f32 %v5250, %v5362
      %v5364 = vpop.f32.mrb[0].mxu0
      %v5365 = vadd.f32 %v5252, %v5364
      %v5366 = vpop.f32.mrb[0].mxu0
      %v5367 = vadd.f32 %v5254, %v5366
      %v5368 = vpop.f32.mrb[0].mxu0
      %v5369 = vadd.f32 %v5256, %v5368
      %5370 = vmatprep.mubr.bf16.mxu0 %v1433
      %5371 = vmatmul.mubr.bf16.gmra.mrb[0].mxu0 %v1432
      %v5372 = vpop.f32.mrb[0].mxu0
      %v5373 = vadd.f32 %v5260, %v5372
      %v5374 = vpop.f32.mrb[0].mxu0
      %v5375 = vadd.f32 %v5262, %v5374
      %v5376 = vpop.f32.mrb[0].mxu0
      %v5377 = vadd.f32 %v5264, %v5376
      %v5378 = vpop.f32.mrb[0].mxu0
      %v5379 = vadd.f32 %v5266, %v5378
      %5380 = vmatprep.mubr.bf16.mxu0 %v1449
      %5381 = vmatmul.mubr.bf16.gmra.mrb[0].mxu0 %v1448
      %v5382 = vpop.f32.mrb[0].mxu0
      %v5383 = vadd.f32 %v5270, %v5382
      %v5384 = vpop.f32.mrb[0].mxu0
      %v5385 = vadd.f32 %v5272, %v5384
      %v5386 = vpop.f32.mrb[0].mxu0
      %v5387 = vadd.f32 %v5274, %v5386
      %v5388 = vpop.f32.mrb[0].mxu0
      %v5389 = vadd.f32 %v5276, %v5388
      %5390 = vdwg.mxu0
      %5391 = vmatprep.subr.bf16.mxu0 %v3319
      %5392 = vmatpush1.bf16.msra.mxu0 %v3318
      %5393 = vmatprep.subr.bf16.mxu0 %v3323
      %5394 = vmatpush1.bf16.msra.mxu0 %v3322
      %5395 = vmatprep.subr.bf16.mxu0 %v3327
      %5396 = vmatpush1.bf16.msra.mxu0 %v3326
      %5397 = vmatprep.subr.bf16.mxu0 %v3331
      %5398 = vmatpush1.bf16.msra.mxu0 %v3330
      %5399 = vmatprep.subr.bf16.mxu0 %v3335
      %5400 = vmatpush1.bf16.msra.mxu0 %v3334
      %5401 = vmatprep.subr.bf16.mxu0 %v3339
      %5402 = vmatpush1.bf16.msra.mxu0 %v3338
      %5403 = vmatprep.subr.bf16.mxu0 %v3343
      %5404 = vmatpush1.bf16.msra.mxu0 %v3342
      %5405 = vmatprep.subr.bf16.mxu0 %v3347
      %5406 = vmatpush1.bf16.msra.mxu0 %v3346
      %5407 = vmatprep.subr.bf16.mxu0 %v3351
      %5408 = vmatpush1.bf16.msra.mxu0 %v3350
      %5409 = vmatprep.subr.bf16.mxu0 %v3355
      %5410 = vmatpush1.bf16.msra.mxu0 %v3354
      %5411 = vmatprep.subr.bf16.mxu0 %v3359
      %5412 = vmatpush1.bf16.msra.mxu0 %v3358
      %5413 = vmatprep.subr.bf16.mxu0 %v3363
      %5414 = vmatpush1.bf16.msra.mxu0 %v3362
      %5415 = vmatprep.subr.bf16.mxu0 %v3367
      %5416 = vmatpush1.bf16.msra.mxu0 %v3366
      %5417 = vmatprep.subr.bf16.mxu0 %v3371
      %5418 = vmatpush1.bf16.msra.mxu0 %v3370
      %5419 = vmatprep.subr.bf16.mxu0 %v3375
      %5420 = vmatpush1.bf16.msra.mxu0 %v3374
      %5421 = vmatprep.subr.bf16.mxu0 %v3379
      %5422 = vmatpush1.bf16.msra.mxu0 %v3378
      %5423 = vmatprep.mubr.bf16.mxu0 %v1339
      %5424 = vmatmul.mubr.bf16.gmra.mrb[0].mxu0 %v1338
      %v5425 = vpop.f32.mrb[0].mxu0
      %v5426 = vadd.f32 %v5313, %v5425
      %v5427 = vpop.f32.mrb[0].mxu0
      %v5428 = vadd.f32 %v5315, %v5427
      %v5429 = vpop.f32.mrb[0].mxu0
      %v5430 = vadd.f32 %v5317, %v5429
      %v5431 = vpop.f32.mrb[0].mxu0
      %v5432 = vadd.f32 %v5319, %v5431
      %5433 = vmatprep.mubr.bf16.mxu0 %v1355
      %5434 = vmatmul.mubr.bf16.gmra.mrb[0].mxu0 %v1354
      %v5435 = vpop.f32.mrb[0].mxu0
      %v5436 = vadd.f32 %v5323, %v5435
      %v5437 = vpop.f32.mrb[0].mxu0
      %v5438 = vadd.f32 %v5325, %v5437
      %v5439 = vpop.f32.mrb[0].mxu0
      %v5440 = vadd.f32 %v5327, %v5439
      %v5441 = vpop.f32.mrb[0].mxu0
      %v5442 = vadd.f32 %v5329, %v5441
      %5443 = vmatprep.mubr.bf16.mxu0 %v1371
      %5444 = vmatmul.mubr.bf16.gmra.mrb[0].mxu0 %v1370
      %v5445 = vpop.f32.mrb[0].mxu0
      %v5446 = vadd.f32 %v5333, %v5445
      %v5447 = vpop.f32.mrb[0].mxu0
      %v5448 = vadd.f32 %v5335, %v5447
      %v5449 = vpop.f32.mrb[0].mxu0
      %v5450 = vadd.f32 %v5337, %v5449
      %v5451 = vpop.f32.mrb[0].mxu0
      %v5452 = vadd.f32 %v5339, %v5451
      %5453 = vmatprep.mubr.bf16.mxu0 %v1387
      %5454 = vmatmul.mubr.bf16.gmra.mrb[0].mxu0 %v1386
      %v5455 = vpop.f32.mrb[0].mxu0
      %v5456 = vadd.f32 %v5343, %v5455
      %v5457 = vpop.f32.mrb[0].mxu0
      %v5458 = vadd.f32 %v5345, %v5457
      %v5459 = vpop.f32.mrb[0].mxu0
      %v5460 = vadd.f32 %v5347, %v5459
      %v5461 = vpop.f32.mrb[0].mxu0
      %v5462 = vadd.f32 %v5349, %v5461
      %5463 = vmatprep.mubr.bf16.mxu0 %v1403
      %5464 = vmatmul.mubr.bf16.gmra.mrb[0].mxu0 %v1402
      %v5465 = vpop.f32.mrb[0].mxu0
      %v5466 = vadd.f32 %v5353, %v5465
      %v5467 = vpop.f32.mrb[0].mxu0
      %v5468 = vadd.f32 %v5355, %v5467
      %v5469 = vpop.f32.mrb[0].mxu0
      %v5470 = vadd.f32 %v5357, %v5469
      %v5471 = vpop.f32.mrb[0].mxu0
      %v5472 = vadd.f32 %v5359, %v5471
      %5473 = vmatprep.mubr.bf16.mxu0 %v1419
      %5474 = vmatmul.mubr.bf16.gmra.mrb[0].mxu0 %v1418
      %v5475 = vpop.f32.mrb[0].mxu0
      %v5476 = vadd.f32 %v5363, %v5475
      %v5477 = vpop.f32.mrb[0].mxu0
      %v5478 = vadd.f32 %v5365, %v5477
      %v5479 = vpop.f32.mrb[0].mxu0
      %v5480 = vadd.f32 %v5367, %v5479
      %v5481 = vpop.f32.mrb[0].mxu0
      %v5482 = vadd.f32 %v5369, %v5481
      %5483 = vmatprep.mubr.bf16.mxu0 %v1435
      %5484 = vmatmul.mubr.bf16.gmra.mrb[0].mxu0 %v1434
      %v5485 = vpop.f32.mrb[0].mxu0
      %v5486 = vadd.f32 %v5373, %v5485
      %v5487 = vpop.f32.mrb[0].mxu0
      %v5488 = vadd.f32 %v5375, %v5487
      %v5489 = vpop.f32.mrb[0].mxu0
      %v5490 = vadd.f32 %v5377, %v5489
      %v5491 = vpop.f32.mrb[0].mxu0
      %v5492 = vadd.f32 %v5379, %v5491
      %5493 = vmatprep.mubr.bf16.mxu0 %v1451
      %5494 = vmatmul.mubr.bf16.gmra.mrb[0].mxu0 %v1450
      %v5495 = vpop.f32.mrb[0].mxu0
      %v5496 = vadd.f32 %v5383, %v5495
      %v5497 = vpop.f32.mrb[0].mxu0
      %v5498 = vadd.f32 %v5385, %v5497
      %v5499 = vpop.f32.mrb[0].mxu0
      %v5500 = vadd.f32 %v5387, %v5499
      %v5501 = vpop.f32.mrb[0].mxu0
      %v5502 = vadd.f32 %v5389, %v5501
      %5503 = vdwg.mxu0
      %5504 = vmatprep.subr.bf16.mxu0 %v3383
      %5505 = vmatpush1.bf16.msra.mxu0 %v3382
      %5506 = vmatprep.subr.bf16.mxu0 %v3387
      %5507 = vmatpush1.bf16.msra.mxu0 %v3386
      %5508 = vmatprep.subr.bf16.mxu0 %v3391
      %5509 = vmatpush1.bf16.msra.mxu0 %v3390
      %5510 = vmatprep.subr.bf16.mxu0 %v3395
      %5511 = vmatpush1.bf16.msra.mxu0 %v3394
      %5512 = vmatprep.subr.bf16.mxu0 %v3399
      %5513 = vmatpush1.bf16.msra.mxu0 %v3398
      %5514 = vmatprep.subr.bf16.mxu0 %v3403
      %5515 = vmatpush1.bf16.msra.mxu0 %v3402
      %5516 = vmatprep.subr.bf16.mxu0 %v3407
      %5517 = vmatpush1.bf16.msra.mxu0 %v3406
      %5518 = vmatprep.subr.bf16.mxu0 %v3411
      %5519 = vmatpush1.bf16.msra.mxu0 %v3410
      %5520 = vmatprep.subr.bf16.mxu0 %v3415
      %5521 = vmatpush1.bf16.msra.mxu0 %v3414
      %5522 = vmatprep.subr.bf16.mxu0 %v3419
      %5523 = vmatpush1.bf16.msra.mxu0 %v3418
      %5524 = vmatprep.subr.bf16.mxu0 %v3423
      %5525 = vmatpush1.bf16.msra.mxu0 %v3422
      %5526 = vmatprep.subr.bf16.mxu0 %v3427
      %5527 = vmatpush1.bf16.msra.mxu0 %v3426
      %5528 = vmatprep.subr.bf16.mxu0 %v3431
      %5529 = vmatpush1.bf16.msra.mxu0 %v3430
      %5530 = vmatprep.subr.bf16.mxu0 %v3435
      %5531 = vmatpush1.bf16.msra.mxu0 %v3434
      %5532 = vmatprep.subr.bf16.mxu0 %v3439
      %5533 = vmatpush1.bf16.msra.mxu0 %v3438
      %5534 = vmatprep.subr.bf16.mxu0 %v3443
      %5535 = vmatpush1.bf16.msra.mxu0 %v3442
      %5536 = vmatprep.mubr.bf16.mxu0 %v1341
      %5537 = vmatmul.mubr.bf16.gmra.mrb[0].mxu0 %v1340
      %v5538 = vpop.f32.mrb[0].mxu0
      %v5539 = vadd.f32 %v5426, %v5538
      %v5540 = vpop.f32.mrb[0].mxu0
      %v5541 = vadd.f32 %v5428, %v5540
      %v5542 = vpop.f32.mrb[0].mxu0
      %v5543 = vadd.f32 %v5430, %v5542
      %v5544 = vpop.f32.mrb[0].mxu0
      %v5545 = vadd.f32 %v5432, %v5544
      %5546 = vmatprep.mubr.bf16.mxu0 %v1357
      %5547 = vmatmul.mubr.bf16.gmra.mrb[0].mxu0 %v1356
      %v5548 = vpop.f32.mrb[0].mxu0
      %v5549 = vadd.f32 %v5436, %v5548
      %v5550 = vpop.f32.mrb[0].mxu0
      %v5551 = vadd.f32 %v5438, %v5550
      %v5552 = vpop.f32.mrb[0].mxu0
      %v5553 = vadd.f32 %v5440, %v5552
      %v5554 = vpop.f32.mrb[0].mxu0
      %v5555 = vadd.f32 %v5442, %v5554
      %5556 = vmatprep.mubr.bf16.mxu0 %v1373
      %5557 = vmatmul.mubr.bf16.gmra.mrb[0].mxu0 %v1372
      %v5558 = vpop.f32.mrb[0].mxu0
      %v5559 = vadd.f32 %v5446, %v5558
      %v5560 = vpop.f32.mrb[0].mxu0
      %v5561 = vadd.f32 %v5448, %v5560
      %v5562 = vpop.f32.mrb[0].mxu0
      %v5563 = vadd.f32 %v5450, %v5562
      %v5564 = vpop.f32.mrb[0].mxu0
      %v5565 = vadd.f32 %v5452, %v5564
      %5566 = vmatprep.mubr.bf16.mxu0 %v1389
      %5567 = vmatmul.mubr.bf16.gmra.mrb[0].mxu0 %v1388
      %v5568 = vpop.f32.mrb[0].mxu0
      %v5569 = vadd.f32 %v5456, %v5568
      %v5570 = vpop.f32.mrb[0].mxu0
      %v5571 = vadd.f32 %v5458, %v5570
      %v5572 = vpop.f32.mrb[0].mxu0
      %v5573 = vadd.f32 %v5460, %v5572
      %v5574 = vpop.f32.mrb[0].mxu0
      %v5575 = vadd.f32 %v5462, %v5574
      %5576 = vmatprep.mubr.bf16.mxu0 %v1405
      %5577 = vmatmul.mubr.bf16.gmra.mrb[0].mxu0 %v1404
      %v5578 = vpop.f32.mrb[0].mxu0
      %v5579 = vadd.f32 %v5466, %v5578
      %v5580 = vpop.f32.mrb[0].mxu0
      %v5581 = vadd.f32 %v5468, %v5580
      %v5582 = vpop.f32.mrb[0].mxu0
      %v5583 = vadd.f32 %v5470, %v5582
      %v5584 = vpop.f32.mrb[0].mxu0
      %v5585 = vadd.f32 %v5472, %v5584
      %5586 = vmatprep.mubr.bf16.mxu0 %v1421
      %5587 = vmatmul.mubr.bf16.gmra.mrb[0].mxu0 %v1420
      %v5588 = vpop.f32.mrb[0].mxu0
      %v5589 = vadd.f32 %v5476, %v5588
      %v5590 = vpop.f32.mrb[0].mxu0
      %v5591 = vadd.f32 %v5478, %v5590
      %v5592 = vpop.f32.mrb[0].mxu0
      %v5593 = vadd.f32 %v5480, %v5592
      %v5594 = vpop.f32.mrb[0].mxu0
      %v5595 = vadd.f32 %v5482, %v5594
      %5596 = vmatprep.mubr.bf16.mxu0 %v1437
      %5597 = vmatmul.mubr.bf16.gmra.mrb[0].mxu0 %v1436
      %v5598 = vpop.f32.mrb[0].mxu0
      %v5599 = vadd.f32 %v5486, %v5598
      %v5600 = vpop.f32.mrb[0].mxu0
      %v5601 = vadd.f32 %v5488, %v5600
      %v5602 = vpop.f32.mrb[0].mxu0
      %v5603 = vadd.f32 %v5490, %v5602
      %v5604 = vpop.f32.mrb[0].mxu0
      %v5605 = vadd.f32 %v5492, %v5604
      %5606 = vmatprep.mubr.bf16.mxu0 %v1453
      %5607 = vmatmul.mubr.bf16.gmra.mrb[0].mxu0 %v1452
      %v5608 = vpop.f32.mrb[0].mxu0
      %v5609 = vadd.f32 %v5496, %v5608
      %v5610 = vpop.f32.mrb[0].mxu0
      %v5611 = vadd.f32 %v5498, %v5610
      %v5612 = vpop.f32.mrb[0].mxu0
      %v5613 = vadd.f32 %v5500, %v5612
      %v5614 = vpop.f32.mrb[0].mxu0
      %v5615 = vadd.f32 %v5502, %v5614
      %5616 = vdwg.mxu0
      %5617 = vmatprep.subr.bf16.mxu0 %v3447
      %5618 = vmatpush1.bf16.msra.mxu0 %v3446
      %5619 = vmatprep.subr.bf16.mxu0 %v3451
      %5620 = vmatpush1.bf16.msra.mxu0 %v3450
      %5621 = vmatprep.subr.bf16.mxu0 %v3455
      %5622 = vmatpush1.bf16.msra.mxu0 %v3454
      %5623 = vmatprep.subr.bf16.mxu0 %v3459
      %5624 = vmatpush1.bf16.msra.mxu0 %v3458
      %5625 = vmatprep.subr.bf16.mxu0 %v3463
      %5626 = vmatpush1.bf16.msra.mxu0 %v3462
      %5627 = vmatprep.subr.bf16.mxu0 %v3467
      %5628 = vmatpush1.bf16.msra.mxu0 %v3466
      %5629 = vmatprep.subr.bf16.mxu0 %v3471
      %5630 = vmatpush1.bf16.msra.mxu0 %v3470
      %5631 = vmatprep.subr.bf16.mxu0 %v3475
      %5632 = vmatpush1.bf16.msra.mxu0 %v3474
      %5633 = vmatprep.subr.bf16.mxu0 %v3479
      %5634 = vmatpush1.bf16.msra.mxu0 %v3478
      %5635 = vmatprep.subr.bf16.mxu0 %v3483
      %5636 = vmatpush1.bf16.msra.mxu0 %v3482
      %5637 = vmatprep.subr.bf16.mxu0 %v3487
      %5638 = vmatpush1.bf16.msra.mxu0 %v3486
      %5639 = vmatprep.subr.bf16.mxu0 %v3491
      %5640 = vmatpush1.bf16.msra.mxu0 %v3490
      %5641 = vmatprep.subr.bf16.mxu0 %v3495
      %5642 = vmatpush1.bf16.msra.mxu0 %v3494
      %5643 = vmatprep.subr.bf16.mxu0 %v3499
      %5644 = vmatpush1.bf16.msra.mxu0 %v3498
      %5645 = vmatprep.subr.bf16.mxu0 %v3503
      %5646 = vmatpush1.bf16.msra.mxu0 %v3502
      %5647 = vmatprep.subr.bf16.mxu0 %v3507
      %5648 = vmatpush1.bf16.msra.mxu0 %v3506
      %5649 = vmatprep.mubr.bf16.mxu0 %v1343
      %5650 = vmatmul.mubr.bf16.gmra.mrb[0].mxu0 %v1342
      %v5651 = vpop.f32.mrb[0].mxu0
      %v5652 = vadd.f32 %v5539, %v5651
      %v5653 = vpop.f32.mrb[0].mxu0
      %v5654 = vadd.f32 %v5541, %v5653
      %v5655 = vpop.f32.mrb[0].mxu0
      %v5656 = vadd.f32 %v5543, %v5655
      %v5657 = vpop.f32.mrb[0].mxu0
      %v5658 = vadd.f32 %v5545, %v5657
      %5659 = vmatprep.mubr.bf16.mxu0 %v1359
      %5660 = vmatmul.mubr.bf16.gmra.mrb[0].mxu0 %v1358
      %v5661 = vpop.f32.mrb[0].mxu0
      %v5662 = vadd.f32 %v5549, %v5661
      %v5663 = vpop.f32.mrb[0].mxu0
      %v5664 = vadd.f32 %v5551, %v5663
      %v5665 = vpop.f32.mrb[0].mxu0
      %v5666 = vadd.f32 %v5553, %v5665
      %v5667 = vpop.f32.mrb[0].mxu0
      %v5668 = vadd.f32 %v5555, %v5667
      %5669 = vmatprep.mubr.bf16.mxu0 %v1375
      %5670 = vmatmul.mubr.bf16.gmra.mrb[0].mxu0 %v1374
      %v5671 = vpop.f32.mrb[0].mxu0
      %v5672 = vadd.f32 %v5559, %v5671
      %v5673 = vpop.f32.mrb[0].mxu0
      %v5674 = vadd.f32 %v5561, %v5673
      %v5675 = vpop.f32.mrb[0].mxu0
      %v5676 = vadd.f32 %v5563, %v5675
      %v5677 = vpop.f32.mrb[0].mxu0
      %v5678 = vadd.f32 %v5565, %v5677
      %5679 = vmatprep.mubr.bf16.mxu0 %v1391
      %5680 = vmatmul.mubr.bf16.gmra.mrb[0].mxu0 %v1390
      %v5681 = vpop.f32.mrb[0].mxu0
      %v5682 = vadd.f32 %v5569, %v5681
      %v5683 = vpop.f32.mrb[0].mxu0
      %v5684 = vadd.f32 %v5571, %v5683
      %v5685 = vpop.f32.mrb[0].mxu0
      %v5686 = vadd.f32 %v5573, %v5685
      %v5687 = vpop.f32.mrb[0].mxu0
      %v5688 = vadd.f32 %v5575, %v5687
      %5689 = vmatprep.mubr.bf16.mxu0 %v1407
      %5690 = vmatmul.mubr.bf16.gmra.mrb[0].mxu0 %v1406
      %v5691 = vpop.f32.mrb[0].mxu0
      %v5692 = vadd.f32 %v5579, %v5691
      %v5693 = vpop.f32.mrb[0].mxu0
      %v5694 = vadd.f32 %v5581, %v5693
      %v5695 = vpop.f32.mrb[0].mxu0
      %v5696 = vadd.f32 %v5583, %v5695
      %v5697 = vpop.f32.mrb[0].mxu0
      %v5698 = vadd.f32 %v5585, %v5697
      %5699 = vmatprep.mubr.bf16.mxu0 %v1423
      %5700 = vmatmul.mubr.bf16.gmra.mrb[0].mxu0 %v1422
      %v5701 = vpop.f32.mrb[0].mxu0
      %v5702 = vadd.f32 %v5589, %v5701
      %v5703 = vpop.f32.mrb[0].mxu0
      %v5704 = vadd.f32 %v5591, %v5703
      %v5705 = vpop.f32.mrb[0].mxu0
      %v5706 = vadd.f32 %v5593, %v5705
      %v5707 = vpop.f32.mrb[0].mxu0
      %v5708 = vadd.f32 %v5595, %v5707
      %5709 = vmatprep.mubr.bf16.mxu0 %v1439
      %5710 = vmatmul.mubr.bf16.gmra.mrb[0].mxu0 %v1438
      %v5711 = vpop.f32.mrb[0].mxu0
      %v5712 = vadd.f32 %v5599, %v5711
      %v5713 = vpop.f32.mrb[0].mxu0
      %v5714 = vadd.f32 %v5601, %v5713
      %v5715 = vpop.f32.mrb[0].mxu0
      %v5716 = vadd.f32 %v5603, %v5715
      %v5717 = vpop.f32.mrb[0].mxu0
      %v5718 = vadd.f32 %v5605, %v5717
      %5719 = vmatprep.mubr.bf16.mxu0 %v1455
      %5720 = vmatmul.mubr.bf16.gmra.mrb[0].mxu0 %v1454
      %v5721 = vpop.f32.mrb[0].mxu0
      %v5722 = vadd.f32 %v5609, %v5721
      %v5723 = vpop.f32.mrb[0].mxu0
      %v5724 = vadd.f32 %v5611, %v5723
      %v5725 = vpop.f32.mrb[0].mxu0
      %v5726 = vadd.f32 %v5613, %v5725
      %v5727 = vpop.f32.mrb[0].mxu0
      %v5728 = vadd.f32 %v5615, %v5727
      %5729 = vdwg.mxu0
      %5730 = vmatprep.subr.bf16.mxu0 %v3511
      %5731 = vmatpush1.bf16.msra.mxu0 %v3510
      %5732 = vmatprep.subr.bf16.mxu0 %v3515
      %5733 = vmatpush1.bf16.msra.mxu0 %v3514
      %5734 = vmatprep.subr.bf16.mxu0 %v3519
      %5735 = vmatpush1.bf16.msra.mxu0 %v3518
      %5736 = vmatprep.subr.bf16.mxu0 %v3523
      %5737 = vmatpush1.bf16.msra.mxu0 %v3522
      %5738 = vmatprep.subr.bf16.mxu0 %v3527
      %5739 = vmatpush1.bf16.msra.mxu0 %v3526
      %5740 = vmatprep.subr.bf16.mxu0 %v3531
      %5741 = vmatpush1.bf16.msra.mxu0 %v3530
      %5742 = vmatprep.subr.bf16.mxu0 %v3535
      %5743 = vmatpush1.bf16.msra.mxu0 %v3534
      %5744 = vmatprep.subr.bf16.mxu0 %v3539
      %5745 = vmatpush1.bf16.msra.mxu0 %v3538
      %5746 = vmatprep.subr.bf16.mxu0 %v3543
      %5747 = vmatpush1.bf16.msra.mxu0 %v3542
      %5748 = vmatprep.subr.bf16.mxu0 %v3547
      %5749 = vmatpush1.bf16.msra.mxu0 %v3546
      %5750 = vmatprep.subr.bf16.mxu0 %v3551
      %5751 = vmatpush1.bf16.msra.mxu0 %v3550
      %5752 = vmatprep.subr.bf16.mxu0 %v3555
      %5753 = vmatpush1.bf16.msra.mxu0 %v3554
      %5754 = vmatprep.subr.bf16.mxu0 %v3559
      %5755 = vmatpush1.bf16.msra.mxu0 %v3558
      %5756 = vmatprep.subr.bf16.mxu0 %v3563
      %5757 = vmatpush1.bf16.msra.mxu0 %v3562
      %5758 = vmatprep.subr.bf16.mxu0 %v3567
      %5759 = vmatpush1.bf16.msra.mxu0 %v3566
      %5760 = vmatprep.subr.bf16.mxu0 %v3571
      %5761 = vmatpush1.bf16.msra.mxu0 %v3570
      %5762 = vmatprep.mubr.bf16.mxu0 %v1345
      %5763 = vmatmul.mubr.bf16.gmra.mrb[0].mxu0 %v1344
      %v5764 = vpop.f32.mrb[0].mxu0
      %v5765 = vadd.f32 %v5652, %v5764
      %v5766 = vpop.f32.mrb[0].mxu0
      %v5767 = vadd.f32 %v5654, %v5766
      %v5768 = vpop.f32.mrb[0].mxu0
      %v5769 = vadd.f32 %v5656, %v5768
      %v5770 = vpop.f32.mrb[0].mxu0
      %v5771 = vadd.f32 %v5658, %v5770
      %5772 = vmatprep.mubr.bf16.mxu0 %v1361
      %5773 = vmatmul.mubr.bf16.gmra.mrb[0].mxu0 %v1360
      %v5774 = vpop.f32.mrb[0].mxu0
      %v5775 = vadd.f32 %v5662, %v5774
      %v5776 = vpop.f32.mrb[0].mxu0
      %v5777 = vadd.f32 %v5664, %v5776
      %v5778 = vpop.f32.mrb[0].mxu0
      %v5779 = vadd.f32 %v5666, %v5778
      %v5780 = vpop.f32.mrb[0].mxu0
      %v5781 = vadd.f32 %v5668, %v5780
      %5782 = vmatprep.mubr.bf16.mxu0 %v1377
      %5783 = vmatmul.mubr.bf16.gmra.mrb[0].mxu0 %v1376
      %v5784 = vpop.f32.mrb[0].mxu0
      %v5785 = vadd.f32 %v5672, %v5784
      %v5786 = vpop.f32.mrb[0].mxu0
      %v5787 = vadd.f32 %v5674, %v5786
      %v5788 = vpop.f32.mrb[0].mxu0
      %v5789 = vadd.f32 %v5676, %v5788
      %v5790 = vpop.f32.mrb[0].mxu0
      %v5791 = vadd.f32 %v5678, %v5790
      %5792 = vmatprep.mubr.bf16.mxu0 %v1393
      %5793 = vmatmul.mubr.bf16.gmra.mrb[0].mxu0 %v1392
      %v5794 = vpop.f32.mrb[0].mxu0
      %v5795 = vadd.f32 %v5682, %v5794
      %v5796 = vpop.f32.mrb[0].mxu0
      %v5797 = vadd.f32 %v5684, %v5796
      %v5798 = vpop.f32.mrb[0].mxu0
      %v5799 = vadd.f32 %v5686, %v5798
      %v5800 = vpop.f32.mrb[0].mxu0
      %v5801 = vadd.f32 %v5688, %v5800
      %5802 = vmatprep.mubr.bf16.mxu0 %v1409
      %5803 = vmatmul.mubr.bf16.gmra.mrb[0].mxu0 %v1408
      %v5804 = vpop.f32.mrb[0].mxu0
      %v5805 = vadd.f32 %v5692, %v5804
      %v5806 = vpop.f32.mrb[0].mxu0
      %v5807 = vadd.f32 %v5694, %v5806
      %v5808 = vpop.f32.mrb[0].mxu0
      %v5809 = vadd.f32 %v5696, %v5808
      %v5810 = vpop.f32.mrb[0].mxu0
      %v5811 = vadd.f32 %v5698, %v5810
      %5812 = vmatprep.mubr.bf16.mxu0 %v1425
      %5813 = vmatmul.mubr.bf16.gmra.mrb[0].mxu0 %v1424
      %v5814 = vpop.f32.mrb[0].mxu0
      %v5815 = vadd.f32 %v5702, %v5814
      %v5816 = vpop.f32.mrb[0].mxu0
      %v5817 = vadd.f32 %v5704, %v5816
      %v5818 = vpop.f32.mrb[0].mxu0
      %v5819 = vadd.f32 %v5706, %v5818
      %v5820 = vpop.f32.mrb[0].mxu0
      %v5821 = vadd.f32 %v5708, %v5820
      %5822 = vmatprep.mubr.bf16.mxu0 %v1441
      %5823 = vmatmul.mubr.bf16.gmra.mrb[0].mxu0 %v1440
      %v5824 = vpop.f32.mrb[0].mxu0
      %v5825 = vadd.f32 %v5712, %v5824
      %v5826 = vpop.f32.mrb[0].mxu0
      %v5827 = vadd.f32 %v5714, %v5826
      %v5828 = vpop.f32.mrb[0].mxu0
      %v5829 = vadd.f32 %v5716, %v5828
      %v5830 = vpop.f32.mrb[0].mxu0
      %v5831 = vadd.f32 %v5718, %v5830
      %5832 = vmatprep.mubr.bf16.mxu0 %v1457
      %5833 = vmatmul.mubr.bf16.gmra.mrb[0].mxu0 %v1456
      %v5834 = vpop.f32.mrb[0].mxu0
      %v5835 = vadd.f32 %v5722, %v5834
      %v5836 = vpop.f32.mrb[0].mxu0
      %v5837 = vadd.f32 %v5724, %v5836
      %v5838 = vpop.f32.mrb[0].mxu0
      %v5839 = vadd.f32 %v5726, %v5838
      %v5840 = vpop.f32.mrb[0].mxu0
      %v5841 = vadd.f32 %v5728, %v5840
      %5842 = vdwg.mxu0
      %5843 = vmatprep.subr.bf16.mxu0 %v3575
      %5844 = vmatpush1.bf16.msra.mxu0 %v3574
      %5845 = vmatprep.subr.bf16.mxu0 %v3579
      %5846 = vmatpush1.bf16.msra.mxu0 %v3578
      %5847 = vmatprep.subr.bf16.mxu0 %v3583
      %5848 = vmatpush1.bf16.msra.mxu0 %v3582
      %5849 = vmatprep.subr.bf16.mxu0 %v3587
      %5850 = vmatpush1.bf16.msra.mxu0 %v3586
      %5851 = vmatprep.subr.bf16.mxu0 %v3591
      %5852 = vmatpush1.bf16.msra.mxu0 %v3590
      %5853 = vmatprep.subr.bf16.mxu0 %v3595
      %5854 = vmatpush1.bf16.msra.mxu0 %v3594
      %5855 = vmatprep.subr.bf16.mxu0 %v3599
      %5856 = vmatpush1.bf16.msra.mxu0 %v3598
      %5857 = vmatprep.subr.bf16.mxu0 %v3603
      %5858 = vmatpush1.bf16.msra.mxu0 %v3602
      %5859 = vmatprep.subr.bf16.mxu0 %v3607
      %5860 = vmatpush1.bf16.msra.mxu0 %v3606
      %5861 = vmatprep.subr.bf16.mxu0 %v3611
      %5862 = vmatpush1.bf16.msra.mxu0 %v3610
      %5863 = vmatprep.subr.bf16.mxu0 %v3615
      %5864 = vmatpush1.bf16.msra.mxu0 %v3614
      %5865 = vmatprep.subr.bf16.mxu0 %v3619
      %5866 = vmatpush1.bf16.msra.mxu0 %v3618
      %5867 = vmatprep.subr.bf16.mxu0 %v3623
      %5868 = vmatpush1.bf16.msra.mxu0 %v3622
      %5869 = vmatprep.subr.bf16.mxu0 %v3627
      %5870 = vmatpush1.bf16.msra.mxu0 %v3626
      %5871 = vmatprep.subr.bf16.mxu0 %v3631
      %5872 = vmatpush1.bf16.msra.mxu0 %v3630
      %5873 = vmatprep.subr.bf16.mxu0 %v3635
      %5874 = vmatpush1.bf16.msra.mxu0 %v3634
      %5875 = vmatprep.mubr.bf16.mxu0 %v1347
      %5876 = vmatmul.mubr.bf16.gmra.mrb[0].mxu0 %v1346
      %v5877 = vpop.f32.mrb[0].mxu0
      %v5878 = vadd.f32 %v5765, %v5877
      %v5879 = vpop.f32.mrb[0].mxu0
      %v5880 = vadd.f32 %v5767, %v5879
      %v5881 = vpop.f32.mrb[0].mxu0
      %v5882 = vadd.f32 %v5769, %v5881
      %v5883 = vpop.f32.mrb[0].mxu0
      %v5884 = vadd.f32 %v5771, %v5883
      %5885 = vmatprep.mubr.bf16.mxu0 %v1363
      %5886 = vmatmul.mubr.bf16.gmra.mrb[0].mxu0 %v1362
      %v5887 = vpop.f32.mrb[0].mxu0
      %v5888 = vadd.f32 %v5775, %v5887
      %v5889 = vpop.f32.mrb[0].mxu0
      %v5890 = vadd.f32 %v5777, %v5889
      %v5891 = vpop.f32.mrb[0].mxu0
      %v5892 = vadd.f32 %v5779, %v5891
      %v5893 = vpop.f32.mrb[0].mxu0
      %v5894 = vadd.f32 %v5781, %v5893
      %5895 = vmatprep.mubr.bf16.mxu0 %v1379
      %5896 = vmatmul.mubr.bf16.gmra.mrb[0].mxu0 %v1378
      %v5897 = vpop.f32.mrb[0].mxu0
      %v5898 = vadd.f32 %v5785, %v5897
      %v5899 = vpop.f32.mrb[0].mxu0
      %v5900 = vadd.f32 %v5787, %v5899
      %v5901 = vpop.f32.mrb[0].mxu0
      %v5902 = vadd.f32 %v5789, %v5901
      %v5903 = vpop.f32.mrb[0].mxu0
      %v5904 = vadd.f32 %v5791, %v5903
      %5905 = vmatprep.mubr.bf16.mxu0 %v1395
      %5906 = vmatmul.mubr.bf16.gmra.mrb[0].mxu0 %v1394
      %v5907 = vpop.f32.mrb[0].mxu0
      %v5908 = vadd.f32 %v5795, %v5907
      %v5909 = vpop.f32.mrb[0].mxu0
      %v5910 = vadd.f32 %v5797, %v5909
      %v5911 = vpop.f32.mrb[0].mxu0
      %v5912 = vadd.f32 %v5799, %v5911
      %v5913 = vpop.f32.mrb[0].mxu0
      %v5914 = vadd.f32 %v5801, %v5913
      %5915 = vmatprep.mubr.bf16.mxu0 %v1411
      %5916 = vmatmul.mubr.bf16.gmra.mrb[0].mxu0 %v1410
      %v5917 = vpop.f32.mrb[0].mxu0
      %v5918 = vadd.f32 %v5805, %v5917
      %v5919 = vpop.f32.mrb[0].mxu0
      %v5920 = vadd.f32 %v5807, %v5919
      %v5921 = vpop.f32.mrb[0].mxu0
      %v5922 = vadd.f32 %v5809, %v5921
      %v5923 = vpop.f32.mrb[0].mxu0
      %v5924 = vadd.f32 %v5811, %v5923
      %5925 = vmatprep.mubr.bf16.mxu0 %v1427
      %5926 = vmatmul.mubr.bf16.gmra.mrb[0].mxu0 %v1426
      %v5927 = vpop.f32.mrb[0].mxu0
      %v5928 = vadd.f32 %v5815, %v5927
      %v5929 = vpop.f32.mrb[0].mxu0
      %v5930 = vadd.f32 %v5817, %v5929
      %v5931 = vpop.f32.mrb[0].mxu0
      %v5932 = vadd.f32 %v5819, %v5931
      %v5933 = vpop.f32.mrb[0].mxu0
      %v5934 = vadd.f32 %v5821, %v5933
      %5935 = vmatprep.mubr.bf16.mxu0 %v1443
      %5936 = vmatmul.mubr.bf16.gmra.mrb[0].mxu0 %v1442
      %v5937 = vpop.f32.mrb[0].mxu0
      %v5938 = vadd.f32 %v5825, %v5937
      %v5939 = vpop.f32.mrb[0].mxu0
      %v5940 = vadd.f32 %v5827, %v5939
      %v5941 = vpop.f32.mrb[0].mxu0
      %v5942 = vadd.f32 %v5829, %v5941
      %v5943 = vpop.f32.mrb[0].mxu0
      %v5944 = vadd.f32 %v5831, %v5943
      %5945 = vmatprep.mubr.bf16.mxu0 %v1459
      %5946 = vmatmul.mubr.bf16.gmra.mrb[0].mxu0 %v1458
      %v5947 = vpop.f32.mrb[0].mxu0
      %v5948 = vadd.f32 %v5835, %v5947
      %v5949 = vpop.f32.mrb[0].mxu0
      %v5950 = vadd.f32 %v5837, %v5949
      %v5951 = vpop.f32.mrb[0].mxu0
      %v5952 = vadd.f32 %v5839, %v5951
      %v5953 = vpop.f32.mrb[0].mxu0
      %v5954 = vadd.f32 %v5841, %v5953
      %5955 = vdwg.mxu0
      %v5956 = vmax.f32 %v4974, 0.0
      %v5957 = vmax.f32 %v4976, 0.0
      %v5958 = vmax.f32 %v5878, 0.0
      %v5959 = vmax.f32 %v5880, 0.0
      %v5960 = vmax.f32 %v4978, 0.0
      %v5961 = vmax.f32 %v4980, 0.0
      %v5962 = vmax.f32 %v5882, 0.0
      %v5963 = vmax.f32 %v5884, 0.0
      %v5964 = vmax.f32 %v4984, 0.0
      %v5965 = vmax.f32 %v4986, 0.0
      %v5966 = vmax.f32 %v5888, 0.0
      %v5967 = vmax.f32 %v5890, 0.0
      %v5968 = vmax.f32 %v4988, 0.0
      %v5969 = vmax.f32 %v4990, 0.0
      %v5970 = vmax.f32 %v5892, 0.0
      %v5971 = vmax.f32 %v5894, 0.0
      %v5972 = vmax.f32 %v4994, 0.0
      %v5973 = vmax.f32 %v4996, 0.0
      %v5974 = vmax.f32 %v5898, 0.0
      %v5975 = vmax.f32 %v5900, 0.0
      %v5976 = vmax.f32 %v4998, 0.0
      %v5977 = vmax.f32 %v5000, 0.0
      %v5978 = vmax.f32 %v5902, 0.0
      %v5979 = vmax.f32 %v5904, 0.0
      %v5980 = vmax.f32 %v5004, 0.0
      %v5981 = vmax.f32 %v5006, 0.0
      %v5982 = vmax.f32 %v5908, 0.0
      %v5983 = vmax.f32 %v5910, 0.0
      %v5984 = vmax.f32 %v5008, 0.0
      %v5985 = vmax.f32 %v5010, 0.0
      %v5986 = vmax.f32 %v5912, 0.0
      %v5987 = vmax.f32 %v5914, 0.0
      %v5988 = vmax.f32 %v5014, 0.0
      %v5989 = vmax.f32 %v5016, 0.0
      %v5990 = vmax.f32 %v5918, 0.0
      %v5991 = vmax.f32 %v5920, 0.0
      %v5992 = vmax.f32 %v5018, 0.0
      %v5993 = vmax.f32 %v5020, 0.0
      %v5994 = vmax.f32 %v5922, 0.0
      %v5995 = vmax.f32 %v5924, 0.0
      %v5996 = vmax.f32 %v5024, 0.0
      %v5997 = vmax.f32 %v5026, 0.0
      %v5998 = vmax.f32 %v5928, 0.0
      %v5999 = vmax.f32 %v5930, 0.0
      %v6000 = vmax.f32 %v5028, 0.0
      %v6001 = vmax.f32 %v5030, 0.0
      %v6002 = vmax.f32 %v5932, 0.0
      %v6003 = vmax.f32 %v5934, 0.0
      %v6004 = vmax.f32 %v5034, 0.0
      %v6005 = vmax.f32 %v5036, 0.0
      %v6006 = vmax.f32 %v5938, 0.0
      %v6007 = vmax.f32 %v5940, 0.0
      %v6008 = vmax.f32 %v5038, 0.0
      %v6009 = vmax.f32 %v5040, 0.0
      %v6010 = vmax.f32 %v5942, 0.0
      %v6011 = vmax.f32 %v5944, 0.0
      %v6012 = vmax.f32 %v5044, 0.0
      %v6013 = vmax.f32 %v5046, 0.0
      %v6014 = vmax.f32 %v5948, 0.0
      %v6015 = vmax.f32 %v5950, 0.0
      %v6016 = vmax.f32 %v5048, 0.0
      %v6017 = vmax.f32 %v5050, 0.0
      %v6018 = vmax.f32 %v5952, 0.0
      %v6019 = vmax.f32 %v5954, 0.0
      %v6020 = vpack.c.bf16 %v5960, %v5956
      %v6021 = vpack.c.bf16 %v5961, %v5957
      %v6022 = vpack.c.bf16 %v5962, %v5958
      %v6023 = vpack.c.bf16 %v5963, %v5959
      %v6024 = vpack.c.bf16 %v5968, %v5964
      %v6025 = vpack.c.bf16 %v5969, %v5965
      %v6026 = vpack.c.bf16 %v5970, %v5966
      %v6027 = vpack.c.bf16 %v5971, %v5967
      %v6028 = vpack.c.bf16 %v5976, %v5972
      %v6029 = vpack.c.bf16 %v5977, %v5973
      %v6030 = vpack.c.bf16 %v5978, %v5974
      %v6031 = vpack.c.bf16 %v5979, %v5975
      %v6032 = vpack.c.bf16 %v5984, %v5980
      %v6033 = vpack.c.bf16 %v5985, %v5981
      %v6034 = vpack.c.bf16 %v5986, %v5982
      %v6035 = vpack.c.bf16 %v5987, %v5983
      %v6036 = vpack.c.bf16 %v5992, %v5988
      %v6037 = vpack.c.bf16 %v5993, %v5989
      %v6038 = vpack.c.bf16 %v5994, %v5990
      %v6039 = vpack.c.bf16 %v5995, %v5991
      %v6040 = vpack.c.bf16 %v6000, %v5996
      %v6041 = vpack.c.bf16 %v6001, %v5997
      %v6042 = vpack.c.bf16 %v6002, %v5998
      %v6043 = vpack.c.bf16 %v6003, %v5999
      %v6044 = vpack.c.bf16 %v6008, %v6004
      %v6045 = vpack.c.bf16 %v6009, %v6005
      %v6046 = vpack.c.bf16 %v6010, %v6006
      %v6047 = vpack.c.bf16 %v6011, %v6007
      %v6048 = vpack.c.bf16 %v6016, %v6012
      %v6049 = vpack.c.bf16 %v6017, %v6013
      %v6050 = vpack.c.bf16 %v6018, %v6014
      %v6051 = vpack.c.bf16 %v6019, %v6015
      %v6052 = vld [vmem:[%s3] sm:$0xff]
      %v6053 = vld [vmem:[%s3 + $0x8] sm:$0xff]
      %v6054 = vld [vmem:[%s3 + $0x10] sm:$0xff]
      %v6055 = vld [vmem:[%s3 + $0x18] sm:$0xff]
      %v6056 = vld [vmem:[%s3 + $0x20] sm:$0xff]
      %v6057 = vld [vmem:[%s3 + $0x28] sm:$0xff]
      %v6058 = vld [vmem:[%s3 + $0x30] sm:$0xff]
      %v6059 = vld [vmem:[%s3 + $0x38] sm:$0xff]
      %v6060 = vld [vmem:[%s3 + $0x40] sm:$0xff]
      %v6061 = vld [vmem:[%s3 + $0x48] sm:$0xff]
      %v6062 = vld [vmem:[%s3 + $0x50] sm:$0xff]
      %v6063 = vld [vmem:[%s3 + $0x58] sm:$0xff]
      %v6064 = vld [vmem:[%s3 + $0x60] sm:$0xff]
      %v6065 = vld [vmem:[%s3 + $0x68] sm:$0xff]
      %v6066 = vld [vmem:[%s3 + $0x70] sm:$0xff]
      %v6067 = vld [vmem:[%s3 + $0x78] sm:$0xff]
      %v6068 = vld [vmem:[%s3 + $0x80] sm:$0xff]
      %v6069 = vld [vmem:[%s3 + $0x88] sm:$0xff]
      %v6070 = vld [vmem:[%s3 + $0x90] sm:$0xff]
      %v6071 = vld [vmem:[%s3 + $0x98] sm:$0xff]
      %v6072 = vld [vmem:[%s3 + $0xa0] sm:$0xff]
      %v6073 = vld [vmem:[%s3 + $0xa8] sm:$0xff]
      %v6074 = vld [vmem:[%s3 + $0xb0] sm:$0xff]
      %v6075 = vld [vmem:[%s3 + $0xb8] sm:$0xff]
      %v6076 = vld [vmem:[%s3 + $0xc0] sm:$0xff]
      %v6077 = vld [vmem:[%s3 + $0xc8] sm:$0xff]
      %v6078 = vld [vmem:[%s3 + $0xd0] sm:$0xff]
      %v6079 = vld [vmem:[%s3 + $0xd8] sm:$0xff]
      %v6080 = vld [vmem:[%s3 + $0xe0] sm:$0xff]
      %v6081 = vld [vmem:[%s3 + $0xe8] sm:$0xff]
      %v6082 = vld [vmem:[%s3 + $0xf0] sm:$0xff]
      %v6083 = vld [vmem:[%s3 + $0xf8] sm:$0xff]
      %v6084 = vld [vmem:[%s3 + $0x100] sm:$0xff]
      %v6085 = vld [vmem:[%s3 + $0x108] sm:$0xff]
      %v6086 = vld [vmem:[%s3 + $0x110] sm:$0xff]
      %v6087 = vld [vmem:[%s3 + $0x118] sm:$0xff]
      %v6088 = vld [vmem:[%s3 + $0x120] sm:$0xff]
      %v6089 = vld [vmem:[%s3 + $0x128] sm:$0xff]
      %v6090 = vld [vmem:[%s3 + $0x130] sm:$0xff]
      %v6091 = vld [vmem:[%s3 + $0x138] sm:$0xff]
      %v6092 = vld [vmem:[%s3 + $0x140] sm:$0xff]
      %v6093 = vld [vmem:[%s3 + $0x148] sm:$0xff]
      %v6094 = vld [vmem:[%s3 + $0x150] sm:$0xff]
      %v6095 = vld [vmem:[%s3 + $0x158] sm:$0xff]
      %v6096 = vld [vmem:[%s3 + $0x160] sm:$0xff]
      %v6097 = vld [vmem:[%s3 + $0x168] sm:$0xff]
      %v6098 = vld [vmem:[%s3 + $0x170] sm:$0xff]
      %v6099 = vld [vmem:[%s3 + $0x178] sm:$0xff]
      %v6100 = vld [vmem:[%s3 + $0x180] sm:$0xff]
      %v6101 = vld [vmem:[%s3 + $0x188] sm:$0xff]
      %v6102 = vld [vmem:[%s3 + $0x190] sm:$0xff]
      %v6103 = vld [vmem:[%s3 + $0x198] sm:$0xff]
      %v6104 = vld [vmem:[%s3 + $0x1a0] sm:$0xff]
      %v6105 = vld [vmem:[%s3 + $0x1a8] sm:$0xff]
      %v6106 = vld [vmem:[%s3 + $0x1b0] sm:$0xff]
      %v6107 = vld [vmem:[%s3 + $0x1b8] sm:$0xff]
      %v6108 = vld [vmem:[%s3 + $0x1c0] sm:$0xff]
      %v6109 = vld [vmem:[%s3 + $0x1c8] sm:$0xff]
      %v6110 = vld [vmem:[%s3 + $0x1d0] sm:$0xff]
      %v6111 = vld [vmem:[%s3 + $0x1d8] sm:$0xff]
      %v6112 = vld [vmem:[%s3 + $0x1e0] sm:$0xff]
      %v6113 = vld [vmem:[%s3 + $0x1e8] sm:$0xff]
      %v6114 = vld [vmem:[%s3 + $0x1f0] sm:$0xff]
      %v6115 = vld [vmem:[%s3 + $0x1f8] sm:$0xff]
      %v6116 = vld [vmem:[%s4] sm:$0x3]
      %v6118 = vlaneseq
      %v6119 = vshrl.u32 %v6118, 7
      %v6120 = vsub.s32 0, %v6119
      %v6121 = vrot.slane %v6116, %v6120
      %v6122 = vlaneseq
      %v6123 = vshrl.u32 %v6122, 7
      %v6124 = vsub.s32 1, %v6123
      %v6125 = vrot.slane %v6116, %v6124
      %v6192 = vunpack.c.l.b16 %v6052
      %v6193 = vunpack.c.h.b16 %v6052
      %v6194 = vunpack.c.l.b16 %v6053
      %v6195 = vunpack.c.h.b16 %v6053
      %v6196 = vunpack.c.l.b16 %v6054
      %v6197 = vunpack.c.h.b16 %v6054
      %v6198 = vunpack.c.l.b16 %v6055
      %v6199 = vunpack.c.h.b16 %v6055
      %v6200 = vunpack.c.l.b16 %v6056
      %v6201 = vunpack.c.h.b16 %v6056
      %v6202 = vunpack.c.l.b16 %v6057
      %v6203 = vunpack.c.h.b16 %v6057
      %v6204 = vunpack.c.l.b16 %v6058
      %v6205 = vunpack.c.h.b16 %v6058
      %v6206 = vunpack.c.l.b16 %v6059
      %v6207 = vunpack.c.h.b16 %v6059
      %v6208 = vunpack.c.l.b16 %v6060
      %v6209 = vunpack.c.h.b16 %v6060
      %v6210 = vunpack.c.l.b16 %v6061
      %v6211 = vunpack.c.h.b16 %v6061
      %v6212 = vunpack.c.l.b16 %v6062
      %v6213 = vunpack.c.h.b16 %v6062
      %v6214 = vunpack.c.l.b16 %v6063
      %v6215 = vunpack.c.h.b16 %v6063
      %v6216 = vunpack.c.l.b16 %v6064
      %v6217 = vunpack.c.h.b16 %v6064
      %v6218 = vunpack.c.l.b16 %v6065
      %v6219 = vunpack.c.h.b16 %v6065
      %v6220 = vunpack.c.l.b16 %v6066
      %v6221 = vunpack.c.h.b16 %v6066
      %v6222 = vunpack.c.l.b16 %v6067
      %v6223 = vunpack.c.h.b16 %v6067
      %v6224 = vunpack.c.l.b16 %v6068
      %v6225 = vunpack.c.h.b16 %v6068
      %v6226 = vunpack.c.l.b16 %v6069
      %v6227 = vunpack.c.h.b16 %v6069
      %v6228 = vunpack.c.l.b16 %v6070
      %v6229 = vunpack.c.h.b16 %v6070
      %v6230 = vunpack.c.l.b16 %v6071
      %v6231 = vunpack.c.h.b16 %v6071
      %v6232 = vunpack.c.l.b16 %v6072
      %v6233 = vunpack.c.h.b16 %v6072
      %v6234 = vunpack.c.l.b16 %v6073
      %v6235 = vunpack.c.h.b16 %v6073
      %v6236 = vunpack.c.l.b16 %v6074
      %v6237 = vunpack.c.h.b16 %v6074
      %v6238 = vunpack.c.l.b16 %v6075
      %v6239 = vunpack.c.h.b16 %v6075
      %v6240 = vunpack.c.l.b16 %v6076
      %v6241 = vunpack.c.h.b16 %v6076
      %v6242 = vunpack.c.l.b16 %v6077
      %v6243 = vunpack.c.h.b16 %v6077
      %v6244 = vunpack.c.l.b16 %v6078
      %v6245 = vunpack.c.h.b16 %v6078
      %v6246 = vunpack.c.l.b16 %v6079
      %v6247 = vunpack.c.h.b16 %v6079
      %v6248 = vunpack.c.l.b16 %v6080
      %v6249 = vunpack.c.h.b16 %v6080
      %v6250 = vunpack.c.l.b16 %v6081
      %v6251 = vunpack.c.h.b16 %v6081
      %v6252 = vunpack.c.l.b16 %v6082
      %v6253 = vunpack.c.h.b16 %v6082
      %v6254 = vunpack.c.l.b16 %v6083
      %v6255 = vunpack.c.h.b16 %v6083
      %v6256 = vunpack.c.l.b16 %v6084
      %v6257 = vunpack.c.h.b16 %v6084
      %v6258 = vunpack.c.l.b16 %v6085
      %v6259 = vunpack.c.h.b16 %v6085
      %v6260 = vunpack.c.l.b16 %v6086
      %v6261 = vunpack.c.h.b16 %v6086
      %v6262 = vunpack.c.l.b16 %v6087
      %v6263 = vunpack.c.h.b16 %v6087
      %v6264 = vunpack.c.l.b16 %v6088
      %v6265 = vunpack.c.h.b16 %v6088
      %v6266 = vunpack.c.l.b16 %v6089
      %v6267 = vunpack.c.h.b16 %v6089
      %v6268 = vunpack.c.l.b16 %v6090
      %v6269 = vunpack.c.h.b16 %v6090
      %v6270 = vunpack.c.l.b16 %v6091
      %v6271 = vunpack.c.h.b16 %v6091
      %v6272 = vunpack.c.l.b16 %v6092
      %v6273 = vunpack.c.h.b16 %v6092
      %v6274 = vunpack.c.l.b16 %v6093
      %v6275 = vunpack.c.h.b16 %v6093
      %v6276 = vunpack.c.l.b16 %v6094
      %v6277 = vunpack.c.h.b16 %v6094
      %v6278 = vunpack.c.l.b16 %v6095
      %v6279 = vunpack.c.h.b16 %v6095
      %v6280 = vunpack.c.l.b16 %v6096
      %v6281 = vunpack.c.h.b16 %v6096
      %v6282 = vunpack.c.l.b16 %v6097
      %v6283 = vunpack.c.h.b16 %v6097
      %v6284 = vunpack.c.l.b16 %v6098
      %v6285 = vunpack.c.h.b16 %v6098
      %v6286 = vunpack.c.l.b16 %v6099
      %v6287 = vunpack.c.h.b16 %v6099
      %v6288 = vunpack.c.l.b16 %v6100
      %v6289 = vunpack.c.h.b16 %v6100
      %v6290 = vunpack.c.l.b16 %v6101
      %v6291 = vunpack.c.h.b16 %v6101
      %v6292 = vunpack.c.l.b16 %v6102
      %v6293 = vunpack.c.h.b16 %v6102
      %v6294 = vunpack.c.l.b16 %v6103
      %v6295 = vunpack.c.h.b16 %v6103
      %v6296 = vunpack.c.l.b16 %v6104
      %v6297 = vunpack.c.h.b16 %v6104
      %v6298 = vunpack.c.l.b16 %v6105
      %v6299 = vunpack.c.h.b16 %v6105
      %v6300 = vunpack.c.l.b16 %v6106
      %v6301 = vunpack.c.h.b16 %v6106
      %v6302 = vunpack.c.l.b16 %v6107
      %v6303 = vunpack.c.h.b16 %v6107
      %v6304 = vunpack.c.l.b16 %v6108
      %v6305 = vunpack.c.h.b16 %v6108
      %v6306 = vunpack.c.l.b16 %v6109
      %v6307 = vunpack.c.h.b16 %v6109
      %v6308 = vunpack.c.l.b16 %v6110
      %v6309 = vunpack.c.h.b16 %v6110
      %v6310 = vunpack.c.l.b16 %v6111
      %v6311 = vunpack.c.h.b16 %v6111
      %v6312 = vunpack.c.l.b16 %v6112
      %v6313 = vunpack.c.h.b16 %v6112
      %v6314 = vunpack.c.l.b16 %v6113
      %v6315 = vunpack.c.h.b16 %v6113
      %v6316 = vunpack.c.l.b16 %v6114
      %v6317 = vunpack.c.h.b16 %v6114
      %v6318 = vunpack.c.l.b16 %v6115
      %v6319 = vunpack.c.h.b16 %v6115
      %v6320 = vpack.c.b16 %v6194, %v6192
      %v6321 = vpack.c.b16 %v6195, %v6193
      %v6322 = vpack.c.b16 %v6198, %v6196
      %v6323 = vpack.c.b16 %v6199, %v6197
      %v6324 = vpack.c.b16 %v6202, %v6200
      %v6325 = vpack.c.b16 %v6203, %v6201
      %v6326 = vpack.c.b16 %v6206, %v6204
      %v6327 = vpack.c.b16 %v6207, %v6205
      %v6328 = vpack.c.b16 %v6210, %v6208
      %v6329 = vpack.c.b16 %v6211, %v6209
      %v6330 = vpack.c.b16 %v6214, %v6212
      %v6331 = vpack.c.b16 %v6215, %v6213
      %v6332 = vpack.c.b16 %v6218, %v6216
      %v6333 = vpack.c.b16 %v6219, %v6217
      %v6334 = vpack.c.b16 %v6222, %v6220
      %v6335 = vpack.c.b16 %v6223, %v6221
      %v6336 = vpack.c.b16 %v6226, %v6224
      %v6337 = vpack.c.b16 %v6227, %v6225
      %v6338 = vpack.c.b16 %v6230, %v6228
      %v6339 = vpack.c.b16 %v6231, %v6229
      %v6340 = vpack.c.b16 %v6234, %v6232
      %v6341 = vpack.c.b16 %v6235, %v6233
      %v6342 = vpack.c.b16 %v6238, %v6236
      %v6343 = vpack.c.b16 %v6239, %v6237
      %v6344 = vpack.c.b16 %v6242, %v6240
      %v6345 = vpack.c.b16 %v6243, %v6241
      %v6346 = vpack.c.b16 %v6246, %v6244
      %v6347 = vpack.c.b16 %v6247, %v6245
      %v6348 = vpack.c.b16 %v6250, %v6248
      %v6349 = vpack.c.b16 %v6251, %v6249
      %v6350 = vpack.c.b16 %v6254, %v6252
      %v6351 = vpack.c.b16 %v6255, %v6253
      %v6352 = vpack.c.b16 %v6258, %v6256
      %v6353 = vpack.c.b16 %v6259, %v6257
      %v6354 = vpack.c.b16 %v6262, %v6260
      %v6355 = vpack.c.b16 %v6263, %v6261
      %v6356 = vpack.c.b16 %v6266, %v6264
      %v6357 = vpack.c.b16 %v6267, %v6265
      %v6358 = vpack.c.b16 %v6270, %v6268
      %v6359 = vpack.c.b16 %v6271, %v6269
      %v6360 = vpack.c.b16 %v6274, %v6272
      %v6361 = vpack.c.b16 %v6275, %v6273
      %v6362 = vpack.c.b16 %v6278, %v6276
      %v6363 = vpack.c.b16 %v6279, %v6277
      %v6364 = vpack.c.b16 %v6282, %v6280
      %v6365 = vpack.c.b16 %v6283, %v6281
      %v6366 = vpack.c.b16 %v6286, %v6284
      %v6367 = vpack.c.b16 %v6287, %v6285
      %v6368 = vpack.c.b16 %v6290, %v6288
      %v6369 = vpack.c.b16 %v6291, %v6289
      %v6370 = vpack.c.b16 %v6294, %v6292
      %v6371 = vpack.c.b16 %v6295, %v6293
      %v6372 = vpack.c.b16 %v6298, %v6296
      %v6373 = vpack.c.b16 %v6299, %v6297
      %v6374 = vpack.c.b16 %v6302, %v6300
      %v6375 = vpack.c.b16 %v6303, %v6301
      %v6376 = vpack.c.b16 %v6306, %v6304
      %v6377 = vpack.c.b16 %v6307, %v6305
      %v6378 = vpack.c.b16 %v6310, %v6308
      %v6379 = vpack.c.b16 %v6311, %v6309
      %v6380 = vpack.c.b16 %v6314, %v6312
      %v6381 = vpack.c.b16 %v6315, %v6313
      %v6382 = vpack.c.b16 %v6318, %v6316
      %v6383 = vpack.c.b16 %v6319, %v6317
      %6448 = vmatprep.subr.bf16.mxu0 %v6321
      %6449 = vmatpush1.bf16.msra.mxu0 %v6320
      %6450 = vmatprep.subr.bf16.mxu0 %v6323
      %6451 = vmatpush1.bf16.msra.mxu0 %v6322
      %6452 = vmatprep.subr.bf16.mxu0 %v6325
      %6453 = vmatpush1.bf16.msra.mxu0 %v6324
      %6454 = vmatprep.subr.bf16.mxu0 %v6327
      %6455 = vmatpush1.bf16.msra.mxu0 %v6326
      %6456 = vmatprep.subr.bf16.mxu0 %v6329
      %6457 = vmatpush1.bf16.msra.mxu0 %v6328
      %6458 = vmatprep.subr.bf16.mxu0 %v6331
      %6459 = vmatpush1.bf16.msra.mxu0 %v6330
      %6460 = vmatprep.subr.bf16.mxu0 %v6333
      %6461 = vmatpush1.bf16.msra.mxu0 %v6332
      %6462 = vmatprep.subr.bf16.mxu0 %v6335
      %6463 = vmatpush1.bf16.msra.mxu0 %v6334
      %6464 = vmatprep.subr.bf16.mxu0 %v6337
      %6465 = vmatpush1.bf16.msra.mxu0 %v6336
      %6466 = vmatprep.subr.bf16.mxu0 %v6339
      %6467 = vmatpush1.bf16.msra.mxu0 %v6338
      %6468 = vmatprep.subr.bf16.mxu0 %v6341
      %6469 = vmatpush1.bf16.msra.mxu0 %v6340
      %6470 = vmatprep.subr.bf16.mxu0 %v6343
      %6471 = vmatpush1.bf16.msra.mxu0 %v6342
      %6472 = vmatprep.subr.bf16.mxu0 %v6345
      %6473 = vmatpush1.bf16.msra.mxu0 %v6344
      %6474 = vmatprep.subr.bf16.mxu0 %v6347
      %6475 = vmatpush1.bf16.msra.mxu0 %v6346
      %6476 = vmatprep.subr.bf16.mxu0 %v6349
      %6477 = vmatpush1.bf16.msra.mxu0 %v6348
      %6478 = vmatprep.subr.bf16.mxu0 %v6351
      %6479 = vmatpush1.bf16.msra.mxu0 %v6350
      %6480 = vmatprep.mubr.bf16.mxu0 %v6021
      %6481 = vmatmul.mubr.bf16.gmra.mrb[0].mxu0 %v6020
      %v6482 = vpop.f32.mrb[0].mxu0
      %v6483 = vadd.f32 %v6121, %v6482
      %v6484 = vpop.f32.mrb[0].mxu0
      %v6485 = vadd.f32 %v6125, %v6484
      %v6486 = vpop.f32.mrb[0].mxu0
      %v6487 = vadd.f32 %v6121, %v6486
      %v6488 = vpop.f32.mrb[0].mxu0
      %v6489 = vadd.f32 %v6125, %v6488
      %6490 = vmatprep.mubr.bf16.mxu0 %v6025
      %6491 = vmatmul.mubr.bf16.gmra.mrb[0].mxu0 %v6024
      %v6492 = vpop.f32.mrb[0].mxu0
      %v6493 = vadd.f32 %v6121, %v6492
      %v6494 = vpop.f32.mrb[0].mxu0
      %v6495 = vadd.f32 %v6125, %v6494
      %v6496 = vpop.f32.mrb[0].mxu0
      %v6497 = vadd.f32 %v6121, %v6496
      %v6498 = vpop.f32.mrb[0].mxu0
      %v6499 = vadd.f32 %v6125, %v6498
      %6500 = vmatprep.mubr.bf16.mxu0 %v6029
      %6501 = vmatmul.mubr.bf16.gmra.mrb[0].mxu0 %v6028
      %v6502 = vpop.f32.mrb[0].mxu0
      %v6503 = vadd.f32 %v6121, %v6502
      %v6504 = vpop.f32.mrb[0].mxu0
      %v6505 = vadd.f32 %v6125, %v6504
      %v6506 = vpop.f32.mrb[0].mxu0
      %v6507 = vadd.f32 %v6121, %v6506
      %v6508 = vpop.f32.mrb[0].mxu0
      %v6509 = vadd.f32 %v6125, %v6508
      %6510 = vmatprep.mubr.bf16.mxu0 %v6033
      %6511 = vmatmul.mubr.bf16.gmra.mrb[0].mxu0 %v6032
      %v6512 = vpop.f32.mrb[0].mxu0
      %v6513 = vadd.f32 %v6121, %v6512
      %v6514 = vpop.f32.mrb[0].mxu0
      %v6515 = vadd.f32 %v6125, %v6514
      %v6516 = vpop.f32.mrb[0].mxu0
      %v6517 = vadd.f32 %v6121, %v6516
      %v6518 = vpop.f32.mrb[0].mxu0
      %v6519 = vadd.f32 %v6125, %v6518
      %6520 = vmatprep.mubr.bf16.mxu0 %v6037
      %6521 = vmatmul.mubr.bf16.gmra.mrb[0].mxu0 %v6036
      %v6522 = vpop.f32.mrb[0].mxu0
      %v6523 = vadd.f32 %v6121, %v6522
      %v6524 = vpop.f32.mrb[0].mxu0
      %v6525 = vadd.f32 %v6125, %v6524
      %v6526 = vpop.f32.mrb[0].mxu0
      %v6527 = vadd.f32 %v6121, %v6526
      %v6528 = vpop.f32.mrb[0].mxu0
      %v6529 = vadd.f32 %v6125, %v6528
      %6530 = vmatprep.mubr.bf16.mxu0 %v6041
      %6531 = vmatmul.mubr.bf16.gmra.mrb[0].mxu0 %v6040
      %v6532 = vpop.f32.mrb[0].mxu0
      %v6533 = vadd.f32 %v6121, %v6532
      %v6534 = vpop.f32.mrb[0].mxu0
      %v6535 = vadd.f32 %v6125, %v6534
      %v6536 = vpop.f32.mrb[0].mxu0
      %v6537 = vadd.f32 %v6121, %v6536
      %v6538 = vpop.f32.mrb[0].mxu0
      %v6539 = vadd.f32 %v6125, %v6538
      %6540 = vmatprep.mubr.bf16.mxu0 %v6045
      %6541 = vmatmul.mubr.bf16.gmra.mrb[0].mxu0 %v6044
      %v6542 = vpop.f32.mrb[0].mxu0
      %v6543 = vadd.f32 %v6121, %v6542
      %v6544 = vpop.f32.mrb[0].mxu0
      %v6545 = vadd.f32 %v6125, %v6544
      %v6546 = vpop.f32.mrb[0].mxu0
      %v6547 = vadd.f32 %v6121, %v6546
      %v6548 = vpop.f32.mrb[0].mxu0
      %v6549 = vadd.f32 %v6125, %v6548
      %6550 = vmatprep.mubr.bf16.mxu0 %v6049
      %6551 = vmatmul.mubr.bf16.gmra.mrb[0].mxu0 %v6048
      %v6552 = vpop.f32.mrb[0].mxu0
      %v6553 = vadd.f32 %v6121, %v6552
      %v6554 = vpop.f32.mrb[0].mxu0
      %v6555 = vadd.f32 %v6125, %v6554
      %v6556 = vpop.f32.mrb[0].mxu0
      %v6557 = vadd.f32 %v6121, %v6556
      %v6558 = vpop.f32.mrb[0].mxu0
      %v6559 = vadd.f32 %v6125, %v6558
      %6560 = vdwg.mxu0
      %6561 = vmatprep.subr.bf16.mxu0 %v6353
      %6562 = vmatpush1.bf16.msra.mxu0 %v6352
      %6563 = vmatprep.subr.bf16.mxu0 %v6355
      %6564 = vmatpush1.bf16.msra.mxu0 %v6354
      %6565 = vmatprep.subr.bf16.mxu0 %v6357
      %6566 = vmatpush1.bf16.msra.mxu0 %v6356
      %6567 = vmatprep.subr.bf16.mxu0 %v6359
      %6568 = vmatpush1.bf16.msra.mxu0 %v6358
      %6569 = vmatprep.subr.bf16.mxu0 %v6361
      %6570 = vmatpush1.bf16.msra.mxu0 %v6360
      %6571 = vmatprep.subr.bf16.mxu0 %v6363
      %6572 = vmatpush1.bf16.msra.mxu0 %v6362
      %6573 = vmatprep.subr.bf16.mxu0 %v6365
      %6574 = vmatpush1.bf16.msra.mxu0 %v6364
      %6575 = vmatprep.subr.bf16.mxu0 %v6367
      %6576 = vmatpush1.bf16.msra.mxu0 %v6366
      %6577 = vmatprep.subr.bf16.mxu0 %v6369
      %6578 = vmatpush1.bf16.msra.mxu0 %v6368
      %6579 = vmatprep.subr.bf16.mxu0 %v6371
      %6580 = vmatpush1.bf16.msra.mxu0 %v6370
      %6581 = vmatprep.subr.bf16.mxu0 %v6373
      %6582 = vmatpush1.bf16.msra.mxu0 %v6372
      %6583 = vmatprep.subr.bf16.mxu0 %v6375
      %6584 = vmatpush1.bf16.msra.mxu0 %v6374
      %6585 = vmatprep.subr.bf16.mxu0 %v6377
      %6586 = vmatpush1.bf16.msra.mxu0 %v6376
      %6587 = vmatprep.subr.bf16.mxu0 %v6379
      %6588 = vmatpush1.bf16.msra.mxu0 %v6378
      %6589 = vmatprep.subr.bf16.mxu0 %v6381
      %6590 = vmatpush1.bf16.msra.mxu0 %v6380
      %6591 = vmatprep.subr.bf16.mxu0 %v6383
      %6592 = vmatpush1.bf16.msra.mxu0 %v6382
      %6593 = vmatprep.mubr.bf16.mxu0 %v6023
      %6594 = vmatmul.mubr.bf16.gmra.mrb[0].mxu0 %v6022
      %v6595 = vpop.f32.mrb[0].mxu0
      %v6596 = vadd.f32 %v6483, %v6595
      %v6597 = vpop.f32.mrb[0].mxu0
      %v6598 = vadd.f32 %v6485, %v6597
      %v6599 = vpop.f32.mrb[0].mxu0
      %v6600 = vadd.f32 %v6487, %v6599
      %v6601 = vpop.f32.mrb[0].mxu0
      %v6602 = vadd.f32 %v6489, %v6601
      %6603 = vmatprep.mubr.bf16.mxu0 %v6027
      %6604 = vmatmul.mubr.bf16.gmra.mrb[0].mxu0 %v6026
      %v6605 = vpop.f32.mrb[0].mxu0
      %v6606 = vadd.f32 %v6493, %v6605
      %v6607 = vpop.f32.mrb[0].mxu0
      %v6608 = vadd.f32 %v6495, %v6607
      %v6609 = vpop.f32.mrb[0].mxu0
      %v6610 = vadd.f32 %v6497, %v6609
      %v6611 = vpop.f32.mrb[0].mxu0
      %v6612 = vadd.f32 %v6499, %v6611
      %6613 = vmatprep.mubr.bf16.mxu0 %v6031
      %6614 = vmatmul.mubr.bf16.gmra.mrb[0].mxu0 %v6030
      %v6615 = vpop.f32.mrb[0].mxu0
      %v6616 = vadd.f32 %v6503, %v6615
      %v6617 = vpop.f32.mrb[0].mxu0
      %v6618 = vadd.f32 %v6505, %v6617
      %v6619 = vpop.f32.mrb[0].mxu0
      %v6620 = vadd.f32 %v6507, %v6619
      %v6621 = vpop.f32.mrb[0].mxu0
      %v6622 = vadd.f32 %v6509, %v6621
      %6623 = vmatprep.mubr.bf16.mxu0 %v6035
      %6624 = vmatmul.mubr.bf16.gmra.mrb[0].mxu0 %v6034
      %v6625 = vpop.f32.mrb[0].mxu0
      %v6626 = vadd.f32 %v6513, %v6625
      %v6627 = vpop.f32.mrb[0].mxu0
      %v6628 = vadd.f32 %v6515, %v6627
      %v6629 = vpop.f32.mrb[0].mxu0
      %v6630 = vadd.f32 %v6517, %v6629
      %v6631 = vpop.f32.mrb[0].mxu0
      %v6632 = vadd.f32 %v6519, %v6631
      %6633 = vmatprep.mubr.bf16.mxu0 %v6039
      %6634 = vmatmul.mubr.bf16.gmra.mrb[0].mxu0 %v6038
      %v6635 = vpop.f32.mrb[0].mxu0
      %v6636 = vadd.f32 %v6523, %v6635
      %v6637 = vpop.f32.mrb[0].mxu0
      %v6638 = vadd.f32 %v6525, %v6637
      %v6639 = vpop.f32.mrb[0].mxu0
      %v6640 = vadd.f32 %v6527, %v6639
      %v6641 = vpop.f32.mrb[0].mxu0
      %v6642 = vadd.f32 %v6529, %v6641
      %6643 = vmatprep.mubr.bf16.mxu0 %v6043
      %6644 = vmatmul.mubr.bf16.gmra.mrb[0].mxu0 %v6042
      %v6645 = vpop.f32.mrb[0].mxu0
      %v6646 = vadd.f32 %v6533, %v6645
      %v6647 = vpop.f32.mrb[0].mxu0
      %v6648 = vadd.f32 %v6535, %v6647
      %v6649 = vpop.f32.mrb[0].mxu0
      %v6650 = vadd.f32 %v6537, %v6649
      %v6651 = vpop.f32.mrb[0].mxu0
      %v6652 = vadd.f32 %v6539, %v6651
      %6653 = vmatprep.mubr.bf16.mxu0 %v6047
      %6654 = vmatmul.mubr.bf16.gmra.mrb[0].mxu0 %v6046
      %v6655 = vpop.f32.mrb[0].mxu0
      %v6656 = vadd.f32 %v6543, %v6655
      %v6657 = vpop.f32.mrb[0].mxu0
      %v6658 = vadd.f32 %v6545, %v6657
      %v6659 = vpop.f32.mrb[0].mxu0
      %v6660 = vadd.f32 %v6547, %v6659
      %v6661 = vpop.f32.mrb[0].mxu0
      %v6662 = vadd.f32 %v6549, %v6661
      %6663 = vmatprep.mubr.bf16.mxu0 %v6051
      %6664 = vmatmul.mubr.bf16.gmra.mrb[0].mxu0 %v6050
      %v6665 = vpop.f32.mrb[0].mxu0
      %v6666 = vadd.f32 %v6553, %v6665
      %v6667 = vpop.f32.mrb[0].mxu0
      %v6668 = vadd.f32 %v6555, %v6667
      %v6669 = vpop.f32.mrb[0].mxu0
      %v6670 = vadd.f32 %v6557, %v6669
      %v6671 = vpop.f32.mrb[0].mxu0
      %v6672 = vadd.f32 %v6559, %v6671
      %6673 = vdwg.mxu0
      %v6674 = vmax.f32 %v6596, 0.0
      %v6675 = vmax.f32 %v6598, 0.0
      %v6676 = vmax.f32 %v6600, 0.0
      %v6677 = vmax.f32 %v6602, 0.0
      %v6678 = vmax.f32 %v6606, 0.0
      %v6679 = vmax.f32 %v6608, 0.0
      %v6680 = vmax.f32 %v6610, 0.0
      %v6681 = vmax.f32 %v6612, 0.0
      %v6682 = vmax.f32 %v6616, 0.0
      %v6683 = vmax.f32 %v6618, 0.0
      %v6684 = vmax.f32 %v6620, 0.0
      %v6685 = vmax.f32 %v6622, 0.0
      %v6686 = vmax.f32 %v6626, 0.0
      %v6687 = vmax.f32 %v6628, 0.0
      %v6688 = vmax.f32 %v6630, 0.0
      %v6689 = vmax.f32 %v6632, 0.0
      %v6690 = vmax.f32 %v6636, 0.0
      %v6691 = vmax.f32 %v6638, 0.0
      %v6692 = vmax.f32 %v6640, 0.0
      %v6693 = vmax.f32 %v6642, 0.0
      %v6694 = vmax.f32 %v6646, 0.0
      %v6695 = vmax.f32 %v6648, 0.0
      %v6696 = vmax.f32 %v6650, 0.0
      %v6697 = vmax.f32 %v6652, 0.0
      %v6698 = vmax.f32 %v6656, 0.0
      %v6699 = vmax.f32 %v6658, 0.0
      %v6700 = vmax.f32 %v6660, 0.0
      %v6701 = vmax.f32 %v6662, 0.0
      %v6702 = vmax.f32 %v6666, 0.0
      %v6703 = vmax.f32 %v6668, 0.0
      %v6704 = vmax.f32 %v6670, 0.0
      %v6705 = vmax.f32 %v6672, 0.0
      %v6706 = vpack.c.bf16 %v6676, %v6674
      %v6707 = vpack.c.bf16 %v6677, %v6675
      %v6708 = vpack.c.bf16 %v6680, %v6678
      %v6709 = vpack.c.bf16 %v6681, %v6679
      %v6710 = vpack.c.bf16 %v6684, %v6682
      %v6711 = vpack.c.bf16 %v6685, %v6683
      %v6712 = vpack.c.bf16 %v6688, %v6686
      %v6713 = vpack.c.bf16 %v6689, %v6687
      %v6714 = vpack.c.bf16 %v6692, %v6690
      %v6715 = vpack.c.bf16 %v6693, %v6691
      %v6716 = vpack.c.bf16 %v6696, %v6694
      %v6717 = vpack.c.bf16 %v6697, %v6695
      %v6718 = vpack.c.bf16 %v6700, %v6698
      %v6719 = vpack.c.bf16 %v6701, %v6699
      %v6720 = vpack.c.bf16 %v6704, %v6702
      %v6721 = vpack.c.bf16 %v6705, %v6703
      %v6722 = vld [vmem:[%s5] sm:$0xf]
      %v6723 = vld [vmem:[%s5 + $0x4] sm:$0xf]
      %v6724 = vld [vmem:[%s5 + $0x8] sm:$0xf]
      %v6725 = vld [vmem:[%s5 + $0xc] sm:$0xf]
      %v6726 = vld [vmem:[%s5 + $0x10] sm:$0xf]
      %v6727 = vld [vmem:[%s5 + $0x14] sm:$0xf]
      %v6728 = vld [vmem:[%s5 + $0x18] sm:$0xf]
      %v6729 = vld [vmem:[%s5 + $0x1c] sm:$0xf]
      %v6730 = vld [vmem:[%s5 + $0x20] sm:$0xf]
      %v6731 = vld [vmem:[%s5 + $0x24] sm:$0xf]
      %v6732 = vld [vmem:[%s5 + $0x28] sm:$0xf]
      %v6733 = vld [vmem:[%s5 + $0x2c] sm:$0xf]
      %v6734 = vld [vmem:[%s5 + $0x30] sm:$0xf]
      %v6735 = vld [vmem:[%s5 + $0x34] sm:$0xf]
      %v6736 = vld [vmem:[%s5 + $0x38] sm:$0xf]
      %v6737 = vld [vmem:[%s5 + $0x3c] sm:$0xf]
      %v6738 = vld [vmem:[%s5 + $0x40] sm:$0xf]
      %v6739 = vld [vmem:[%s5 + $0x44] sm:$0xf]
      %v6740 = vld [vmem:[%s5 + $0x48] sm:$0xf]
      %v6741 = vld [vmem:[%s5 + $0x4c] sm:$0xf]
      %v6742 = vld [vmem:[%s5 + $0x50] sm:$0xf]
      %v6743 = vld [vmem:[%s5 + $0x54] sm:$0xf]
      %v6744 = vld [vmem:[%s5 + $0x58] sm:$0xf]
      %v6745 = vld [vmem:[%s5 + $0x5c] sm:$0xf]
      %v6746 = vld [vmem:[%s5 + $0x60] sm:$0xf]
      %v6747 = vld [vmem:[%s5 + $0x64] sm:$0xf]
      %v6748 = vld [vmem:[%s5 + $0x68] sm:$0xf]
      %v6749 = vld [vmem:[%s5 + $0x6c] sm:$0xf]
      %v6750 = vld [vmem:[%s5 + $0x70] sm:$0xf]
      %v6751 = vld [vmem:[%s5 + $0x74] sm:$0xf]
      %v6752 = vld [vmem:[%s5 + $0x78] sm:$0xf]
      %v6753 = vld [vmem:[%s5 + $0x7c] sm:$0xf]
      %v6754 = vld [vmem:[%s6] sm:$0x1]
      %v6756 = vlaneseq
      %v6757 = vshrl.u32 %v6756, 7
      %v6758 = vsub.s32 0, %v6757
      %v6759 = vrot.slane %v6754, %v6758
      %v6793 = vunpack.c.l.b16 %v6722
      %v6794 = vunpack.c.l.b16 %v6723
      %v6795 = vunpack.c.l.b16 %v6724
      %v6796 = vunpack.c.l.b16 %v6725
      %v6797 = vunpack.c.l.b16 %v6726
      %v6798 = vunpack.c.l.b16 %v6727
      %v6799 = vunpack.c.l.b16 %v6728
      %v6800 = vunpack.c.l.b16 %v6729
      %v6801 = vunpack.c.l.b16 %v6730
      %v6802 = vunpack.c.l.b16 %v6731
      %v6803 = vunpack.c.l.b16 %v6732
      %v6804 = vunpack.c.l.b16 %v6733
      %v6805 = vunpack.c.l.b16 %v6734
      %v6806 = vunpack.c.l.b16 %v6735
      %v6807 = vunpack.c.l.b16 %v6736
      %v6808 = vunpack.c.l.b16 %v6737
      %v6809 = vunpack.c.l.b16 %v6738
      %v6810 = vunpack.c.l.b16 %v6739
      %v6811 = vunpack.c.l.b16 %v6740
      %v6812 = vunpack.c.l.b16 %v6741
      %v6813 = vunpack.c.l.b16 %v6742
      %v6814 = vunpack.c.l.b16 %v6743
      %v6815 = vunpack.c.l.b16 %v6744
      %v6816 = vunpack.c.l.b16 %v6745
      %v6817 = vunpack.c.l.b16 %v6746
      %v6818 = vunpack.c.l.b16 %v6747
      %v6819 = vunpack.c.l.b16 %v6748
      %v6820 = vunpack.c.l.b16 %v6749
      %v6821 = vunpack.c.l.b16 %v6750
      %v6822 = vunpack.c.l.b16 %v6751
      %v6823 = vunpack.c.l.b16 %v6752
      %v6824 = vunpack.c.l.b16 %v6753
      %v6825 = vpack.c.b16 %v6794, %v6793
      %v6826 = vpack.c.b16 %v6796, %v6795
      %v6827 = vpack.c.b16 %v6798, %v6797
      %v6828 = vpack.c.b16 %v6800, %v6799
      %v6829 = vpack.c.b16 %v6802, %v6801
      %v6830 = vpack.c.b16 %v6804, %v6803
      %v6831 = vpack.c.b16 %v6806, %v6805
      %v6832 = vpack.c.b16 %v6808, %v6807
      %v6833 = vpack.c.b16 %v6810, %v6809
      %v6834 = vpack.c.b16 %v6812, %v6811
      %v6835 = vpack.c.b16 %v6814, %v6813
      %v6836 = vpack.c.b16 %v6816, %v6815
      %v6837 = vpack.c.b16 %v6818, %v6817
      %v6838 = vpack.c.b16 %v6820, %v6819
      %v6839 = vpack.c.b16 %v6822, %v6821
      %v6840 = vpack.c.b16 %v6824, %v6823
      %6857 = vmatprep.subr.bf16.mxu0 0
      %6858 = vmatpush1.bf16.msra.mxu0 %v6825
      %6859 = vmatprep.subr.bf16.mxu0 0
      %6860 = vmatpush1.bf16.msra.mxu0 %v6826
      %6861 = vmatprep.subr.bf16.mxu0 0
      %6862 = vmatpush1.bf16.msra.mxu0 %v6827
      %6863 = vmatprep.subr.bf16.mxu0 0
      %6864 = vmatpush1.bf16.msra.mxu0 %v6828
      %6865 = vmatprep.subr.bf16.mxu0 0
      %6866 = vmatpush1.bf16.msra.mxu0 %v6829
      %6867 = vmatprep.subr.bf16.mxu0 0
      %6868 = vmatpush1.bf16.msra.mxu0 %v6830
      %6869 = vmatprep.subr.bf16.mxu0 0
      %6870 = vmatpush1.bf16.msra.mxu0 %v6831
      %6871 = vmatprep.subr.bf16.mxu0 0
      %6872 = vmatpush1.bf16.msra.mxu0 %v6832
      %6873 = vmatprep.subr.bf16.mxu0 0
      %6874 = vmatpush1.bf16.msra.mxu0 %v6833
      %6875 = vmatprep.subr.bf16.mxu0 0
      %6876 = vmatpush1.bf16.msra.mxu0 %v6834
      %6877 = vmatprep.subr.bf16.mxu0 0
      %6878 = vmatpush1.bf16.msra.mxu0 %v6835
      %6879 = vmatprep.subr.bf16.mxu0 0
      %6880 = vmatpush1.bf16.msra.mxu0 %v6836
      %6881 = vmatprep.subr.bf16.mxu0 0
      %6882 = vmatpush1.bf16.msra.mxu0 %v6837
      %6883 = vmatprep.subr.bf16.mxu0 0
      %6884 = vmatpush1.bf16.msra.mxu0 %v6838
      %6885 = vmatprep.subr.bf16.mxu0 0
      %6886 = vmatpush1.bf16.msra.mxu0 %v6839
      %6887 = vmatprep.subr.bf16.mxu0 0
      %6888 = vmatpush1.bf16.msra.mxu0 %v6840
      %6889 = vmatprep.mubr.bf16.mxu0 %v6707
      %6890 = vmatmul.mubr.bf16.gmra.mrb[0].mxu0 %v6706
      %v6891 = vpop.f32.mrb[0].mxu0
      %v6892 = vadd.f32 %v6759, %v6891
      %v6893 = vpop.f32.mrb[0].mxu0
      %v6894 = vpop.f32.mrb[0].mxu0
      %v6895 = vadd.f32 %v6759, %v6894
      %v6896 = vpop.f32.mrb[0].mxu0
      %6897 = vmatprep.mubr.bf16.mxu0 %v6709
      %6898 = vmatmul.mubr.bf16.gmra.mrb[0].mxu0 %v6708
      %v6899 = vpop.f32.mrb[0].mxu0
      %v6900 = vadd.f32 %v6759, %v6899
      %v6901 = vpop.f32.mrb[0].mxu0
      %v6902 = vpop.f32.mrb[0].mxu0
      %v6903 = vadd.f32 %v6759, %v6902
      %v6904 = vpop.f32.mrb[0].mxu0
      %6905 = vmatprep.mubr.bf16.mxu0 %v6711
      %6906 = vmatmul.mubr.bf16.gmra.mrb[0].mxu0 %v6710
      %v6907 = vpop.f32.mrb[0].mxu0
      %v6908 = vadd.f32 %v6759, %v6907
      %v6909 = vpop.f32.mrb[0].mxu0
      %v6910 = vpop.f32.mrb[0].mxu0
      %v6911 = vadd.f32 %v6759, %v6910
      %v6912 = vpop.f32.mrb[0].mxu0
      %6913 = vmatprep.mubr.bf16.mxu0 %v6713
      %6914 = vmatmul.mubr.bf16.gmra.mrb[0].mxu0 %v6712
      %v6915 = vpop.f32.mrb[0].mxu0
      %v6916 = vadd.f32 %v6759, %v6915
      %v6917 = vpop.f32.mrb[0].mxu0
      %v6918 = vpop.f32.mrb[0].mxu0
      %v6919 = vadd.f32 %v6759, %v6918
      %v6920 = vpop.f32.mrb[0].mxu0
      %6921 = vmatprep.mubr.bf16.mxu0 %v6715
      %6922 = vmatmul.mubr.bf16.gmra.mrb[0].mxu0 %v6714
      %v6923 = vpop.f32.mrb[0].mxu0
      %v6924 = vadd.f32 %v6759, %v6923
      %v6925 = vpop.f32.mrb[0].mxu0
      %v6926 = vpop.f32.mrb[0].mxu0
      %v6927 = vadd.f32 %v6759, %v6926
      %v6928 = vpop.f32.mrb[0].mxu0
      %6929 = vmatprep.mubr.bf16.mxu0 %v6717
      %6930 = vmatmul.mubr.bf16.gmra.mrb[0].mxu0 %v6716
      %v6931 = vpop.f32.mrb[0].mxu0
      %v6932 = vadd.f32 %v6759, %v6931
      %v6933 = vpop.f32.mrb[0].mxu0
      %v6934 = vpop.f32.mrb[0].mxu0
      %v6935 = vadd.f32 %v6759, %v6934
      %v6936 = vpop.f32.mrb[0].mxu0
      %6937 = vmatprep.mubr.bf16.mxu0 %v6719
      %6938 = vmatmul.mubr.bf16.gmra.mrb[0].mxu0 %v6718
      %v6939 = vpop.f32.mrb[0].mxu0
      %v6940 = vadd.f32 %v6759, %v6939
      %v6941 = vpop.f32.mrb[0].mxu0
      %v6942 = vpop.f32.mrb[0].mxu0
      %v6943 = vadd.f32 %v6759, %v6942
      %v6944 = vpop.f32.mrb[0].mxu0
      %6945 = vmatprep.mubr.bf16.mxu0 %v6721
      %6946 = vmatmul.mubr.bf16.gmra.mrb[0].mxu0 %v6720
      %v6947 = vpop.f32.mrb[0].mxu0
      %v6948 = vadd.f32 %v6759, %v6947
      %v6949 = vpop.f32.mrb[0].mxu0
      %v6950 = vpop.f32.mrb[0].mxu0
      %v6951 = vadd.f32 %v6759, %v6950
      %v6952 = vpop.f32.mrb[0].mxu0
      %6953 = vdwg.mxu0
      %6954 = vst [vmem:[%s283] sm:$0xff] %v6892
      %6955 = vst [vmem:[%s283 + $0x8] sm:$0xff] %v6895
      %6956 = vst [vmem:[%s283 + $0x10] sm:$0xff] %v6900
      %6957 = vst [vmem:[%s283 + $0x18] sm:$0xff] %v6903
      %6958 = vst [vmem:[%s283 + $0x20] sm:$0xff] %v6908
      %6959 = vst [vmem:[%s283 + $0x28] sm:$0xff] %v6911
      %6960 = vst [vmem:[%s283 + $0x30] sm:$0xff] %v6916
      %6961 = vst [vmem:[%s283 + $0x38] sm:$0xff] %v6919
      %6962 = vst [vmem:[%s283 + $0x40] sm:$0xff] %v6924
      %6963 = vst [vmem:[%s283 + $0x48] sm:$0xff] %v6927
      %6964 = vst [vmem:[%s283 + $0x50] sm:$0xff] %v6932
      %6965 = vst [vmem:[%s283 + $0x58] sm:$0xff] %v6935
      %6966 = vst [vmem:[%s283 + $0x60] sm:$0xff] %v6940
      %6967 = vst [vmem:[%s283 + $0x68] sm:$0xff] %v6943
      %6968 = vst [vmem:[%s283 + $0x70] sm:$0xff] %v6948
      %6969 = vst [vmem:[%s283 + $0x78] sm:$0xff] %v6951
      %s6970 = smul.u32 16, %s18
      %p6971 = scmp.lt.s32.totalorder %s6970, 31
      %s6972 = scalar_select %p6971, %s6970, 31
      %s6973 = smul.addr %s6972, 8
      %s6974 = scalar_lea.vmem %s7, %s6973
      // Predicated region
      $region49: #{_forward_impl.1} parent=47 // pred_check
        %p6975 = pneg %p188
      $region50: #{_forward_impl.1} parent=47 // pred_check_branch
        %6977 = sbr.rel (%p6975) target = $region52
      $region51: #{_forward_impl.1} parent=47 // pred_region
        %s6978 = smul.u32 16, %s18
      $region52: #{_forward_impl.1} parent=47 // pred_fallthru
        _
    $region48: #{_forward_impl.1} parent=5 // pred_fallthru
      _
    %p6979 = scmp.le.s32.totalorder 2, %s13
    // Predicated region
    $region53: #{_forward_impl.1} parent=5 // pred_check
      %p6980 = pneg %p6979
    $region54: #{_forward_impl.1} parent=5 // pred_check_branch
      %6982 = sbr.rel (%p6980) target = $region56
    $region55: #{_forward_impl.1} parent=5 // pred_region
      %s6983 = ssub.s32 %s13, 2
      // Predicated region
      $region57: #{_forward_impl.1} parent=55 // pred_check
        %p6984 = pneg %p194
      $region58: #{_forward_impl.1} parent=55 // pred_check_branch
        %6986 = sbr.rel (%p6984) target = $region60
      $region59: #{_forward_impl.1} parent=55 // pred_region
        %s6987 = smul.u32 16, %s19
        %p6988 = scmp.lt.s32.totalorder %s6987, 31
        %s6989 = scalar_select %p6988, %s6987, 31
        %s6990 = smul.addr %s6989, 8
        %s6991 = scalar_lea.vmem %s7, %s6990
      $region60: #{_forward_impl.1} parent=55 // pred_fallthru
        _
    $region56: #{_forward_impl.1} parent=5 // pred_fallthru
      _
  $region6: #{_forward_impl.1} parent=0 // loop_footer
    %s17 = sadd.s32 1, %s13
  $region7: #{_forward_impl.1} parent=0 // loop_footer_branch
    %12 = sbr.rel target = $region3
  $region8: #{_forward_impl.1} parent=0 // loop_exit
    _

</llo_original>
